<compile_context>
chip_gen: v6e
topology: v6e:2x2x1
jax: 0.10.0
libtpu: 0.0.40
codegen_flags: <defaults>
</compile_context>

<pallas_src>
import jax
import jax.numpy as jnp
from jax.experimental import pallas as pl
from jax.experimental.pallas import tpu as pltpu

# ----------------------------------------------------------------------------
# Static geometry.
# ----------------------------------------------------------------------------
H, W, CIN = 9, 10, 2                      # input spatial grid / channels
C1, C2 = 32, 64                           # conv output channels
KH = KW = 3
OH1, OW1 = H - KH + 1, W - KW + 1         # 7, 8   (conv1 valid output)
OH2, OW2 = OH1 - KH + 1, OW1 - KW + 1     # 5, 6   (conv2 valid output)
LANES = 128                               # pad every channel dim to full lanes
NTAP = KH * KW

# Activations are kept as 2-D (row, channel) matrices where row = h*W + w on
# the ORIGINAL 9x10 grid; a 3x3 tap (i,j) is then just a row shift of i*W + j.
MAX_D = (KH - 1) * W + (KW - 1)           # 22, largest tap row offset
N_H2 = (OH2 - 1) * W + (OW2 - 1) + 1      # 46: conv2 anchor rows we compute
N_H1 = N_H2 + MAX_D                       # 68: conv1 rows read by conv2 taps
assert N_H1 + MAX_D == H * W              # conv1 taps exactly cover the input


# ----------------------------------------------------------------------------
# Fused kernel: one grid step = one batch element.
# ----------------------------------------------------------------------------
def _qnet_kernel(x_ref, w1_ref, b1_ref, w2_ref, b2_ref,
                 wf1_ref, bf1_ref, wf2_ref, bf2_ref,
                 o_ref, h1_ref, h2_ref):
    bf16 = jnp.bfloat16

    # conv1 + ReLU: sum of 9 shifted (rows x CIN) @ (CIN x 128) matmuls.
    acc1 = jnp.zeros((N_H1, LANES), jnp.float32)
    for t in range(NTAP):
        d = (t // KW) * W + (t % KW)
        xs = x_ref[0, d:d + N_H1, :].astype(bf16)          # (68, 2)
        acc1 += jnp.dot(xs, w1_ref[t], preferred_element_type=jnp.float32)
    h1_ref[...] = jnp.maximum(acc1 + b1_ref[...], 0.0)     # (68, 128), lanes>=32 are 0

    # conv2 + ReLU: same trick on the VMEM-resident conv1 activation.
    acc2 = jnp.zeros((N_H2, LANES), jnp.float32)
    for t in range(NTAP):
        d = (t // KW) * W + (t % KW)
        hs = h1_ref[d:d + N_H2, :].astype(bf16)             # (46, 128)
        acc2 += jnp.dot(hs, w2_ref[t], preferred_element_type=jnp.float32)
    h2_ref[...] = jnp.maximum(acc2 + b2_ref[...], 0.0)      # (46, 128), lanes>=64 are 0

    # "Flatten": lane-concat the 30 valid conv2 output rows -> (1, 30*128).
    # The NCHW flatten order of the PyTorch module is folded into wf1's rows.
    flat = jnp.concatenate(
        [h2_ref[h * W + w: h * W + w + 1, :]
         for h in range(OH2) for w in range(OW2)], axis=1).astype(bf16)

    # fc1 + ReLU, fc2 (outputs padded to 128 lanes; real logits in lanes 0..3).
    h3 = jnp.maximum(
        jnp.dot(flat, wf1_ref[...], preferred_element_type=jnp.float32)
        + bf1_ref[...], 0.0).astype(bf16)                    # (1, 128)
    out = (jnp.dot(h3, wf2_ref[...], preferred_element_type=jnp.float32)
           + bf2_ref[...])                                   # (1, 128) f32
    o_ref[0] = out


# ----------------------------------------------------------------------------
# One-time weight packing (off the hot path): per-tap layout, transposes,
# flatten-permutation folding, lane padding to 128, bf16 cast.
# ----------------------------------------------------------------------------
def pack_params(p):
    f32, bf16 = jnp.float32, jnp.bfloat16

    # conv1 (O=32, I=2, 3, 3) -> (tap, cin, 128)
    w1 = jnp.transpose(p["conv1_w"].astype(f32), (2, 3, 1, 0)).reshape(NTAP, CIN, C1)
    w1p = jnp.zeros((NTAP, CIN, LANES), f32).at[:, :, :C1].set(w1).astype(bf16)
    b1p = jnp.zeros((1, LANES), f32).at[0, :C1].set(p["conv1_b"].astype(f32))

    # conv2 (O=64, I=32, 3, 3) -> (tap, 128, 128)
    w2 = jnp.transpose(p["conv2_w"].astype(f32), (2, 3, 1, 0)).reshape(NTAP, C1, C2)
    w2p = jnp.zeros((NTAP, LANES, LANES), f32).at[:, :C1, :C2].set(w2).astype(bf16)
    b2p = jnp.zeros((1, LANES), f32).at[0, :C2].set(p["conv2_b"].astype(f32))

    # fc1 (128, 1920): torch flat index = c*(OH2*OW2) + s with s = h*OW2 + w.
    # Kernel flat index      = s*128 + c  (spatial-major, channel on lanes).
    wf1 = p["fc1_w"].astype(f32).T.reshape(C2, OH2 * OW2, 128)   # (c, s, o)
    wf1 = jnp.transpose(wf1, (1, 0, 2))                          # (s, c, o)
    wf1p = (jnp.zeros((OH2 * OW2, LANES, 128), f32).at[:, :C2, :].set(wf1)
            .reshape(OH2 * OW2 * LANES, 128).astype(bf16))
    bf1p = p["fc1_b"].astype(f32).reshape(1, 128)

    # fc2 (4, 128) -> (128, 128) lane-padded output.
    wf2p = (jnp.zeros((LANES, LANES), f32)
            .at[:, :4].set(p["fc2_w"].astype(f32).T).astype(bf16))
    bf2p = jnp.zeros((1, LANES), f32).at[0, :4].set(p["fc2_b"].astype(f32))

    return dict(w1=w1p, b1=b1p, w2=w2p, b2=b2p,
                wf1=wf1p, bf1=bf1p, wf2=wf2p, bf2=bf2p)


# ----------------------------------------------------------------------------
# Forward: one pallas_call, grid over batch.
# ----------------------------------------------------------------------------
def qnet_forward(x_nchw, pk):
    B = x_nchw.shape[0]
    # NCHW -> (B, H*W, CIN) rows in (h, w) order; channels on the minor axis.
    x = jnp.transpose(x_nchw.astype(jnp.float32), (0, 2, 3, 1)).reshape(B, H * W, CIN)

    out = pl.pallas_call(
        _qnet_kernel,
        out_shape=jax.ShapeDtypeStruct((B, 1, LANES), jnp.float32),
        grid=(B,),
        in_specs=[
            pl.BlockSpec((1, H * W, CIN), lambda b: (b, 0, 0)),      # x
            pl.BlockSpec((NTAP, CIN, LANES), lambda b: (0, 0, 0)),   # conv1 w
            pl.BlockSpec((1, LANES), lambda b: (0, 0)),              # conv1 b
            pl.BlockSpec((NTAP, LANES, LANES), lambda b: (0, 0, 0)), # conv2 w
            pl.BlockSpec((1, LANES), lambda b: (0, 0)),              # conv2 b
            pl.BlockSpec((OH2 * OW2 * LANES, 128), lambda b: (0, 0)),# fc1 w
            pl.BlockSpec((1, 128), lambda b: (0, 0)),                # fc1 b
            pl.BlockSpec((LANES, LANES), lambda b: (0, 0)),          # fc2 w
            pl.BlockSpec((1, LANES), lambda b: (0, 0)),              # fc2 b
        ],
        out_specs=pl.BlockSpec((1, 1, LANES), lambda b: (b, 0, 0)),
        scratch_shapes=[
            pltpu.VMEM((N_H1, LANES), jnp.float32),   # conv1 activation
            pltpu.VMEM((N_H2, LANES), jnp.float32),   # conv2 activation
        ],
        compiler_params=pltpu.CompilerParams(
            dimension_semantics=("parallel",)),
    )(x, pk["w1"], pk["b1"], pk["w2"], pk["b2"],
      pk["wf1"], pk["bf1"], pk["wf2"], pk["bf2"])

    return out[:, 0, :4]                      # drop the lane padding


# ----------------------------------------------------------------------------
# Pure-JAX f32 reference (correctness check).
# ----------------------------------------------------------------------------
def qnet_reference(x_nchw, params):
    x = x_nchw.astype(jnp.float32)
    dn = jax.lax.conv_dimension_numbers(x.shape, params["conv1_w"].shape,
                                        ("NCHW", "OIHW", "NCHW"))
    y = jax.lax.conv_general_dilated(x, params["conv1_w"], (1, 1), "VALID",
                                     dimension_numbers=dn)
    y = jax.nn.relu(y + params["conv1_b"][None, :, None, None])
    dn2 = jax.lax.conv_dimension_numbers(y.shape, params["conv2_w"].shape,
                                         ("NCHW", "OIHW", "NCHW"))
    y = jax.lax.conv_general_dilated(y, params["conv2_w"], (1, 1), "VALID",
                                     dimension_numbers=dn2)
    y = jax.nn.relu(y + params["conv2_b"][None, :, None, None])
    y = y.reshape(y.shape[0], -1)
    y = jax.nn.relu(y @ params["fc1_w"].T + params["fc1_b"])
    y = y @ params["fc2_w"].T + params["fc2_b"]
    return y


def init_params(key):
    ks = jax.random.split(key, 8)
    s = 0.05
    return {
        "conv1_w": s * jax.random.normal(ks[0], (32, 2, 3, 3), jnp.float32),
        "conv1_b": s * jax.random.normal(ks[1], (32,), jnp.float32),
        "conv2_w": s * jax.random.normal(ks[2], (64, 32, 3, 3), jnp.float32),
        "conv2_b": s * jax.random.normal(ks[3], (64,), jnp.float32),
        "fc1_w": s * jax.random.normal(ks[4], (128, 1920), jnp.float32),
        "fc1_b": s * jax.random.normal(ks[5], (128,), jnp.float32),
        "fc2_w": s * jax.random.normal(ks[6], (4, 128), jnp.float32),
        "fc2_b": s * jax.random.normal(ks[7], (4,), jnp.float32),
    }


if __name__ == "__main__":
    key = jax.random.PRNGKey(0)
    pkey, xkey = jax.random.split(key)
    params = init_params(pkey)
    packed = pack_params(params)                 # one-time weight packing

    # Input consistent with fc1's in_features = 1920: (B, 2, 9, 10).
    x = jax.random.normal(xkey, (2, 2, 9, 10), jnp.float32)

    fwd = jax.jit(qnet_forward)
    out = jax.block_until_ready(fwd(x, packed))
    assert out.shape == (2, 4), out.shape

    ref = jax.block_until_ready(qnet_reference(x, params))
    max_err = float(jnp.max(jnp.abs(out - ref)))
    # bf16 matmul inputs / f32 accumulation -> loose tolerance vs f32 reference.
    assert jnp.allclose(out, ref, atol=2e-2, rtol=2e-2), max_err

    print("KERNEL_OK")
</pallas_src>

<mosaic_0001>
module attributes {stable_mosaic.version = 11 : i64} {
  func.func @_qnet_kernel(%arg0: i32, %arg1: memref<1x90x2xf32, #tpu.memory_space<vmem>>, %arg2: memref<9x2x128xbf16, #tpu.memory_space<vmem>>, %arg3: memref<1x128xf32, #tpu.memory_space<vmem>>, %arg4: memref<9x128x128xbf16, #tpu.memory_space<vmem>>, %arg5: memref<1x128xf32, #tpu.memory_space<vmem>>, %arg6: memref<3840x128xbf16, #tpu.memory_space<vmem>>, %arg7: memref<1x128xf32, #tpu.memory_space<vmem>>, %arg8: memref<128x128xbf16, #tpu.memory_space<vmem>>, %arg9: memref<1x128xf32, #tpu.memory_space<vmem>>, %arg10: memref<1x1x128xf32, #tpu.memory_space<vmem>>, %arg11: memref<68x128xf32, #tpu.memory_space<vmem>>, %arg12: memref<46x128xf32, #tpu.memory_space<vmem>>) attributes {dimension_semantics = [#tpu.dimension_semantics<parallel>], iteration_bounds = array<i64: 2>, scalar_prefetch = 0 : i64, scratch_operands = 2 : i64, tpu.core_type = #tpu.core_type<tc>, window_params = [{transform_indices = @transform_0, window_bounds = array<i64: 1, 90, 2>}, {pipeline_mode = #tpu.pipeline_mode<synchronous>, transform_indices = @transform_1, window_bounds = array<i64: 9, 2, 128>}, {pipeline_mode = #tpu.pipeline_mode<synchronous>, transform_indices = @transform_2, window_bounds = array<i64: 1, 128>}, {pipeline_mode = #tpu.pipeline_mode<synchronous>, transform_indices = @transform_3, window_bounds = array<i64: 9, 128, 128>}, {pipeline_mode = #tpu.pipeline_mode<synchronous>, transform_indices = @transform_4, window_bounds = array<i64: 1, 128>}, {pipeline_mode = #tpu.pipeline_mode<synchronous>, transform_indices = @transform_5, window_bounds = array<i64: 3840, 128>}, {pipeline_mode = #tpu.pipeline_mode<synchronous>, transform_indices = @transform_6, window_bounds = array<i64: 1, 128>}, {pipeline_mode = #tpu.pipeline_mode<synchronous>, transform_indices = @transform_7, window_bounds = array<i64: 128, 128>}, {pipeline_mode = #tpu.pipeline_mode<synchronous>, transform_indices = @transform_8, window_bounds = array<i64: 1, 128>}, {transform_indices = @transform_9, window_bounds = array<i64: 1, 1, 128>}]} {
    %cst = arith.constant 0.000000e+00 : f32
    %0 = vector.broadcast %cst : f32 to vector<68x128xf32>
    %c0 = arith.constant 0 : index
    %c0_0 = arith.constant 0 : index
    %c0_1 = arith.constant 0 : index
    %1 = vector.load %arg1[%c0, %c0_0, %c0_1] : memref<1x90x2xf32, #tpu.memory_space<vmem>>, vector<1x68x2xf32>
    %2 = vector.shape_cast %1 : vector<1x68x2xf32> to vector<68x2xf32>
    %3 = arith.truncf %2 : vector<68x2xf32> to vector<68x2xbf16>
    %c0_2 = arith.constant 0 : index
    %c0_3 = arith.constant 0 : index
    %c0_4 = arith.constant 0 : index
    %4 = vector.load %arg2[%c0_2, %c0_3, %c0_4] : memref<9x2x128xbf16, #tpu.memory_space<vmem>>, vector<1x2x128xbf16>
    %5 = vector.shape_cast %4 : vector<1x2x128xbf16> to vector<2x128xbf16>
    %cst_5 = arith.constant dense<0.000000e+00> : vector<68x128xf32>
    %6 = tpu.matmul %3, %5, %cst_5 {dimension_numbers = #tpu.dot_dimension_numbers<[1], [0], [0], [1], [0, 0, 1, 1], [], []>} : vector<68x2xbf16>, vector<2x128xbf16>, vector<68x128xf32> -> vector<68x128xf32>
    %7 = arith.addf %0, %6 : vector<68x128xf32>
    %c0_6 = arith.constant 0 : index
    %c1 = arith.constant 1 : index
    %c0_7 = arith.constant 0 : index
    %8 = vector.load %arg1[%c0_6, %c1, %c0_7] : memref<1x90x2xf32, #tpu.memory_space<vmem>>, vector<1x68x2xf32>
    %9 = vector.shape_cast %8 : vector<1x68x2xf32> to vector<68x2xf32>
    %10 = arith.truncf %9 : vector<68x2xf32> to vector<68x2xbf16>
    %c1_8 = arith.constant 1 : index
    %c0_9 = arith.constant 0 : index
    %c0_10 = arith.constant 0 : index
    %11 = vector.load %arg2[%c1_8, %c0_9, %c0_10] : memref<9x2x128xbf16, #tpu.memory_space<vmem>>, vector<1x2x128xbf16>
    %12 = vector.shape_cast %11 : vector<1x2x128xbf16> to vector<2x128xbf16>
    %cst_11 = arith.constant dense<0.000000e+00> : vector<68x128xf32>
    %13 = tpu.matmul %10, %12, %cst_11 {dimension_numbers = #tpu.dot_dimension_numbers<[1], [0], [0], [1], [0, 0, 1, 1], [], []>} : vector<68x2xbf16>, vector<2x128xbf16>, vector<68x128xf32> -> vector<68x128xf32>
    %14 = arith.addf %7, %13 : vector<68x128xf32>
    %c0_12 = arith.constant 0 : index
    %c2 = arith.constant 2 : index
    %c0_13 = arith.constant 0 : index
    %15 = vector.load %arg1[%c0_12, %c2, %c0_13] : memref<1x90x2xf32, #tpu.memory_space<vmem>>, vector<1x68x2xf32>
    %16 = vector.shape_cast %15 : vector<1x68x2xf32> to vector<68x2xf32>
    %17 = arith.truncf %16 : vector<68x2xf32> to vector<68x2xbf16>
    %c2_14 = arith.constant 2 : index
    %c0_15 = arith.constant 0 : index
    %c0_16 = arith.constant 0 : index
    %18 = vector.load %arg2[%c2_14, %c0_15, %c0_16] : memref<9x2x128xbf16, #tpu.memory_space<vmem>>, vector<1x2x128xbf16>
    %19 = vector.shape_cast %18 : vector<1x2x128xbf16> to vector<2x128xbf16>
    %cst_17 = arith.constant dense<0.000000e+00> : vector<68x128xf32>
    %20 = tpu.matmul %17, %19, %cst_17 {dimension_numbers = #tpu.dot_dimension_numbers<[1], [0], [0], [1], [0, 0, 1, 1], [], []>} : vector<68x2xbf16>, vector<2x128xbf16>, vector<68x128xf32> -> vector<68x128xf32>
    %21 = arith.addf %14, %20 : vector<68x128xf32>
    %c0_18 = arith.constant 0 : index
    %c10 = arith.constant 10 : index
    %c0_19 = arith.constant 0 : index
    %22 = vector.load %arg1[%c0_18, %c10, %c0_19] : memref<1x90x2xf32, #tpu.memory_space<vmem>>, vector<1x68x2xf32>
    %23 = vector.shape_cast %22 : vector<1x68x2xf32> to vector<68x2xf32>
    %24 = arith.truncf %23 : vector<68x2xf32> to vector<68x2xbf16>
    %c3 = arith.constant 3 : index
    %c0_20 = arith.constant 0 : index
    %c0_21 = arith.constant 0 : index
    %25 = vector.load %arg2[%c3, %c0_20, %c0_21] : memref<9x2x128xbf16, #tpu.memory_space<vmem>>, vector<1x2x128xbf16>
    %26 = vector.shape_cast %25 : vector<1x2x128xbf16> to vector<2x128xbf16>
    %cst_22 = arith.constant dense<0.000000e+00> : vector<68x128xf32>
    %27 = tpu.matmul %24, %26, %cst_22 {dimension_numbers = #tpu.dot_dimension_numbers<[1], [0], [0], [1], [0, 0, 1, 1], [], []>} : vector<68x2xbf16>, vector<2x128xbf16>, vector<68x128xf32> -> vector<68x128xf32>
    %28 = arith.addf %21, %27 : vector<68x128xf32>
    %c0_23 = arith.constant 0 : index
    %c11 = arith.constant 11 : index
    %c0_24 = arith.constant 0 : index
    %29 = vector.load %arg1[%c0_23, %c11, %c0_24] : memref<1x90x2xf32, #tpu.memory_space<vmem>>, vector<1x68x2xf32>
    %30 = vector.shape_cast %29 : vector<1x68x2xf32> to vector<68x2xf32>
    %31 = arith.truncf %30 : vector<68x2xf32> to vector<68x2xbf16>
    %c4 = arith.constant 4 : index
    %c0_25 = arith.constant 0 : index
    %c0_26 = arith.constant 0 : index
    %32 = vector.load %arg2[%c4, %c0_25, %c0_26] : memref<9x2x128xbf16, #tpu.memory_space<vmem>>, vector<1x2x128xbf16>
    %33 = vector.shape_cast %32 : vector<1x2x128xbf16> to vector<2x128xbf16>
    %cst_27 = arith.constant dense<0.000000e+00> : vector<68x128xf32>
    %34 = tpu.matmul %31, %33, %cst_27 {dimension_numbers = #tpu.dot_dimension_numbers<[1], [0], [0], [1], [0, 0, 1, 1], [], []>} : vector<68x2xbf16>, vector<2x128xbf16>, vector<68x128xf32> -> vector<68x128xf32>
    %35 = arith.addf %28, %34 : vector<68x128xf32>
    %c0_28 = arith.constant 0 : index
    %c12 = arith.constant 12 : index
    %c0_29 = arith.constant 0 : index
    %36 = vector.load %arg1[%c0_28, %c12, %c0_29] : memref<1x90x2xf32, #tpu.memory_space<vmem>>, vector<1x68x2xf32>
    %37 = vector.shape_cast %36 : vector<1x68x2xf32> to vector<68x2xf32>
    %38 = arith.truncf %37 : vector<68x2xf32> to vector<68x2xbf16>
    %c5 = arith.constant 5 : index
    %c0_30 = arith.constant 0 : index
    %c0_31 = arith.constant 0 : index
    %39 = vector.load %arg2[%c5, %c0_30, %c0_31] : memref<9x2x128xbf16, #tpu.memory_space<vmem>>, vector<1x2x128xbf16>
    %40 = vector.shape_cast %39 : vector<1x2x128xbf16> to vector<2x128xbf16>
    %cst_32 = arith.constant dense<0.000000e+00> : vector<68x128xf32>
    %41 = tpu.matmul %38, %40, %cst_32 {dimension_numbers = #tpu.dot_dimension_numbers<[1], [0], [0], [1], [0, 0, 1, 1], [], []>} : vector<68x2xbf16>, vector<2x128xbf16>, vector<68x128xf32> -> vector<68x128xf32>
    %42 = arith.addf %35, %41 : vector<68x128xf32>
    %c0_33 = arith.constant 0 : index
    %c20 = arith.constant 20 : index
    %c0_34 = arith.constant 0 : index
    %43 = vector.load %arg1[%c0_33, %c20, %c0_34] : memref<1x90x2xf32, #tpu.memory_space<vmem>>, vector<1x68x2xf32>
    %44 = vector.shape_cast %43 : vector<1x68x2xf32> to vector<68x2xf32>
    %45 = arith.truncf %44 : vector<68x2xf32> to vector<68x2xbf16>
    %c6 = arith.constant 6 : index
    %c0_35 = arith.constant 0 : index
    %c0_36 = arith.constant 0 : index
    %46 = vector.load %arg2[%c6, %c0_35, %c0_36] : memref<9x2x128xbf16, #tpu.memory_space<vmem>>, vector<1x2x128xbf16>
    %47 = vector.shape_cast %46 : vector<1x2x128xbf16> to vector<2x128xbf16>
    %cst_37 = arith.constant dense<0.000000e+00> : vector<68x128xf32>
    %48 = tpu.matmul %45, %47, %cst_37 {dimension_numbers = #tpu.dot_dimension_numbers<[1], [0], [0], [1], [0, 0, 1, 1], [], []>} : vector<68x2xbf16>, vector<2x128xbf16>, vector<68x128xf32> -> vector<68x128xf32>
    %49 = arith.addf %42, %48 : vector<68x128xf32>
    %c0_38 = arith.constant 0 : index
    %c21 = arith.constant 21 : index
    %c0_39 = arith.constant 0 : index
    %50 = vector.load %arg1[%c0_38, %c21, %c0_39] : memref<1x90x2xf32, #tpu.memory_space<vmem>>, vector<1x68x2xf32>
    %51 = vector.shape_cast %50 : vector<1x68x2xf32> to vector<68x2xf32>
    %52 = arith.truncf %51 : vector<68x2xf32> to vector<68x2xbf16>
    %c7 = arith.constant 7 : index
    %c0_40 = arith.constant 0 : index
    %c0_41 = arith.constant 0 : index
    %53 = vector.load %arg2[%c7, %c0_40, %c0_41] : memref<9x2x128xbf16, #tpu.memory_space<vmem>>, vector<1x2x128xbf16>
    %54 = vector.shape_cast %53 : vector<1x2x128xbf16> to vector<2x128xbf16>
    %cst_42 = arith.constant dense<0.000000e+00> : vector<68x128xf32>
    %55 = tpu.matmul %52, %54, %cst_42 {dimension_numbers = #tpu.dot_dimension_numbers<[1], [0], [0], [1], [0, 0, 1, 1], [], []>} : vector<68x2xbf16>, vector<2x128xbf16>, vector<68x128xf32> -> vector<68x128xf32>
    %56 = arith.addf %49, %55 : vector<68x128xf32>
    %c0_43 = arith.constant 0 : index
    %c22 = arith.constant 22 : index
    %c0_44 = arith.constant 0 : index
    %57 = vector.load %arg1[%c0_43, %c22, %c0_44] : memref<1x90x2xf32, #tpu.memory_space<vmem>>, vector<1x68x2xf32>
    %58 = vector.shape_cast %57 : vector<1x68x2xf32> to vector<68x2xf32>
    %59 = arith.truncf %58 : vector<68x2xf32> to vector<68x2xbf16>
    %c8 = arith.constant 8 : index
    %c0_45 = arith.constant 0 : index
    %c0_46 = arith.constant 0 : index
    %60 = vector.load %arg2[%c8, %c0_45, %c0_46] : memref<9x2x128xbf16, #tpu.memory_space<vmem>>, vector<1x2x128xbf16>
    %61 = vector.shape_cast %60 : vector<1x2x128xbf16> to vector<2x128xbf16>
    %cst_47 = arith.constant dense<0.000000e+00> : vector<68x128xf32>
    %62 = tpu.matmul %59, %61, %cst_47 {dimension_numbers = #tpu.dot_dimension_numbers<[1], [0], [0], [1], [0, 0, 1, 1], [], []>} : vector<68x2xbf16>, vector<2x128xbf16>, vector<68x128xf32> -> vector<68x128xf32>
    %63 = arith.addf %56, %62 : vector<68x128xf32>
    %c0_48 = arith.constant 0 : index
    %c0_49 = arith.constant 0 : index
    %64 = vector.load %arg3[%c0_48, %c0_49] : memref<1x128xf32, #tpu.memory_space<vmem>>, vector<1x128xf32>
    %65 = vector.broadcast %64 : vector<1x128xf32> to vector<68x128xf32>
    %66 = arith.addf %63, %65 : vector<68x128xf32>
    %cst_50 = arith.constant 0.000000e+00 : f32
    %67 = vector.broadcast %cst_50 : f32 to vector<68x128xf32>
    %68 = arith.maximumf %66, %67 : vector<68x128xf32>
    %c0_51 = arith.constant 0 : index
    %c0_52 = arith.constant 0 : index
    %69 = vector.load %arg11[%c0_51, %c0_52] : memref<68x128xf32, #tpu.memory_space<vmem>>, vector<68x128xf32>
    tpu.vector_store %arg11[%c0_51, %c0_52], %68 {strides = array<i32>} : memref<68x128xf32, #tpu.memory_space<vmem>>, vector<68x128xf32>,
    %cst_53 = arith.constant 0.000000e+00 : f32
    %70 = vector.broadcast %cst_53 : f32 to vector<46x128xf32>
    %c0_54 = arith.constant 0 : index
    %c0_55 = arith.constant 0 : index
    %71 = vector.load %arg11[%c0_54, %c0_55] : memref<68x128xf32, #tpu.memory_space<vmem>>, vector<46x128xf32>
    %72 = arith.truncf %71 : vector<46x128xf32> to vector<46x128xbf16>
    %c0_56 = arith.constant 0 : index
    %c0_57 = arith.constant 0 : index
    %c0_58 = arith.constant 0 : index
    %73 = vector.load %arg4[%c0_56, %c0_57, %c0_58] : memref<9x128x128xbf16, #tpu.memory_space<vmem>>, vector<1x128x128xbf16>
    %74 = vector.shape_cast %73 : vector<1x128x128xbf16> to vector<128x128xbf16>
    %cst_59 = arith.constant dense<0.000000e+00> : vector<46x128xf32>
    %75 = tpu.matmul %72, %74, %cst_59 {dimension_numbers = #tpu.dot_dimension_numbers<[1], [0], [0], [1], [0, 0, 1, 1], [], []>} : vector<46x128xbf16>, vector<128x128xbf16>, vector<46x128xf32> -> vector<46x128xf32>
    %76 = arith.addf %70, %75 : vector<46x128xf32>
    %c1_60 = arith.constant 1 : index
    %c0_61 = arith.constant 0 : index
    %77 = vector.load %arg11[%c1_60, %c0_61] : memref<68x128xf32, #tpu.memory_space<vmem>>, vector<46x128xf32>
    %78 = arith.truncf %77 : vector<46x128xf32> to vector<46x128xbf16>
    %c1_62 = arith.constant 1 : index
    %c0_63 = arith.constant 0 : index
    %c0_64 = arith.constant 0 : index
    %79 = vector.load %arg4[%c1_62, %c0_63, %c0_64] : memref<9x128x128xbf16, #tpu.memory_space<vmem>>, vector<1x128x128xbf16>
    %80 = vector.shape_cast %79 : vector<1x128x128xbf16> to vector<128x128xbf16>
    %cst_65 = arith.constant dense<0.000000e+00> : vector<46x128xf32>
    %81 = tpu.matmul %78, %80, %cst_65 {dimension_numbers = #tpu.dot_dimension_numbers<[1], [0], [0], [1], [0, 0, 1, 1], [], []>} : vector<46x128xbf16>, vector<128x128xbf16>, vector<46x128xf32> -> vector<46x128xf32>
    %82 = arith.addf %76, %81 : vector<46x128xf32>
    %c2_66 = arith.constant 2 : index
    %c0_67 = arith.constant 0 : index
    %83 = vector.load %arg11[%c2_66, %c0_67] : memref<68x128xf32, #tpu.memory_space<vmem>>, vector<46x128xf32>
    %84 = arith.truncf %83 : vector<46x128xf32> to vector<46x128xbf16>
    %c2_68 = arith.constant 2 : index
    %c0_69 = arith.constant 0 : index
    %c0_70 = arith.constant 0 : index
    %85 = vector.load %arg4[%c2_68, %c0_69, %c0_70] : memref<9x128x128xbf16, #tpu.memory_space<vmem>>, vector<1x128x128xbf16>
    %86 = vector.shape_cast %85 : vector<1x128x128xbf16> to vector<128x128xbf16>
    %cst_71 = arith.constant dense<0.000000e+00> : vector<46x128xf32>
    %87 = tpu.matmul %84, %86, %cst_71 {dimension_numbers = #tpu.dot_dimension_numbers<[1], [0], [0], [1], [0, 0, 1, 1], [], []>} : vector<46x128xbf16>, vector<128x128xbf16>, vector<46x128xf32> -> vector<46x128xf32>
    %88 = arith.addf %82, %87 : vector<46x128xf32>
    %c10_72 = arith.constant 10 : index
    %c0_73 = arith.constant 0 : index
    %89 = vector.load %arg11[%c10_72, %c0_73] : memref<68x128xf32, #tpu.memory_space<vmem>>, vector<46x128xf32>
    %90 = arith.truncf %89 : vector<46x128xf32> to vector<46x128xbf16>
    %c3_74 = arith.constant 3 : index
    %c0_75 = arith.constant 0 : index
    %c0_76 = arith.constant 0 : index
    %91 = vector.load %arg4[%c3_74, %c0_75, %c0_76] : memref<9x128x128xbf16, #tpu.memory_space<vmem>>, vector<1x128x128xbf16>
    %92 = vector.shape_cast %91 : vector<1x128x128xbf16> to vector<128x128xbf16>
    %cst_77 = arith.constant dense<0.000000e+00> : vector<46x128xf32>
    %93 = tpu.matmul %90, %92, %cst_77 {dimension_numbers = #tpu.dot_dimension_numbers<[1], [0], [0], [1], [0, 0, 1, 1], [], []>} : vector<46x128xbf16>, vector<128x128xbf16>, vector<46x128xf32> -> vector<46x128xf32>
    %94 = arith.addf %88, %93 : vector<46x128xf32>
    %c11_78 = arith.constant 11 : index
    %c0_79 = arith.constant 0 : index
    %95 = vector.load %arg11[%c11_78, %c0_79] : memref<68x128xf32, #tpu.memory_space<vmem>>, vector<46x128xf32>
    %96 = arith.truncf %95 : vector<46x128xf32> to vector<46x128xbf16>
    %c4_80 = arith.constant 4 : index
    %c0_81 = arith.constant 0 : index
    %c0_82 = arith.constant 0 : index
    %97 = vector.load %arg4[%c4_80, %c0_81, %c0_82] : memref<9x128x128xbf16, #tpu.memory_space<vmem>>, vector<1x128x128xbf16>
    %98 = vector.shape_cast %97 : vector<1x128x128xbf16> to vector<128x128xbf16>
    %cst_83 = arith.constant dense<0.000000e+00> : vector<46x128xf32>
    %99 = tpu.matmul %96, %98, %cst_83 {dimension_numbers = #tpu.dot_dimension_numbers<[1], [0], [0], [1], [0, 0, 1, 1], [], []>} : vector<46x128xbf16>, vector<128x128xbf16>, vector<46x128xf32> -> vector<46x128xf32>
    %100 = arith.addf %94, %99 : vector<46x128xf32>
    %c12_84 = arith.constant 12 : index
    %c0_85 = arith.constant 0 : index
    %101 = vector.load %arg11[%c12_84, %c0_85] : memref<68x128xf32, #tpu.memory_space<vmem>>, vector<46x128xf32>
    %102 = arith.truncf %101 : vector<46x128xf32> to vector<46x128xbf16>
    %c5_86 = arith.constant 5 : index
    %c0_87 = arith.constant 0 : index
    %c0_88 = arith.constant 0 : index
    %103 = vector.load %arg4[%c5_86, %c0_87, %c0_88] : memref<9x128x128xbf16, #tpu.memory_space<vmem>>, vector<1x128x128xbf16>
    %104 = vector.shape_cast %103 : vector<1x128x128xbf16> to vector<128x128xbf16>
    %cst_89 = arith.constant dense<0.000000e+00> : vector<46x128xf32>
    %105 = tpu.matmul %102, %104, %cst_89 {dimension_numbers = #tpu.dot_dimension_numbers<[1], [0], [0], [1], [0, 0, 1, 1], [], []>} : vector<46x128xbf16>, vector<128x128xbf16>, vector<46x128xf32> -> vector<46x128xf32>
    %106 = arith.addf %100, %105 : vector<46x128xf32>
    %c20_90 = arith.constant 20 : index
    %c0_91 = arith.constant 0 : index
    %107 = vector.load %arg11[%c20_90, %c0_91] : memref<68x128xf32, #tpu.memory_space<vmem>>, vector<46x128xf32>
    %108 = arith.truncf %107 : vector<46x128xf32> to vector<46x128xbf16>
    %c6_92 = arith.constant 6 : index
    %c0_93 = arith.constant 0 : index
    %c0_94 = arith.constant 0 : index
    %109 = vector.load %arg4[%c6_92, %c0_93, %c0_94] : memref<9x128x128xbf16, #tpu.memory_space<vmem>>, vector<1x128x128xbf16>
    %110 = vector.shape_cast %109 : vector<1x128x128xbf16> to vector<128x128xbf16>
    %cst_95 = arith.constant dense<0.000000e+00> : vector<46x128xf32>
    %111 = tpu.matmul %108, %110, %cst_95 {dimension_numbers = #tpu.dot_dimension_numbers<[1], [0], [0], [1], [0, 0, 1, 1], [], []>} : vector<46x128xbf16>, vector<128x128xbf16>, vector<46x128xf32> -> vector<46x128xf32>
    %112 = arith.addf %106, %111 : vector<46x128xf32>
    %c21_96 = arith.constant 21 : index
    %c0_97 = arith.constant 0 : index
    %113 = vector.load %arg11[%c21_96, %c0_97] : memref<68x128xf32, #tpu.memory_space<vmem>>, vector<46x128xf32>
    %114 = arith.truncf %113 : vector<46x128xf32> to vector<46x128xbf16>
    %c7_98 = arith.constant 7 : index
    %c0_99 = arith.constant 0 : index
    %c0_100 = arith.constant 0 : index
    %115 = vector.load %arg4[%c7_98, %c0_99, %c0_100] : memref<9x128x128xbf16, #tpu.memory_space<vmem>>, vector<1x128x128xbf16>
    %116 = vector.shape_cast %115 : vector<1x128x128xbf16> to vector<128x128xbf16>
    %cst_101 = arith.constant dense<0.000000e+00> : vector<46x128xf32>
    %117 = tpu.matmul %114, %116, %cst_101 {dimension_numbers = #tpu.dot_dimension_numbers<[1], [0], [0], [1], [0, 0, 1, 1], [], []>} : vector<46x128xbf16>, vector<128x128xbf16>, vector<46x128xf32> -> vector<46x128xf32>
    %118 = arith.addf %112, %117 : vector<46x128xf32>
    %c22_102 = arith.constant 22 : index
    %c0_103 = arith.constant 0 : index
    %119 = vector.load %arg11[%c22_102, %c0_103] : memref<68x128xf32, #tpu.memory_space<vmem>>, vector<46x128xf32>
    %120 = arith.truncf %119 : vector<46x128xf32> to vector<46x128xbf16>
    %c8_104 = arith.constant 8 : index
    %c0_105 = arith.constant 0 : index
    %c0_106 = arith.constant 0 : index
    %121 = vector.load %arg4[%c8_104, %c0_105, %c0_106] : memref<9x128x128xbf16, #tpu.memory_space<vmem>>, vector<1x128x128xbf16>
    %122 = vector.shape_cast %121 : vector<1x128x128xbf16> to vector<128x128xbf16>
    %cst_107 = arith.constant dense<0.000000e+00> : vector<46x128xf32>
    %123 = tpu.matmul %120, %122, %cst_107 {dimension_numbers = #tpu.dot_dimension_numbers<[1], [0], [0], [1], [0, 0, 1, 1], [], []>} : vector<46x128xbf16>, vector<128x128xbf16>, vector<46x128xf32> -> vector<46x128xf32>
    %124 = arith.addf %118, %123 : vector<46x128xf32>
    %c0_108 = arith.constant 0 : index
    %c0_109 = arith.constant 0 : index
    %125 = vector.load %arg5[%c0_108, %c0_109] : memref<1x128xf32, #tpu.memory_space<vmem>>, vector<1x128xf32>
    %126 = vector.broadcast %125 : vector<1x128xf32> to vector<46x128xf32>
    %127 = arith.addf %124, %126 : vector<46x128xf32>
    %cst_110 = arith.constant 0.000000e+00 : f32
    %128 = vector.broadcast %cst_110 : f32 to vector<46x128xf32>
    %129 = arith.maximumf %127, %128 : vector<46x128xf32>
    %c0_111 = arith.constant 0 : index
    %c0_112 = arith.constant 0 : index
    %130 = vector.load %arg12[%c0_111, %c0_112] : memref<46x128xf32, #tpu.memory_space<vmem>>, vector<46x128xf32>
    tpu.vector_store %arg12[%c0_111, %c0_112], %129 {strides = array<i32>} : memref<46x128xf32, #tpu.memory_space<vmem>>, vector<46x128xf32>,
    %c0_113 = arith.constant 0 : index
    %c0_114 = arith.constant 0 : index
    %131 = vector.load %arg12[%c0_113, %c0_114] : memref<46x128xf32, #tpu.memory_space<vmem>>, vector<1x128xf32>
    %c1_115 = arith.constant 1 : index
    %c0_116 = arith.constant 0 : index
    %132 = vector.load %arg12[%c1_115, %c0_116] : memref<46x128xf32, #tpu.memory_space<vmem>>, vector<1x128xf32>
    %c2_117 = arith.constant 2 : index
    %c0_118 = arith.constant 0 : index
    %133 = vector.load %arg12[%c2_117, %c0_118] : memref<46x128xf32, #tpu.memory_space<vmem>>, vector<1x128xf32>
    %c3_119 = arith.constant 3 : index
    %c0_120 = arith.constant 0 : index
    %134 = vector.load %arg12[%c3_119, %c0_120] : memref<46x128xf32, #tpu.memory_space<vmem>>, vector<1x128xf32>
    %c4_121 = arith.constant 4 : index
    %c0_122 = arith.constant 0 : index
    %135 = vector.load %arg12[%c4_121, %c0_122] : memref<46x128xf32, #tpu.memory_space<vmem>>, vector<1x128xf32>
    %c5_123 = arith.constant 5 : index
    %c0_124 = arith.constant 0 : index
    %136 = vector.load %arg12[%c5_123, %c0_124] : memref<46x128xf32, #tpu.memory_space<vmem>>, vector<1x128xf32>
    %c10_125 = arith.constant 10 : index
    %c0_126 = arith.constant 0 : index
    %137 = vector.load %arg12[%c10_125, %c0_126] : memref<46x128xf32, #tpu.memory_space<vmem>>, vector<1x128xf32>
    %c11_127 = arith.constant 11 : index
    %c0_128 = arith.constant 0 : index
    %138 = vector.load %arg12[%c11_127, %c0_128] : memref<46x128xf32, #tpu.memory_space<vmem>>, vector<1x128xf32>
    %c12_129 = arith.constant 12 : index
    %c0_130 = arith.constant 0 : index
    %139 = vector.load %arg12[%c12_129, %c0_130] : memref<46x128xf32, #tpu.memory_space<vmem>>, vector<1x128xf32>
    %c13 = arith.constant 13 : index
    %c0_131 = arith.constant 0 : index
    %140 = vector.load %arg12[%c13, %c0_131] : memref<46x128xf32, #tpu.memory_space<vmem>>, vector<1x128xf32>
    %c14 = arith.constant 14 : index
    %c0_132 = arith.constant 0 : index
    %141 = vector.load %arg12[%c14, %c0_132] : memref<46x128xf32, #tpu.memory_space<vmem>>, vector<1x128xf32>
    %c15 = arith.constant 15 : index
    %c0_133 = arith.constant 0 : index
    %142 = vector.load %arg12[%c15, %c0_133] : memref<46x128xf32, #tpu.memory_space<vmem>>, vector<1x128xf32>
    %c20_134 = arith.constant 20 : index
    %c0_135 = arith.constant 0 : index
    %143 = vector.load %arg12[%c20_134, %c0_135] : memref<46x128xf32, #tpu.memory_space<vmem>>, vector<1x128xf32>
    %c21_136 = arith.constant 21 : index
    %c0_137 = arith.constant 0 : index
    %144 = vector.load %arg12[%c21_136, %c0_137] : memref<46x128xf32, #tpu.memory_space<vmem>>, vector<1x128xf32>
    %c22_138 = arith.constant 22 : index
    %c0_139 = arith.constant 0 : index
    %145 = vector.load %arg12[%c22_138, %c0_139] : memref<46x128xf32, #tpu.memory_space<vmem>>, vector<1x128xf32>
    %c23 = arith.constant 23 : index
    %c0_140 = arith.constant 0 : index
    %146 = vector.load %arg12[%c23, %c0_140] : memref<46x128xf32, #tpu.memory_space<vmem>>, vector<1x128xf32>
    %c24 = arith.constant 24 : index
    %c0_141 = arith.constant 0 : index
    %147 = vector.load %arg12[%c24, %c0_141] : memref<46x128xf32, #tpu.memory_space<vmem>>, vector<1x128xf32>
    %c25 = arith.constant 25 : index
    %c0_142 = arith.constant 0 : index
    %148 = vector.load %arg12[%c25, %c0_142] : memref<46x128xf32, #tpu.memory_space<vmem>>, vector<1x128xf32>
    %c30 = arith.constant 30 : index
    %c0_143 = arith.constant 0 : index
    %149 = vector.load %arg12[%c30, %c0_143] : memref<46x128xf32, #tpu.memory_space<vmem>>, vector<1x128xf32>
    %c31 = arith.constant 31 : index
    %c0_144 = arith.constant 0 : index
    %150 = vector.load %arg12[%c31, %c0_144] : memref<46x128xf32, #tpu.memory_space<vmem>>, vector<1x128xf32>
    %c32 = arith.constant 32 : index
    %c0_145 = arith.constant 0 : index
    %151 = vector.load %arg12[%c32, %c0_145] : memref<46x128xf32, #tpu.memory_space<vmem>>, vector<1x128xf32>
    %c33 = arith.constant 33 : index
    %c0_146 = arith.constant 0 : index
    %152 = vector.load %arg12[%c33, %c0_146] : memref<46x128xf32, #tpu.memory_space<vmem>>, vector<1x128xf32>
    %c34 = arith.constant 34 : index
    %c0_147 = arith.constant 0 : index
    %153 = vector.load %arg12[%c34, %c0_147] : memref<46x128xf32, #tpu.memory_space<vmem>>, vector<1x128xf32>
    %c35 = arith.constant 35 : index
    %c0_148 = arith.constant 0 : index
    %154 = vector.load %arg12[%c35, %c0_148] : memref<46x128xf32, #tpu.memory_space<vmem>>, vector<1x128xf32>
    %c40 = arith.constant 40 : index
    %c0_149 = arith.constant 0 : index
    %155 = vector.load %arg12[%c40, %c0_149] : memref<46x128xf32, #tpu.memory_space<vmem>>, vector<1x128xf32>
    %c41 = arith.constant 41 : index
    %c0_150 = arith.constant 0 : index
    %156 = vector.load %arg12[%c41, %c0_150] : memref<46x128xf32, #tpu.memory_space<vmem>>, vector<1x128xf32>
    %c42 = arith.constant 42 : index
    %c0_151 = arith.constant 0 : index
    %157 = vector.load %arg12[%c42, %c0_151] : memref<46x128xf32, #tpu.memory_space<vmem>>, vector<1x128xf32>
    %c43 = arith.constant 43 : index
    %c0_152 = arith.constant 0 : index
    %158 = vector.load %arg12[%c43, %c0_152] : memref<46x128xf32, #tpu.memory_space<vmem>>, vector<1x128xf32>
    %c44 = arith.constant 44 : index
    %c0_153 = arith.constant 0 : index
    %159 = vector.load %arg12[%c44, %c0_153] : memref<46x128xf32, #tpu.memory_space<vmem>>, vector<1x128xf32>
    %c45 = arith.constant 45 : index
    %c0_154 = arith.constant 0 : index
    %160 = vector.load %arg12[%c45, %c0_154] : memref<46x128xf32, #tpu.memory_space<vmem>>, vector<1x128xf32>
    %161 = tpu.concatenate %131, %132, %133, %134, %135, %136, %137, %138, %139, %140, %141, %142, %143, %144, %145, %146 in 1 : vector<1x128xf32>, vector<1x128xf32>, vector<1x128xf32>, vector<1x128xf32>, vector<1x128xf32>, vector<1x128xf32>, vector<1x128xf32>, vector<1x128xf32>, vector<1x128xf32>, vector<1x128xf32>, vector<1x128xf32>, vector<1x128xf32>, vector<1x128xf32>, vector<1x128xf32>, vector<1x128xf32>, vector<1x128xf32> -> vector<1x2048xf32>
    %162 = tpu.concatenate %147, %148, %149, %150, %151, %152, %153, %154, %155, %156, %157, %158, %159, %160 in 1 : vector<1x128xf32>, vector<1x128xf32>, vector<1x128xf32>, vector<1x128xf32>, vector<1x128xf32>, vector<1x128xf32>, vector<1x128xf32>, vector<1x128xf32>, vector<1x128xf32>, vector<1x128xf32>, vector<1x128xf32>, vector<1x128xf32>, vector<1x128xf32>, vector<1x128xf32> -> vector<1x1792xf32>
    %163 = tpu.concatenate %161, %162 in 1 : vector<1x2048xf32>, vector<1x1792xf32> -> vector<1x3840xf32>
    %164 = arith.truncf %163 : vector<1x3840xf32> to vector<1x3840xbf16>
    %c0_155 = arith.constant 0 : index
    %c0_156 = arith.constant 0 : index
    %165 = vector.load %arg6[%c0_155, %c0_156] : memref<3840x128xbf16, #tpu.memory_space<vmem>>, vector<3840x128xbf16>
    %cst_157 = arith.constant dense<0.000000e+00> : vector<1x128xf32>
    %166 = tpu.matmul %164, %165, %cst_157 {dimension_numbers = #tpu.dot_dimension_numbers<[1], [0], [0], [1], [0, 0, 1, 1], [], []>} : vector<1x3840xbf16>, vector<3840x128xbf16>, vector<1x128xf32> -> vector<1x128xf32>
    %c0_158 = arith.constant 0 : index
    %c0_159 = arith.constant 0 : index
    %167 = vector.load %arg7[%c0_158, %c0_159] : memref<1x128xf32, #tpu.memory_space<vmem>>, vector<1x128xf32>
    %168 = arith.addf %166, %167 : vector<1x128xf32>
    %cst_160 = arith.constant 0.000000e+00 : f32
    %169 = vector.broadcast %cst_160 : f32 to vector<1x128xf32>
    %170 = arith.maximumf %168, %169 : vector<1x128xf32>
    %171 = arith.truncf %170 : vector<1x128xf32> to vector<1x128xbf16>
    %c0_161 = arith.constant 0 : index
    %c0_162 = arith.constant 0 : index
    %172 = vector.load %arg8[%c0_161, %c0_162] : memref<128x128xbf16, #tpu.memory_space<vmem>>, vector<128x128xbf16>
    %cst_163 = arith.constant dense<0.000000e+00> : vector<1x128xf32>
    %173 = tpu.matmul %171, %172, %cst_163 {dimension_numbers = #tpu.dot_dimension_numbers<[1], [0], [0], [1], [0, 0, 1, 1], [], []>} : vector<1x128xbf16>, vector<128x128xbf16>, vector<1x128xf32> -> vector<1x128xf32>
    %c0_164 = arith.constant 0 : index
    %c0_165 = arith.constant 0 : index
    %174 = vector.load %arg9[%c0_164, %c0_165] : memref<1x128xf32, #tpu.memory_space<vmem>>, vector<1x128xf32>
    %175 = arith.addf %173, %174 : vector<1x128xf32>
    %c0_166 = arith.constant 0 : index
    %c0_167 = arith.constant 0 : index
    %c0_168 = arith.constant 0 : index
    %176 = vector.load %arg10[%c0_166, %c0_167, %c0_168] : memref<1x1x128xf32, #tpu.memory_space<vmem>>, vector<1x1x128xf32>
    %177 = vector.shape_cast %176 : vector<1x1x128xf32> to vector<1x128xf32>
    %178 = vector.shape_cast %175 : vector<1x128xf32> to vector<1x1x128xf32>
    tpu.vector_store %arg10[%c0_166, %c0_167, %c0_168], %178 {strides = array<i32>} : memref<1x1x128xf32, #tpu.memory_space<vmem>>, vector<1x1x128xf32>,
    return
  }
  func.func @transform_0(%arg0: i32) -> (i32, i32, i32) {
    %c0_i32 = arith.constant 0 : i32
    %c0_i32_0 = arith.constant 0 : i32
    %c0_i32_1 = arith.constant 0 : i32
    return %arg0, %c0_i32, %c0_i32_0 : i32, i32, i32
  }
  func.func @transform_1(%arg0: i32) -> (i32, i32, i32) {
    %c0_i32 = arith.constant 0 : i32
    %c0_i32_0 = arith.constant 0 : i32
    %c0_i32_1 = arith.constant 0 : i32
    %c0_i32_2 = arith.constant 0 : i32
    return %c0_i32, %c0_i32_0, %c0_i32_1 : i32, i32, i32
  }
  func.func @transform_2(%arg0: i32) -> (i32, i32) {
    %c0_i32 = arith.constant 0 : i32
    %c0_i32_0 = arith.constant 0 : i32
    %c0_i32_1 = arith.constant 0 : i32
    return %c0_i32, %c0_i32_0 : i32, i32
  }
  func.func @transform_3(%arg0: i32) -> (i32, i32, i32) {
    %c0_i32 = arith.constant 0 : i32
    %c0_i32_0 = arith.constant 0 : i32
    %c0_i32_1 = arith.constant 0 : i32
    %c0_i32_2 = arith.constant 0 : i32
    return %c0_i32, %c0_i32_0, %c0_i32_1 : i32, i32, i32
  }
  func.func @transform_4(%arg0: i32) -> (i32, i32) {
    %c0_i32 = arith.constant 0 : i32
    %c0_i32_0 = arith.constant 0 : i32
    %c0_i32_1 = arith.constant 0 : i32
    return %c0_i32, %c0_i32_0 : i32, i32
  }
  func.func @transform_5(%arg0: i32) -> (i32, i32) {
    %c0_i32 = arith.constant 0 : i32
    %c0_i32_0 = arith.constant 0 : i32
    %c0_i32_1 = arith.constant 0 : i32
    return %c0_i32, %c0_i32_0 : i32, i32
  }
  func.func @transform_6(%arg0: i32) -> (i32, i32) {
    %c0_i32 = arith.constant 0 : i32
    %c0_i32_0 = arith.constant 0 : i32
    %c0_i32_1 = arith.constant 0 : i32
    return %c0_i32, %c0_i32_0 : i32, i32
  }
  func.func @transform_7(%arg0: i32) -> (i32, i32) {
    %c0_i32 = arith.constant 0 : i32
    %c0_i32_0 = arith.constant 0 : i32
    %c0_i32_1 = arith.constant 0 : i32
    return %c0_i32, %c0_i32_0 : i32, i32
  }
  func.func @transform_8(%arg0: i32) -> (i32, i32) {
    %c0_i32 = arith.constant 0 : i32
    %c0_i32_0 = arith.constant 0 : i32
    %c0_i32_1 = arith.constant 0 : i32
    return %c0_i32, %c0_i32_0 : i32, i32
  }
  func.func @transform_9(%arg0: i32) -> (i32, i32, i32) {
    %c0_i32 = arith.constant 0 : i32
    %c0_i32_0 = arith.constant 0 : i32
    %c0_i32_1 = arith.constant 0 : i32
    return %arg0, %c0_i32, %c0_i32_0 : i32, i32, i32
  }
}

</mosaic_0001>

<llo_original>
// kernel: qnet_forward.1
$region0: #{qnet_forward.1}
  #allocation0 [shape = 'u32[]', space=smem, size = 0x4, offset = 0x4, fixed_abs, tag = 'smem constant byte address 0x4 - core index']
  #allocation1 [shape = 'u32[144,128]{1,0:T(1,128)}', space=vmem, size = 0x12000, scoped, tag = 'internal scratch']
  #allocation2 [shape = 'f32[68,128]{1,0:T(8,128)}', space=vmem, size = 0x9000, scoped, tag = 'scratch operand']
  #allocation3 [shape = 'f32[46,128]{1,0:T(8,128)}', space=vmem, size = 0x6000, scoped, tag = 'scratch operand']
  %s0 = inlined_call_operand.vmem [shape: f32[2,90,2], index: 0, kind: input, shape index: {}]
  %s1 = inlined_call_operand.vmem [shape: bf16[9,2,128], index: 1, kind: input, shape index: {}]
  %s2 = inlined_call_operand.vmem [shape: f32[1,128], index: 2, kind: input, shape index: {}]
  %s3 = inlined_call_operand.hbm [shape: bf16[9,128,128], index: 3, kind: input, shape index: {}]
  %s4 = inlined_call_operand.vmem [shape: f32[1,128], index: 4, kind: input, shape index: {}]
  %s5 = inlined_call_operand.hbm [shape: bf16[3840,128], index: 5, kind: input, shape index: {}]
  %s6 = inlined_call_operand.vmem [shape: f32[1,128], index: 6, kind: input, shape index: {}]
  %s7 = inlined_call_operand.vmem [shape: bf16[128,128], index: 7, kind: input, shape index: {}]
  %s8 = inlined_call_operand.vmem [shape: f32[1,128], index: 8, kind: input, shape index: {}]
  %s9 = inlined_call_operand.hbm [shape: f32[2,1,128], index: 9, kind: output, shape index: {}]
  %s10 = sld [smem:[#allocation0]]
  $region77: #{qnet_forward.1} parent=0
    _
  %s12 = ssub.s32 1, %s10
  %s13 = scalar_select 0, %s12, %s10
  $region1: #{qnet_forward.1} parent=0
    #allocation4 [shape = 'u8[294912]{0}', space=vmem, size = 0x48000, scoped, tag = 'input window, operand 3, single buffered']
    #allocation5 [shape = 's32[2]{0}', space=sflag, size = 0x8, scoped, tag = 'scoped memory for qnet_forward.1']
    #allocation6 [shape = 's32[2]{0}', space=sflag, size = 0x8, scoped, tag = 'scoped memory for qnet_forward.1']
    #allocation7 [shape = 'u8[983040]{0}', space=vmem, size = 0xf0000, scoped, tag = 'input window, operand 5, single buffered']
    #allocation8 [shape = 's32[1]{0}', space=sflag, size = 0x4, scoped, tag = 'scoped memory for qnet_forward.1']
    #allocation9 [shape = 'u8[1024]{0}', space=vmem, size = 0x400, scoped, tag = 'output window, operand 0']
    %14 = vsyncpa [#allocation5], 0
    %15 = vsyncpa [#allocation8], 0
    %16 = vsyncpa [#allocation6], 0
    %s17 = scalar_lea.sflag [#allocation6], 1
    %18 = vsyncpa %s17, 0
    loop: start=0, step=1, limit=4
    $region2: #{qnet_forward.1} parent=1 // loop_pre_header
      _
    $region3: #{qnet_forward.1} parent=1 // loop_header
      %s20 = sphi 0, %s24
      %p21 = scmp.ge.s32.totalorder %s20, 4
      %s30 = sphi 0, %s32
      %s33 = sphi 0, %s30
      %s34 = sphi 0, %s33
      %s50 = sphi 0, %s34
      %s54 = sphi 0, %s54
      %s56 = sphi 0, %s54
      %s57 = sphi 0, %s56
      %s71 = sphi 0, %s57
      %s75 = sphi 0, %s75
      %s77 = sphi 0, %s75
      %s78 = sphi 0, %s77
      %s92 = sphi 0, %s78
      %s96 = sphi 0, %s96
      %s98 = sphi 0, %s96
      %s99 = sphi 0, %s98
      %s113 = sphi 0, %s99
      %s117 = sphi 0, %s117
      %s119 = sphi 0, %s117
      %s120 = sphi 0, %s119
      %s134 = sphi 0, %s120
      %s138 = sphi 0, %s138
      %s140 = sphi 0, %s138
      %s141 = sphi 0, %s140
      %s155 = sphi 0, %s141
      %s159 = sphi 0, %s159
      %s161 = sphi 0, %s159
      %s162 = sphi 0, %s161
      %s176 = sphi 0, %s162
      %s180 = sphi 0, %s180
      %s182 = sphi 0, %s180
      %s183 = sphi 0, %s182
      %s197 = sphi 0, %s183
      %s201 = sphi 0, %s201
      %s203 = sphi 0, %s201
      %s204 = sphi 0, %s203
      %s218 = sphi 0, %s204
      %s224 = sphi 0, %s226
      %s227 = sphi 0, %s224
      %s228 = sphi 0, %s227
      %s244 = sphi 0, %s228
    $region4: #{qnet_forward.1} parent=1 // loop_header_branch
      %23 = sbr.rel (%p21) target = $region8
    $region5: #{qnet_forward.1} parent=1 // loop_body
      %s25 = ssub.s32 %s20, 1
      %s26 = ssub.s32 %s20, 2
      %s27 = sadd.s32 %s20, 1
      %s28 = ssub.s32 %s20, %s27
      %p29 = scmp.eq.s32.totalorder %s28, 0
      %s31 = sadd.s32 %s30, 1
      %s32 = scalar_select %p29, %s30, %s31
      %p35 = pneg %p29
      %p36 = scmp.eq.s32.totalorder %s20, 1
      %p37 = por %p35, %p36
      %p38 = scmp.ne.s32.totalorder %s30, %s33
      %p39 = scmp.eq.s32.totalorder %s20, 0
      %p40 = por %p38, %p39
      %p41 = scmp.ne.s32.totalorder %s30, %s33
      %p42 = scmp.eq.s32.totalorder %s25, 1
      %p43 = por %p41, %p42
      %p44 = scmp.ne.s32.totalorder %s33, %s34
      %p45 = scmp.eq.s32.totalorder %s25, 0
      %p46 = por %p44, %p45
      %p47 = scmp.ne.s32.totalorder %s33, %s34
      %p48 = scmp.eq.s32.totalorder %s26, 1
      %p49 = por %p47, %p48
      %p51 = scmp.ne.s32.totalorder %s34, %s50
      %p52 = scmp.eq.s32.totalorder %s26, 0
      %p53 = por %p51, %p52
      %s55 = sadd.s32 %s54, 1
      %p58 = scmp.eq.s32.totalorder %s20, 1
      %p59 = scmp.ne.s32.totalorder %s54, %s56
      %p60 = scmp.eq.s32.totalorder %s20, 0
      %p61 = por %p59, %p60
      %p62 = scmp.ne.s32.totalorder %s54, %s56
      %p63 = scmp.eq.s32.totalorder %s25, 1
      %p64 = por %p62, %p63
      %p65 = scmp.ne.s32.totalorder %s56, %s57
      %p66 = scmp.eq.s32.totalorder %s25, 0
      %p67 = por %p65, %p66
      %p68 = scmp.ne.s32.totalorder %s56, %s57
      %p69 = scmp.eq.s32.totalorder %s26, 1
      %p70 = por %p68, %p69
      %p72 = scmp.ne.s32.totalorder %s57, %s71
      %p73 = scmp.eq.s32.totalorder %s26, 0
      %p74 = por %p72, %p73
      %s76 = sadd.s32 %s75, 1
      %p79 = scmp.eq.s32.totalorder %s20, 1
      %p80 = scmp.ne.s32.totalorder %s75, %s77
      %p81 = scmp.eq.s32.totalorder %s20, 0
      %p82 = por %p80, %p81
      %p83 = scmp.ne.s32.totalorder %s75, %s77
      %p84 = scmp.eq.s32.totalorder %s25, 1
      %p85 = por %p83, %p84
      %p86 = scmp.ne.s32.totalorder %s77, %s78
      %p87 = scmp.eq.s32.totalorder %s25, 0
      %p88 = por %p86, %p87
      %p89 = scmp.ne.s32.totalorder %s77, %s78
      %p90 = scmp.eq.s32.totalorder %s26, 1
      %p91 = por %p89, %p90
      %p93 = scmp.ne.s32.totalorder %s78, %s92
      %p94 = scmp.eq.s32.totalorder %s26, 0
      %p95 = por %p93, %p94
      %s97 = sadd.s32 %s96, 1
      %p100 = scmp.eq.s32.totalorder %s20, 1
      %p101 = scmp.ne.s32.totalorder %s96, %s98
      %p102 = scmp.eq.s32.totalorder %s20, 0
      %p103 = por %p101, %p102
      %p104 = scmp.ne.s32.totalorder %s96, %s98
      %p105 = scmp.eq.s32.totalorder %s25, 1
      %p106 = por %p104, %p105
      %p107 = scmp.ne.s32.totalorder %s98, %s99
      %p108 = scmp.eq.s32.totalorder %s25, 0
      %p109 = por %p107, %p108
      %p110 = scmp.ne.s32.totalorder %s98, %s99
      %p111 = scmp.eq.s32.totalorder %s26, 1
      %p112 = por %p110, %p111
      %p114 = scmp.ne.s32.totalorder %s99, %s113
      %p115 = scmp.eq.s32.totalorder %s26, 0
      %p116 = por %p114, %p115
      %s118 = sadd.s32 %s117, 1
      %p121 = scmp.eq.s32.totalorder %s20, 1
      %p122 = scmp.ne.s32.totalorder %s117, %s119
      %p123 = scmp.eq.s32.totalorder %s20, 0
      %p124 = por %p122, %p123
      %p125 = scmp.ne.s32.totalorder %s117, %s119
      %p126 = scmp.eq.s32.totalorder %s25, 1
      %p127 = por %p125, %p126
      %p128 = scmp.ne.s32.totalorder %s119, %s120
      %p129 = scmp.eq.s32.totalorder %s25, 0
      %p130 = por %p128, %p129
      %p131 = scmp.ne.s32.totalorder %s119, %s120
      %p132 = scmp.eq.s32.totalorder %s26, 1
      %p133 = por %p131, %p132
      %p135 = scmp.ne.s32.totalorder %s120, %s134
      %p136 = scmp.eq.s32.totalorder %s26, 0
      %p137 = por %p135, %p136
      %s139 = sadd.s32 %s138, 1
      %p142 = scmp.eq.s32.totalorder %s20, 1
      %p143 = scmp.ne.s32.totalorder %s138, %s140
      %p144 = scmp.eq.s32.totalorder %s20, 0
      %p145 = por %p143, %p144
      %p146 = scmp.ne.s32.totalorder %s138, %s140
      %p147 = scmp.eq.s32.totalorder %s25, 1
      %p148 = por %p146, %p147
      %p149 = scmp.ne.s32.totalorder %s140, %s141
      %p150 = scmp.eq.s32.totalorder %s25, 0
      %p151 = por %p149, %p150
      %p152 = scmp.ne.s32.totalorder %s140, %s141
      %p153 = scmp.eq.s32.totalorder %s26, 1
      %p154 = por %p152, %p153
      %p156 = scmp.ne.s32.totalorder %s141, %s155
      %p157 = scmp.eq.s32.totalorder %s26, 0
      %p158 = por %p156, %p157
      %s160 = sadd.s32 %s159, 1
      %p163 = scmp.eq.s32.totalorder %s20, 1
      %p164 = scmp.ne.s32.totalorder %s159, %s161
      %p165 = scmp.eq.s32.totalorder %s20, 0
      %p166 = por %p164, %p165
      %p167 = scmp.ne.s32.totalorder %s159, %s161
      %p168 = scmp.eq.s32.totalorder %s25, 1
      %p169 = por %p167, %p168
      %p170 = scmp.ne.s32.totalorder %s161, %s162
      %p171 = scmp.eq.s32.totalorder %s25, 0
      %p172 = por %p170, %p171
      %p173 = scmp.ne.s32.totalorder %s161, %s162
      %p174 = scmp.eq.s32.totalorder %s26, 1
      %p175 = por %p173, %p174
      %p177 = scmp.ne.s32.totalorder %s162, %s176
      %p178 = scmp.eq.s32.totalorder %s26, 0
      %p179 = por %p177, %p178
      %s181 = sadd.s32 %s180, 1
      %p184 = scmp.eq.s32.totalorder %s20, 1
      %p185 = scmp.ne.s32.totalorder %s180, %s182
      %p186 = scmp.eq.s32.totalorder %s20, 0
      %p187 = por %p185, %p186
      %p188 = scmp.ne.s32.totalorder %s180, %s182
      %p189 = scmp.eq.s32.totalorder %s25, 1
      %p190 = por %p188, %p189
      %p191 = scmp.ne.s32.totalorder %s182, %s183
      %p192 = scmp.eq.s32.totalorder %s25, 0
      %p193 = por %p191, %p192
      %p194 = scmp.ne.s32.totalorder %s182, %s183
      %p195 = scmp.eq.s32.totalorder %s26, 1
      %p196 = por %p194, %p195
      %p198 = scmp.ne.s32.totalorder %s183, %s197
      %p199 = scmp.eq.s32.totalorder %s26, 0
      %p200 = por %p198, %p199
      %s202 = sadd.s32 %s201, 1
      %p205 = scmp.eq.s32.totalorder %s20, 1
      %p206 = scmp.ne.s32.totalorder %s201, %s203
      %p207 = scmp.eq.s32.totalorder %s20, 0
      %p208 = por %p206, %p207
      %p209 = scmp.ne.s32.totalorder %s201, %s203
      %p210 = scmp.eq.s32.totalorder %s25, 1
      %p211 = por %p209, %p210
      %p212 = scmp.ne.s32.totalorder %s203, %s204
      %p213 = scmp.eq.s32.totalorder %s25, 0
      %p214 = por %p212, %p213
      %p215 = scmp.ne.s32.totalorder %s203, %s204
      %p216 = scmp.eq.s32.totalorder %s26, 1
      %p217 = por %p215, %p216
      %p219 = scmp.ne.s32.totalorder %s204, %s218
      %p220 = scmp.eq.s32.totalorder %s26, 0
      %p221 = por %p219, %p220
      %s222 = ssub.s32 %s20, %s27
      %p223 = scmp.eq.s32.totalorder %s222, 0
      %s225 = sadd.s32 %s224, 1
      %s226 = scalar_select %p223, %s224, %s225
      %p229 = pneg %p223
      %p230 = scmp.eq.s32.totalorder %s20, 1
      %p231 = por %p229, %p230
      %p232 = scmp.ne.s32.totalorder %s224, %s227
      %p233 = scmp.eq.s32.totalorder %s20, 0
      %p234 = por %p232, %p233
      %p235 = scmp.ne.s32.totalorder %s224, %s227
      %p236 = scmp.eq.s32.totalorder %s25, 1
      %p237 = por %p235, %p236
      %p238 = scmp.ne.s32.totalorder %s227, %s228
      %p239 = scmp.eq.s32.totalorder %s25, 0
      %p240 = por %p238, %p239
      %p241 = scmp.ne.s32.totalorder %s227, %s228
      %p242 = scmp.eq.s32.totalorder %s26, 1
      %p243 = por %p241, %p242
      %p245 = scmp.ne.s32.totalorder %s228, %s244
      %p246 = scmp.eq.s32.totalorder %s26, 0
      %p247 = por %p245, %p246
      %p248 = scmp.le.s32.totalorder 1, %s20
      %p249 = scmp.lt.s32.totalorder %s20, 3
      %p250 = pnand %p248, %p249
      %p251 = pneg %p250
      // Predicated region
      $region9: #{qnet_forward.1} parent=5 // pred_check
        _
      $region10: #{qnet_forward.1} parent=5 // pred_check_branch
        %253 = sbr.rel (%p250) target = $region12
      $region11: #{qnet_forward.1} parent=5 // pred_region
        %s254 = ssub.s32 %s20, 1
        // Predicated region
        $region13: #{qnet_forward.1} parent=11 // pred_check
          %p255 = pneg %p67
        $region14: #{qnet_forward.1} parent=11 // pred_check_branch
          %257 = sbr.rel (%p255) target = $region16
        $region15: #{qnet_forward.1} parent=11 // pred_region
          _
        $region16: #{qnet_forward.1} parent=11 // pred_fallthru
          _
        // Predicated region
        $region17: #{qnet_forward.1} parent=11 // pred_check
          %p258 = pneg %p88
        $region18: #{qnet_forward.1} parent=11 // pred_check_branch
          %260 = sbr.rel (%p258) target = $region20
        $region19: #{qnet_forward.1} parent=11 // pred_region
          _
        $region20: #{qnet_forward.1} parent=11 // pred_fallthru
          _
        // Predicated region
        $region21: #{qnet_forward.1} parent=11 // pred_check
          %p261 = pneg %p109
        $region22: #{qnet_forward.1} parent=11 // pred_check_branch
          %263 = sbr.rel (%p261) target = $region24
        $region23: #{qnet_forward.1} parent=11 // pred_region
          %s265 = ssub.s32 9216, 9216
          %266 = vsyncadd [#allocation5], %s265
          %s267 = sshll.u32 [#allocation4], 4
          %s268 = int_to_ptr.vmem [resolvable:$true] %s267
          %273 = dma.hbm_to_vmem [thread:$0]  %s3, 9216, %s268, [#allocation5], 64, 64, 4
        $region24: #{qnet_forward.1} parent=11 // pred_fallthru
          _
        // Predicated region
        $region25: #{qnet_forward.1} parent=11 // pred_check
          %p274 = pneg %p130
        $region26: #{qnet_forward.1} parent=11 // pred_check_branch
          %276 = sbr.rel (%p274) target = $region28
        $region27: #{qnet_forward.1} parent=11 // pred_region
          _
        $region28: #{qnet_forward.1} parent=11 // pred_fallthru
          _
        // Predicated region
        $region29: #{qnet_forward.1} parent=11 // pred_check
          %p277 = pneg %p151
        $region30: #{qnet_forward.1} parent=11 // pred_check_branch
          %279 = sbr.rel (%p277) target = $region32
        $region31: #{qnet_forward.1} parent=11 // pred_region
          %s281 = ssub.s32 30720, 30720
          %282 = vsyncadd [#allocation8], %s281
          %s283 = sshll.u32 [#allocation7], 4
          %s284 = int_to_ptr.vmem [resolvable:$true] %s283
          %289 = dma.hbm_to_vmem [thread:$0]  %s5, 30720, %s284, [#allocation8], 64, 64, 4
        $region32: #{qnet_forward.1} parent=11 // pred_fallthru
          _
        // Predicated region
        $region33: #{qnet_forward.1} parent=11 // pred_check
          %p290 = pneg %p172
        $region34: #{qnet_forward.1} parent=11 // pred_check_branch
          %292 = sbr.rel (%p290) target = $region36
        $region35: #{qnet_forward.1} parent=11 // pred_region
          _
        $region36: #{qnet_forward.1} parent=11 // pred_fallthru
          _
        // Predicated region
        $region37: #{qnet_forward.1} parent=11 // pred_check
          %p293 = pneg %p193
        $region38: #{qnet_forward.1} parent=11 // pred_check_branch
          %295 = sbr.rel (%p293) target = $region40
        $region39: #{qnet_forward.1} parent=11 // pred_region
          _
        $region40: #{qnet_forward.1} parent=11 // pred_fallthru
          _
        // Predicated region
        $region41: #{qnet_forward.1} parent=11 // pred_check
          %p296 = pneg %p214
        $region42: #{qnet_forward.1} parent=11 // pred_check_branch
          %298 = sbr.rel (%p296) target = $region44
        $region43: #{qnet_forward.1} parent=11 // pred_region
          _
        $region44: #{qnet_forward.1} parent=11 // pred_fallthru
          _
      $region12: #{qnet_forward.1} parent=5 // pred_fallthru
        _
      %p299 = scmp.lt.s32.totalorder %s20, 2
      // Predicated region
      $region45: #{qnet_forward.1} parent=5 // pred_check
        %p300 = pneg %p299
      $region46: #{qnet_forward.1} parent=5 // pred_check_branch
        %302 = sbr.rel (%p300) target = $region48
      $region47: #{qnet_forward.1} parent=5 // pred_region
        // Predicated region
        $region49: #{qnet_forward.1} parent=47 // pred_check
          %p303 = pneg %p40
        $region50: #{qnet_forward.1} parent=47 // pred_check_branch
          %305 = sbr.rel (%p303) target = $region52
        $region51: #{qnet_forward.1} parent=47 // pred_region
          %p306 = scmp.lt.s32.totalorder %s20, 1
          %s307 = scalar_select %p306, %s20, 1
          %s308 = smul.addr %s307, 12
          %s309 = smul.addr %s308, 8
          %s310 = scalar_lea.vmem %s0, %s309
        $region52: #{qnet_forward.1} parent=47 // pred_fallthru
          _
      $region48: #{qnet_forward.1} parent=5 // pred_fallthru
        _
      %p311 = scmp.le.s32.totalorder 1, %s20
      %p312 = scmp.lt.s32.totalorder %s20, 3
      %p313 = pnand %p311, %p312
      %p314 = pneg %p313
      // Predicated region
      $region53: #{qnet_forward.1} parent=5 // pred_check
        _
      $region54: #{qnet_forward.1} parent=5 // pred_check_branch
        %316 = sbr.rel (%p313) target = $region56
      $region55: #{qnet_forward.1} parent=5 // pred_region
        %s317 = ssub.s32 %s20, 1
        // Predicated region
        $region57: #{qnet_forward.1} parent=55 // pred_check
          %p318 = pneg %p109
        $region58: #{qnet_forward.1} parent=55 // pred_check_branch
          %320 = sbr.rel (%p318) target = $region60
        $region59: #{qnet_forward.1} parent=55 // pred_region
          %321 = dma.done [#allocation5], 9216
        $region60: #{qnet_forward.1} parent=55 // pred_fallthru
          _
        // Predicated region
        $region61: #{qnet_forward.1} parent=55 // pred_check
          %p322 = pneg %p151
        $region62: #{qnet_forward.1} parent=55 // pred_check_branch
          %324 = sbr.rel (%p322) target = $region64
        $region63: #{qnet_forward.1} parent=55 // pred_region
          %325 = dma.done [#allocation8], 30720
        $region64: #{qnet_forward.1} parent=55 // pred_fallthru
          _
        %p326 = scmp.lt.s32.totalorder %s25, 1
        %s327 = scalar_select %p326, %s25, 1
        %s328 = smul.addr %s327, 12
        %s329 = smul.addr %s328, 8
        %s330 = scalar_lea.vmem %s0, %s329
        %p331 = pneg %p46
        %p332 = pneg %p43
        %p333 = pneg %p67
        %p334 = pneg %p64
        %p335 = pneg %p88
        %p336 = pneg %p85
        %p337 = pneg %p109
        %p338 = pneg %p106
        %p339 = pneg %p130
        %p340 = pneg %p127
        %p341 = pneg %p151
        %p342 = pneg %p148
        %p343 = pneg %p172
        %p344 = pneg %p169
        %p345 = pneg %p193
        %p346 = pneg %p190
        %p347 = pneg %p214
        %p348 = pneg %p211
        %p349 = pneg %p240
        %p350 = pneg %p237
        %s351 = sand.u32 %s227, 1
        %s352 = scalar_lea.sflag [#allocation6], %s351
        %s353 = sand.u32 %s227, 1
        %s354 = scalar_lea.vmem [#allocation9], %s353
        %p355 = scmp.lt.s32.totalorder %s25, 1
        %s356 = scalar_select %p355, %s25, 1
        %s357 = smul.addr %s356, 12
        %s358 = smul.addr %s357, 8
        %s359 = scalar_lea.vmem %s0, %s358
        %v361 = vld [vmem:[%s359] sm:$0xff]
        %v362 = vld [vmem:[%s359 + $0x8] sm:$0xff]
        %v363 = vld [vmem:[%s359 + $0x10] sm:$0xff]
        %v364 = vld [vmem:[%s359 + $0x18] sm:$0xff]
        %v365 = vld [vmem:[%s359 + $0x20] sm:$0xff]
        %v366 = vld [vmem:[%s359 + $0x28] sm:$0xff]
        %v367 = vld [vmem:[%s359 + $0x30] sm:$0xff]
        %v368 = vld [vmem:[%s359 + $0x38] sm:$0xff]
        %v369 = vld [vmem:[%s359 + $0x40] sm:$0xf]
        %v370 = vpack.c.bf16 %v362, %v361
        %v371 = vpack.c.bf16 %v364, %v363
        %v372 = vpack.c.bf16 %v366, %v365
        %v373 = vpack.c.bf16 %v368, %v367
        %v374 = vpack.c.bf16 %v369, %v369
        %v375 = vld [vmem:[%s1] sm:$0x1]
        %v376 = vld [vmem:[%s359 + $0x1] sm:$0xff]
        %v377 = vld [vmem:[%s359 + $0x9] sm:$0xff]
        %v378 = vld [vmem:[%s359 + $0x11] sm:$0xff]
        %v379 = vld [vmem:[%s359 + $0x19] sm:$0xff]
        %v380 = vld [vmem:[%s359 + $0x21] sm:$0xff]
        %v381 = vld [vmem:[%s359 + $0x29] sm:$0xff]
        %v382 = vld [vmem:[%s359 + $0x31] sm:$0xff]
        %v383 = vld [vmem:[%s359 + $0x39] sm:$0xff]
        %v384 = vld [vmem:[%s359 + $0x41] sm:$0xf]
        %v385 = vpack.c.bf16 %v377, %v376
        %v386 = vpack.c.bf16 %v379, %v378
        %v387 = vpack.c.bf16 %v381, %v380
        %v388 = vpack.c.bf16 %v383, %v382
        %v389 = vpack.c.bf16 %v384, %v384
        %s390 = scalar_lea.vmem %s1, 1
        %v391 = vld [vmem:[%s390] sm:$0x1]
        %vm392 = vcmask 15360
        %v394 = vsel %vm392, %v385, 0
        %v397 = vsel %vm392, %v386, 0
        %v400 = vsel %vm392, %v387, 0
        %v403 = vsel %vm392, %v388, 0
        %v406 = vsel %vm392, %v389, 0
        %vm408 = vcmask 1040384
        %v410 = vsel %vm408, %v391, 0
        %412 = vmatprep.subr.bf16.mxu0 0
        %413 = vmatpush1.bf16.msra.mxu0 0
        %414 = vmatprep.subr.bf16.mxu0 0
        %415 = vmatpush1.bf16.msra.mxu0 0
        %416 = vmatprep.subr.bf16.mxu0 0
        %417 = vmatpush1.bf16.msra.mxu0 0
        %418 = vmatprep.subr.bf16.mxu0 0
        %419 = vmatpush1.bf16.msra.mxu0 0
        %420 = vmatprep.subr.bf16.mxu0 0
        %421 = vmatpush1.bf16.msra.mxu0 0
        %422 = vmatprep.subr.bf16.mxu0 0
        %423 = vmatpush1.bf16.msra.mxu0 0
        %424 = vmatprep.subr.bf16.mxu0 0
        %425 = vmatpush1.bf16.msra.mxu0 0
        %426 = vmatprep.subr.bf16.mxu0 0
        %427 = vmatpush1.bf16.msra.mxu0 %v410
        %428 = vmatprep.subr.bf16.mxu0 0
        %429 = vmatpush2.bf16.msra.mxu0 0
        %430 = vmatprep.subr.bf16.mxu0 0
        %431 = vmatpush2.bf16.msra.mxu0 0
        %432 = vmatprep.subr.bf16.mxu0 0
        %433 = vmatpush2.bf16.msra.mxu0 0
        %434 = vmatprep.subr.bf16.mxu0 0
        %435 = vmatpush2.bf16.msra.mxu0 0
        %436 = vmatprep.subr.bf16.mxu0 0
        %437 = vmatpush2.bf16.msra.mxu0 0
        %438 = vmatprep.subr.bf16.mxu0 0
        %439 = vmatpush2.bf16.msra.mxu0 0
        %440 = vmatprep.subr.bf16.mxu0 0
        %441 = vmatpush2.bf16.msra.mxu0 0
        %442 = vmatprep.subr.bf16.mxu0 0
        %443 = vmatpush2.bf16.msra.mxu0 0
        %444 = vmatprep.mubr.bf16.mxu0 0
        %445 = vmatmul.mubr.bf16.gmra.mxu0 %v394
        %v446 = vpop.f32.mrf.mxu0
        %v447 = vadd.f32 0.0, %v446
        %v448 = vpop.f32.mrf.mxu0
        %v449 = vpop.f32.mrf.mxu0
        %v450 = vadd.f32 0.0, %v449
        %v451 = vpop.f32.mrf.mxu0
        %452 = vmatprep.mubr.bf16.mxu0 0
        %453 = vmatmul.mubr.bf16.gmra.mxu0 %v397
        %v454 = vpop.f32.mrf.mxu0
        %v455 = vadd.f32 0.0, %v454
        %v456 = vpop.f32.mrf.mxu0
        %v457 = vpop.f32.mrf.mxu0
        %v458 = vadd.f32 0.0, %v457
        %v459 = vpop.f32.mrf.mxu0
        %460 = vmatprep.mubr.bf16.mxu0 0
        %461 = vmatmul.mubr.bf16.gmra.mxu0 %v400
        %v462 = vpop.f32.mrf.mxu0
        %v463 = vadd.f32 0.0, %v462
        %v464 = vpop.f32.mrf.mxu0
        %v465 = vpop.f32.mrf.mxu0
        %v466 = vadd.f32 0.0, %v465
        %v467 = vpop.f32.mrf.mxu0
        %468 = vmatprep.mubr.bf16.mxu0 0
        %469 = vmatmul.mubr.bf16.gmra.mxu0 %v403
        %v470 = vpop.f32.mrf.mxu0
        %v471 = vadd.f32 0.0, %v470
        %v472 = vpop.f32.mrf.mxu0
        %v473 = vpop.f32.mrf.mxu0
        %v474 = vadd.f32 0.0, %v473
        %v475 = vpop.f32.mrf.mxu0
        %476 = vmatprep.mubr.bf16.mxu0 0
        %477 = vmatmul.mubr.bf16.gmra.mxu0 %v406
        %v478 = vpop.f32.mrf.mxu0
        %v479 = vadd.f32 0.0, %v478
        %v480 = vpop.f32.mrf.mxu0
        %v481 = vpop.f32.mrf.mxu0
        %v482 = vpop.f32.mrf.mxu0
        %483 = vdwg.mxu0
        %v485 = vsel %vm392, %v370, 0
        %v488 = vsel %vm392, %v371, 0
        %v491 = vsel %vm392, %v372, 0
        %v494 = vsel %vm392, %v373, 0
        %v497 = vsel %vm392, %v374, 0
        %v500 = vsel %vm408, %v375, 0
        %502 = vmatprep.subr.bf16.mxu0 0
        %503 = vmatpush1.bf16.msra.mxu0 0
        %504 = vmatprep.subr.bf16.mxu0 0
        %505 = vmatpush1.bf16.msra.mxu0 0
        %506 = vmatprep.subr.bf16.mxu0 0
        %507 = vmatpush1.bf16.msra.mxu0 0
        %508 = vmatprep.subr.bf16.mxu0 0
        %509 = vmatpush1.bf16.msra.mxu0 0
        %510 = vmatprep.subr.bf16.mxu0 0
        %511 = vmatpush1.bf16.msra.mxu0 0
        %512 = vmatprep.subr.bf16.mxu0 0
        %513 = vmatpush1.bf16.msra.mxu0 0
        %514 = vmatprep.subr.bf16.mxu0 0
        %515 = vmatpush1.bf16.msra.mxu0 0
        %516 = vmatprep.subr.bf16.mxu0 0
        %517 = vmatpush1.bf16.msra.mxu0 %v500
        %518 = vmatprep.subr.bf16.mxu0 0
        %519 = vmatpush2.bf16.msra.mxu0 0
        %520 = vmatprep.subr.bf16.mxu0 0
        %521 = vmatpush2.bf16.msra.mxu0 0
        %522 = vmatprep.subr.bf16.mxu0 0
        %523 = vmatpush2.bf16.msra.mxu0 0
        %524 = vmatprep.subr.bf16.mxu0 0
        %525 = vmatpush2.bf16.msra.mxu0 0
        %526 = vmatprep.subr.bf16.mxu0 0
        %527 = vmatpush2.bf16.msra.mxu0 0
        %528 = vmatprep.subr.bf16.mxu0 0
        %529 = vmatpush2.bf16.msra.mxu0 0
        %530 = vmatprep.subr.bf16.mxu0 0
        %531 = vmatpush2.bf16.msra.mxu0 0
        %532 = vmatprep.subr.bf16.mxu0 0
        %533 = vmatpush2.bf16.msra.mxu0 0
        %534 = vmatprep.mubr.bf16.mxu0 0
        %535 = vmatmul.mubr.bf16.gmra.mxu0 %v485
        %v536 = vpop.f32.mrf.mxu0
        %v537 = vadd.f32 %v447, %v536
        %v538 = vpop.f32.mrf.mxu0
        %v539 = vpop.f32.mrf.mxu0
        %v540 = vadd.f32 %v450, %v539
        %v541 = vpop.f32.mrf.mxu0
        %542 = vmatprep.mubr.bf16.mxu0 0
        %543 = vmatmul.mubr.bf16.gmra.mxu0 %v488
        %v544 = vpop.f32.mrf.mxu0
        %v545 = vadd.f32 %v455, %v544
        %v546 = vpop.f32.mrf.mxu0
        %v547 = vpop.f32.mrf.mxu0
        %v548 = vadd.f32 %v458, %v547
        %v549 = vpop.f32.mrf.mxu0
        %550 = vmatprep.mubr.bf16.mxu0 0
        %551 = vmatmul.mubr.bf16.gmra.mxu0 %v491
        %v552 = vpop.f32.mrf.mxu0
        %v553 = vadd.f32 %v463, %v552
        %v554 = vpop.f32.mrf.mxu0
        %v555 = vpop.f32.mrf.mxu0
        %v556 = vadd.f32 %v466, %v555
        %v557 = vpop.f32.mrf.mxu0
        %558 = vmatprep.mubr.bf16.mxu0 0
        %559 = vmatmul.mubr.bf16.gmra.mxu0 %v494
        %v560 = vpop.f32.mrf.mxu0
        %v561 = vadd.f32 %v471, %v560
        %v562 = vpop.f32.mrf.mxu0
        %v563 = vpop.f32.mrf.mxu0
        %v564 = vadd.f32 %v474, %v563
        %v565 = vpop.f32.mrf.mxu0
        %566 = vmatprep.mubr.bf16.mxu0 0
        %567 = vmatmul.mubr.bf16.gmra.mxu0 %v497
        %v568 = vpop.f32.mrf.mxu0
        %v569 = vadd.f32 %v479, %v568
        %v570 = vpop.f32.mrf.mxu0
        %v571 = vpop.f32.mrf.mxu0
        %v572 = vpop.f32.mrf.mxu0
        %573 = vdwg.mxu0
        %v574 = vld [vmem:[%s359 + $0x2] sm:$0xff]
        %v575 = vld [vmem:[%s359 + $0xa] sm:$0xff]
        %v576 = vld [vmem:[%s359 + $0x12] sm:$0xff]
        %v577 = vld [vmem:[%s359 + $0x1a] sm:$0xff]
        %v578 = vld [vmem:[%s359 + $0x22] sm:$0xff]
        %v579 = vld [vmem:[%s359 + $0x2a] sm:$0xff]
        %v580 = vld [vmem:[%s359 + $0x32] sm:$0xff]
        %v581 = vld [vmem:[%s359 + $0x3a] sm:$0xff]
        %v582 = vld [vmem:[%s359 + $0x42] sm:$0xf]
        %v583 = vpack.c.bf16 %v575, %v574
        %v584 = vpack.c.bf16 %v577, %v576
        %v585 = vpack.c.bf16 %v579, %v578
        %v586 = vpack.c.bf16 %v581, %v580
        %v587 = vpack.c.bf16 %v582, %v582
        %s588 = scalar_lea.vmem %s1, 2
        %v589 = vld [vmem:[%s588] sm:$0x1]
        %v591 = vsel %vm392, %v583, 0
        %v594 = vsel %vm392, %v584, 0
        %v597 = vsel %vm392, %v585, 0
        %v600 = vsel %vm392, %v586, 0
        %v603 = vsel %vm392, %v587, 0
        %v606 = vsel %vm408, %v589, 0
        %608 = vmatprep.subr.bf16.mxu0 0
        %609 = vmatpush1.bf16.msra.mxu0 0
        %610 = vmatprep.subr.bf16.mxu0 0
        %611 = vmatpush1.bf16.msra.mxu0 0
        %612 = vmatprep.subr.bf16.mxu0 0
        %613 = vmatpush1.bf16.msra.mxu0 0
        %614 = vmatprep.subr.bf16.mxu0 0
        %615 = vmatpush1.bf16.msra.mxu0 0
        %616 = vmatprep.subr.bf16.mxu0 0
        %617 = vmatpush1.bf16.msra.mxu0 0
        %618 = vmatprep.subr.bf16.mxu0 0
        %619 = vmatpush1.bf16.msra.mxu0 0
        %620 = vmatprep.subr.bf16.mxu0 0
        %621 = vmatpush1.bf16.msra.mxu0 0
        %622 = vmatprep.subr.bf16.mxu0 0
        %623 = vmatpush1.bf16.msra.mxu0 %v606
        %624 = vmatprep.subr.bf16.mxu0 0
        %625 = vmatpush2.bf16.msra.mxu0 0
        %626 = vmatprep.subr.bf16.mxu0 0
        %627 = vmatpush2.bf16.msra.mxu0 0
        %628 = vmatprep.subr.bf16.mxu0 0
        %629 = vmatpush2.bf16.msra.mxu0 0
        %630 = vmatprep.subr.bf16.mxu0 0
        %631 = vmatpush2.bf16.msra.mxu0 0
        %632 = vmatprep.subr.bf16.mxu0 0
        %633 = vmatpush2.bf16.msra.mxu0 0
        %634 = vmatprep.subr.bf16.mxu0 0
        %635 = vmatpush2.bf16.msra.mxu0 0
        %636 = vmatprep.subr.bf16.mxu0 0
        %637 = vmatpush2.bf16.msra.mxu0 0
        %638 = vmatprep.subr.bf16.mxu0 0
        %639 = vmatpush2.bf16.msra.mxu0 0
        %640 = vmatprep.mubr.bf16.mxu0 0
        %641 = vmatmul.mubr.bf16.gmra.mxu0 %v591
        %v642 = vpop.f32.mrf.mxu0
        %v643 = vadd.f32 0.0, %v642
        %v644 = vpop.f32.mrf.mxu0
        %v645 = vpop.f32.mrf.mxu0
        %v646 = vadd.f32 0.0, %v645
        %v647 = vpop.f32.mrf.mxu0
        %648 = vmatprep.mubr.bf16.mxu0 0
        %649 = vmatmul.mubr.bf16.gmra.mxu0 %v594
        %v650 = vpop.f32.mrf.mxu0
        %v651 = vadd.f32 0.0, %v650
        %v652 = vpop.f32.mrf.mxu0
        %v653 = vpop.f32.mrf.mxu0
        %v654 = vadd.f32 0.0, %v653
        %v655 = vpop.f32.mrf.mxu0
        %656 = vmatprep.mubr.bf16.mxu0 0
        %657 = vmatmul.mubr.bf16.gmra.mxu0 %v597
        %v658 = vpop.f32.mrf.mxu0
        %v659 = vadd.f32 0.0, %v658
        %v660 = vpop.f32.mrf.mxu0
        %v661 = vpop.f32.mrf.mxu0
        %v662 = vadd.f32 0.0, %v661
        %v663 = vpop.f32.mrf.mxu0
        %664 = vmatprep.mubr.bf16.mxu0 0
        %665 = vmatmul.mubr.bf16.gmra.mxu0 %v600
        %v666 = vpop.f32.mrf.mxu0
        %v667 = vadd.f32 0.0, %v666
        %v668 = vpop.f32.mrf.mxu0
        %v669 = vpop.f32.mrf.mxu0
        %v670 = vadd.f32 0.0, %v669
        %v671 = vpop.f32.mrf.mxu0
        %672 = vmatprep.mubr.bf16.mxu0 0
        %673 = vmatmul.mubr.bf16.gmra.mxu0 %v603
        %v674 = vpop.f32.mrf.mxu0
        %v675 = vadd.f32 0.0, %v674
        %v676 = vpop.f32.mrf.mxu0
        %v677 = vpop.f32.mrf.mxu0
        %v678 = vpop.f32.mrf.mxu0
        %679 = vdwg.mxu0
        %v680 = vadd.f32 %v537, %v643
        %v681 = vadd.f32 %v540, %v646
        %v682 = vadd.f32 %v545, %v651
        %v683 = vadd.f32 %v548, %v654
        %v684 = vadd.f32 %v553, %v659
        %v685 = vadd.f32 %v556, %v662
        %v686 = vadd.f32 %v561, %v667
        %v687 = vadd.f32 %v564, %v670
        %v688 = vadd.f32 %v569, %v675
        %v689 = vld [vmem:[%s359 + $0xa] sm:$0xff]
        %v690 = vld [vmem:[%s359 + $0x12] sm:$0xff]
        %v691 = vld [vmem:[%s359 + $0x1a] sm:$0xff]
        %v692 = vld [vmem:[%s359 + $0x22] sm:$0xff]
        %v693 = vld [vmem:[%s359 + $0x2a] sm:$0xff]
        %v694 = vld [vmem:[%s359 + $0x32] sm:$0xff]
        %v695 = vld [vmem:[%s359 + $0x3a] sm:$0xff]
        %v696 = vld [vmem:[%s359 + $0x42] sm:$0xff]
        %v697 = vld [vmem:[%s359 + $0x4a] sm:$0xf]
        %v698 = vpack.c.bf16 %v690, %v689
        %v699 = vpack.c.bf16 %v692, %v691
        %v700 = vpack.c.bf16 %v694, %v693
        %v701 = vpack.c.bf16 %v696, %v695
        %v702 = vpack.c.bf16 %v697, %v697
        %s703 = scalar_lea.vmem %s1, 3
        %v704 = vld [vmem:[%s703] sm:$0x1]
        %v706 = vsel %vm392, %v698, 0
        %v709 = vsel %vm392, %v699, 0
        %v712 = vsel %vm392, %v700, 0
        %v715 = vsel %vm392, %v701, 0
        %v718 = vsel %vm392, %v702, 0
        %v721 = vsel %vm408, %v704, 0
        %723 = vmatprep.subr.bf16.mxu0 0
        %724 = vmatpush1.bf16.msra.mxu0 0
        %725 = vmatprep.subr.bf16.mxu0 0
        %726 = vmatpush1.bf16.msra.mxu0 0
        %727 = vmatprep.subr.bf16.mxu0 0
        %728 = vmatpush1.bf16.msra.mxu0 0
        %729 = vmatprep.subr.bf16.mxu0 0
        %730 = vmatpush1.bf16.msra.mxu0 0
        %731 = vmatprep.subr.bf16.mxu0 0
        %732 = vmatpush1.bf16.msra.mxu0 0
        %733 = vmatprep.subr.bf16.mxu0 0
        %734 = vmatpush1.bf16.msra.mxu0 0
        %735 = vmatprep.subr.bf16.mxu0 0
        %736 = vmatpush1.bf16.msra.mxu0 0
        %737 = vmatprep.subr.bf16.mxu0 0
        %738 = vmatpush1.bf16.msra.mxu0 %v721
        %739 = vmatprep.subr.bf16.mxu0 0
        %740 = vmatpush2.bf16.msra.mxu0 0
        %741 = vmatprep.subr.bf16.mxu0 0
        %742 = vmatpush2.bf16.msra.mxu0 0
        %743 = vmatprep.subr.bf16.mxu0 0
        %744 = vmatpush2.bf16.msra.mxu0 0
        %745 = vmatprep.subr.bf16.mxu0 0
        %746 = vmatpush2.bf16.msra.mxu0 0
        %747 = vmatprep.subr.bf16.mxu0 0
        %748 = vmatpush2.bf16.msra.mxu0 0
        %749 = vmatprep.subr.bf16.mxu0 0
        %750 = vmatpush2.bf16.msra.mxu0 0
        %751 = vmatprep.subr.bf16.mxu0 0
        %752 = vmatpush2.bf16.msra.mxu0 0
        %753 = vmatprep.subr.bf16.mxu0 0
        %754 = vmatpush2.bf16.msra.mxu0 0
        %755 = vmatprep.mubr.bf16.mxu0 0
        %756 = vmatmul.mubr.bf16.gmra.mxu0 %v706
        %v757 = vpop.f32.mrf.mxu0
        %v758 = vadd.f32 0.0, %v757
        %v759 = vpop.f32.mrf.mxu0
        %v760 = vpop.f32.mrf.mxu0
        %v761 = vadd.f32 0.0, %v760
        %v762 = vpop.f32.mrf.mxu0
        %763 = vmatprep.mubr.bf16.mxu0 0
        %764 = vmatmul.mubr.bf16.gmra.mxu0 %v709
        %v765 = vpop.f32.mrf.mxu0
        %v766 = vadd.f32 0.0, %v765
        %v767 = vpop.f32.mrf.mxu0
        %v768 = vpop.f32.mrf.mxu0
        %v769 = vadd.f32 0.0, %v768
        %v770 = vpop.f32.mrf.mxu0
        %771 = vmatprep.mubr.bf16.mxu0 0
        %772 = vmatmul.mubr.bf16.gmra.mxu0 %v712
        %v773 = vpop.f32.mrf.mxu0
        %v774 = vadd.f32 0.0, %v773
        %v775 = vpop.f32.mrf.mxu0
        %v776 = vpop.f32.mrf.mxu0
        %v777 = vadd.f32 0.0, %v776
        %v778 = vpop.f32.mrf.mxu0
        %779 = vmatprep.mubr.bf16.mxu0 0
        %780 = vmatmul.mubr.bf16.gmra.mxu0 %v715
        %v781 = vpop.f32.mrf.mxu0
        %v782 = vadd.f32 0.0, %v781
        %v783 = vpop.f32.mrf.mxu0
        %v784 = vpop.f32.mrf.mxu0
        %v785 = vadd.f32 0.0, %v784
        %v786 = vpop.f32.mrf.mxu0
        %787 = vmatprep.mubr.bf16.mxu0 0
        %788 = vmatmul.mubr.bf16.gmra.mxu0 %v718
        %v789 = vpop.f32.mrf.mxu0
        %v790 = vadd.f32 0.0, %v789
        %v791 = vpop.f32.mrf.mxu0
        %v792 = vpop.f32.mrf.mxu0
        %v793 = vpop.f32.mrf.mxu0
        %794 = vdwg.mxu0
        %v795 = vadd.f32 %v680, %v758
        %v796 = vadd.f32 %v681, %v761
        %v797 = vadd.f32 %v682, %v766
        %v798 = vadd.f32 %v683, %v769
        %v799 = vadd.f32 %v684, %v774
        %v800 = vadd.f32 %v685, %v777
        %v801 = vadd.f32 %v686, %v782
        %v802 = vadd.f32 %v687, %v785
        %v803 = vadd.f32 %v688, %v790
        %v804 = vld [vmem:[%s359 + $0xb] sm:$0xff]
        %v805 = vld [vmem:[%s359 + $0x13] sm:$0xff]
        %v806 = vld [vmem:[%s359 + $0x1b] sm:$0xff]
        %v807 = vld [vmem:[%s359 + $0x23] sm:$0xff]
        %v808 = vld [vmem:[%s359 + $0x2b] sm:$0xff]
        %v809 = vld [vmem:[%s359 + $0x33] sm:$0xff]
        %v810 = vld [vmem:[%s359 + $0x3b] sm:$0xff]
        %v811 = vld [vmem:[%s359 + $0x43] sm:$0xff]
        %v812 = vld [vmem:[%s359 + $0x4b] sm:$0xf]
        %v813 = vpack.c.bf16 %v805, %v804
        %v814 = vpack.c.bf16 %v807, %v806
        %v815 = vpack.c.bf16 %v809, %v808
        %v816 = vpack.c.bf16 %v811, %v810
        %v817 = vpack.c.bf16 %v812, %v812
        %s818 = scalar_lea.vmem %s1, 4
        %v819 = vld [vmem:[%s818] sm:$0x1]
        %v821 = vsel %vm392, %v813, 0
        %v824 = vsel %vm392, %v814, 0
        %v827 = vsel %vm392, %v815, 0
        %v830 = vsel %vm392, %v816, 0
        %v833 = vsel %vm392, %v817, 0
        %v836 = vsel %vm408, %v819, 0
        %838 = vmatprep.subr.bf16.mxu0 0
        %839 = vmatpush1.bf16.msra.mxu0 0
        %840 = vmatprep.subr.bf16.mxu0 0
        %841 = vmatpush1.bf16.msra.mxu0 0
        %842 = vmatprep.subr.bf16.mxu0 0
        %843 = vmatpush1.bf16.msra.mxu0 0
        %844 = vmatprep.subr.bf16.mxu0 0
        %845 = vmatpush1.bf16.msra.mxu0 0
        %846 = vmatprep.subr.bf16.mxu0 0
        %847 = vmatpush1.bf16.msra.mxu0 0
        %848 = vmatprep.subr.bf16.mxu0 0
        %849 = vmatpush1.bf16.msra.mxu0 0
        %850 = vmatprep.subr.bf16.mxu0 0
        %851 = vmatpush1.bf16.msra.mxu0 0
        %852 = vmatprep.subr.bf16.mxu0 0
        %853 = vmatpush1.bf16.msra.mxu0 %v836
        %854 = vmatprep.subr.bf16.mxu0 0
        %855 = vmatpush2.bf16.msra.mxu0 0
        %856 = vmatprep.subr.bf16.mxu0 0
        %857 = vmatpush2.bf16.msra.mxu0 0
        %858 = vmatprep.subr.bf16.mxu0 0
        %859 = vmatpush2.bf16.msra.mxu0 0
        %860 = vmatprep.subr.bf16.mxu0 0
        %861 = vmatpush2.bf16.msra.mxu0 0
        %862 = vmatprep.subr.bf16.mxu0 0
        %863 = vmatpush2.bf16.msra.mxu0 0
        %864 = vmatprep.subr.bf16.mxu0 0
        %865 = vmatpush2.bf16.msra.mxu0 0
        %866 = vmatprep.subr.bf16.mxu0 0
        %867 = vmatpush2.bf16.msra.mxu0 0
        %868 = vmatprep.subr.bf16.mxu0 0
        %869 = vmatpush2.bf16.msra.mxu0 0
        %870 = vmatprep.mubr.bf16.mxu0 0
        %871 = vmatmul.mubr.bf16.gmra.mxu0 %v821
        %v872 = vpop.f32.mrf.mxu0
        %v873 = vadd.f32 0.0, %v872
        %v874 = vpop.f32.mrf.mxu0
        %v875 = vpop.f32.mrf.mxu0
        %v876 = vadd.f32 0.0, %v875
        %v877 = vpop.f32.mrf.mxu0
        %878 = vmatprep.mubr.bf16.mxu0 0
        %879 = vmatmul.mubr.bf16.gmra.mxu0 %v824
        %v880 = vpop.f32.mrf.mxu0
        %v881 = vadd.f32 0.0, %v880
        %v882 = vpop.f32.mrf.mxu0
        %v883 = vpop.f32.mrf.mxu0
        %v884 = vadd.f32 0.0, %v883
        %v885 = vpop.f32.mrf.mxu0
        %886 = vmatprep.mubr.bf16.mxu0 0
        %887 = vmatmul.mubr.bf16.gmra.mxu0 %v827
        %v888 = vpop.f32.mrf.mxu0
        %v889 = vadd.f32 0.0, %v888
        %v890 = vpop.f32.mrf.mxu0
        %v891 = vpop.f32.mrf.mxu0
        %v892 = vadd.f32 0.0, %v891
        %v893 = vpop.f32.mrf.mxu0
        %894 = vmatprep.mubr.bf16.mxu0 0
        %895 = vmatmul.mubr.bf16.gmra.mxu0 %v830
        %v896 = vpop.f32.mrf.mxu0
        %v897 = vadd.f32 0.0, %v896
        %v898 = vpop.f32.mrf.mxu0
        %v899 = vpop.f32.mrf.mxu0
        %v900 = vadd.f32 0.0, %v899
        %v901 = vpop.f32.mrf.mxu0
        %902 = vmatprep.mubr.bf16.mxu0 0
        %903 = vmatmul.mubr.bf16.gmra.mxu0 %v833
        %v904 = vpop.f32.mrf.mxu0
        %v905 = vadd.f32 0.0, %v904
        %v906 = vpop.f32.mrf.mxu0
        %v907 = vpop.f32.mrf.mxu0
        %v908 = vpop.f32.mrf.mxu0
        %909 = vdwg.mxu0
        %v910 = vadd.f32 %v795, %v873
        %v911 = vadd.f32 %v796, %v876
        %v912 = vadd.f32 %v797, %v881
        %v913 = vadd.f32 %v798, %v884
        %v914 = vadd.f32 %v799, %v889
        %v915 = vadd.f32 %v800, %v892
        %v916 = vadd.f32 %v801, %v897
        %v917 = vadd.f32 %v802, %v900
        %v918 = vadd.f32 %v803, %v905
        %v919 = vld [vmem:[%s359 + $0xc] sm:$0xff]
        %v920 = vld [vmem:[%s359 + $0x14] sm:$0xff]
        %v921 = vld [vmem:[%s359 + $0x1c] sm:$0xff]
        %v922 = vld [vmem:[%s359 + $0x24] sm:$0xff]
        %v923 = vld [vmem:[%s359 + $0x2c] sm:$0xff]
        %v924 = vld [vmem:[%s359 + $0x34] sm:$0xff]
        %v925 = vld [vmem:[%s359 + $0x3c] sm:$0xff]
        %v926 = vld [vmem:[%s359 + $0x44] sm:$0xff]
        %v927 = vld [vmem:[%s359 + $0x4c] sm:$0xf]
        %v928 = vpack.c.bf16 %v920, %v919
        %v929 = vpack.c.bf16 %v922, %v921
        %v930 = vpack.c.bf16 %v924, %v923
        %v931 = vpack.c.bf16 %v926, %v925
        %v932 = vpack.c.bf16 %v927, %v927
        %s933 = scalar_lea.vmem %s1, 5
        %v934 = vld [vmem:[%s933] sm:$0x1]
        %v936 = vsel %vm392, %v928, 0
        %v939 = vsel %vm392, %v929, 0
        %v942 = vsel %vm392, %v930, 0
        %v945 = vsel %vm392, %v931, 0
        %v948 = vsel %vm392, %v932, 0
        %v951 = vsel %vm408, %v934, 0
        %953 = vmatprep.subr.bf16.mxu0 0
        %954 = vmatpush1.bf16.msra.mxu0 0
        %955 = vmatprep.subr.bf16.mxu0 0
        %956 = vmatpush1.bf16.msra.mxu0 0
        %957 = vmatprep.subr.bf16.mxu0 0
        %958 = vmatpush1.bf16.msra.mxu0 0
        %959 = vmatprep.subr.bf16.mxu0 0
        %960 = vmatpush1.bf16.msra.mxu0 0
        %961 = vmatprep.subr.bf16.mxu0 0
        %962 = vmatpush1.bf16.msra.mxu0 0
        %963 = vmatprep.subr.bf16.mxu0 0
        %964 = vmatpush1.bf16.msra.mxu0 0
        %965 = vmatprep.subr.bf16.mxu0 0
        %966 = vmatpush1.bf16.msra.mxu0 0
        %967 = vmatprep.subr.bf16.mxu0 0
        %968 = vmatpush1.bf16.msra.mxu0 %v951
        %969 = vmatprep.subr.bf16.mxu0 0
        %970 = vmatpush2.bf16.msra.mxu0 0
        %971 = vmatprep.subr.bf16.mxu0 0
        %972 = vmatpush2.bf16.msra.mxu0 0
        %973 = vmatprep.subr.bf16.mxu0 0
        %974 = vmatpush2.bf16.msra.mxu0 0
        %975 = vmatprep.subr.bf16.mxu0 0
        %976 = vmatpush2.bf16.msra.mxu0 0
        %977 = vmatprep.subr.bf16.mxu0 0
        %978 = vmatpush2.bf16.msra.mxu0 0
        %979 = vmatprep.subr.bf16.mxu0 0
        %980 = vmatpush2.bf16.msra.mxu0 0
        %981 = vmatprep.subr.bf16.mxu0 0
        %982 = vmatpush2.bf16.msra.mxu0 0
        %983 = vmatprep.subr.bf16.mxu0 0
        %984 = vmatpush2.bf16.msra.mxu0 0
        %985 = vmatprep.mubr.bf16.mxu0 0
        %986 = vmatmul.mubr.bf16.gmra.mxu0 %v936
        %v987 = vpop.f32.mrf.mxu0
        %v988 = vadd.f32 0.0, %v987
        %v989 = vpop.f32.mrf.mxu0
        %v990 = vpop.f32.mrf.mxu0
        %v991 = vadd.f32 0.0, %v990
        %v992 = vpop.f32.mrf.mxu0
        %993 = vmatprep.mubr.bf16.mxu0 0
        %994 = vmatmul.mubr.bf16.gmra.mxu0 %v939
        %v995 = vpop.f32.mrf.mxu0
        %v996 = vadd.f32 0.0, %v995
        %v997 = vpop.f32.mrf.mxu0
        %v998 = vpop.f32.mrf.mxu0
        %v999 = vadd.f32 0.0, %v998
        %v1000 = vpop.f32.mrf.mxu0
        %1001 = vmatprep.mubr.bf16.mxu0 0
        %1002 = vmatmul.mubr.bf16.gmra.mxu0 %v942
        %v1003 = vpop.f32.mrf.mxu0
        %v1004 = vadd.f32 0.0, %v1003
        %v1005 = vpop.f32.mrf.mxu0
        %v1006 = vpop.f32.mrf.mxu0
        %v1007 = vadd.f32 0.0, %v1006
        %v1008 = vpop.f32.mrf.mxu0
        %1009 = vmatprep.mubr.bf16.mxu0 0
        %1010 = vmatmul.mubr.bf16.gmra.mxu0 %v945
        %v1011 = vpop.f32.mrf.mxu0
        %v1012 = vadd.f32 0.0, %v1011
        %v1013 = vpop.f32.mrf.mxu0
        %v1014 = vpop.f32.mrf.mxu0
        %v1015 = vadd.f32 0.0, %v1014
        %v1016 = vpop.f32.mrf.mxu0
        %1017 = vmatprep.mubr.bf16.mxu0 0
        %1018 = vmatmul.mubr.bf16.gmra.mxu0 %v948
        %v1019 = vpop.f32.mrf.mxu0
        %v1020 = vadd.f32 0.0, %v1019
        %v1021 = vpop.f32.mrf.mxu0
        %v1022 = vpop.f32.mrf.mxu0
        %v1023 = vpop.f32.mrf.mxu0
        %1024 = vdwg.mxu0
        %v1025 = vadd.f32 %v910, %v988
        %v1026 = vadd.f32 %v911, %v991
        %v1027 = vadd.f32 %v912, %v996
        %v1028 = vadd.f32 %v913, %v999
        %v1029 = vadd.f32 %v914, %v1004
        %v1030 = vadd.f32 %v915, %v1007
        %v1031 = vadd.f32 %v916, %v1012
        %v1032 = vadd.f32 %v917, %v1015
        %v1033 = vadd.f32 %v918, %v1020
        %v1034 = vld [vmem:[%s359 + $0x14] sm:$0xff]
        %v1035 = vld [vmem:[%s359 + $0x1c] sm:$0xff]
        %v1036 = vld [vmem:[%s359 + $0x24] sm:$0xff]
        %v1037 = vld [vmem:[%s359 + $0x2c] sm:$0xff]
        %v1038 = vld [vmem:[%s359 + $0x34] sm:$0xff]
        %v1039 = vld [vmem:[%s359 + $0x3c] sm:$0xff]
        %v1040 = vld [vmem:[%s359 + $0x44] sm:$0xff]
        %v1041 = vld [vmem:[%s359 + $0x4c] sm:$0xff]
        %v1042 = vld [vmem:[%s359 + $0x54] sm:$0xf]
        %v1043 = vpack.c.bf16 %v1035, %v1034
        %v1044 = vpack.c.bf16 %v1037, %v1036
        %v1045 = vpack.c.bf16 %v1039, %v1038
        %v1046 = vpack.c.bf16 %v1041, %v1040
        %v1047 = vpack.c.bf16 %v1042, %v1042
        %s1048 = scalar_lea.vmem %s1, 6
        %v1049 = vld [vmem:[%s1048] sm:$0x1]
        %v1051 = vsel %vm392, %v1043, 0
        %v1054 = vsel %vm392, %v1044, 0
        %v1057 = vsel %vm392, %v1045, 0
        %v1060 = vsel %vm392, %v1046, 0
        %v1063 = vsel %vm392, %v1047, 0
        %v1066 = vsel %vm408, %v1049, 0
        %1068 = vmatprep.subr.bf16.mxu0 0
        %1069 = vmatpush1.bf16.msra.mxu0 0
        %1070 = vmatprep.subr.bf16.mxu0 0
        %1071 = vmatpush1.bf16.msra.mxu0 0
        %1072 = vmatprep.subr.bf16.mxu0 0
        %1073 = vmatpush1.bf16.msra.mxu0 0
        %1074 = vmatprep.subr.bf16.mxu0 0
        %1075 = vmatpush1.bf16.msra.mxu0 0
        %1076 = vmatprep.subr.bf16.mxu0 0
        %1077 = vmatpush1.bf16.msra.mxu0 0
        %1078 = vmatprep.subr.bf16.mxu0 0
        %1079 = vmatpush1.bf16.msra.mxu0 0
        %1080 = vmatprep.subr.bf16.mxu0 0
        %1081 = vmatpush1.bf16.msra.mxu0 0
        %1082 = vmatprep.subr.bf16.mxu0 0
        %1083 = vmatpush1.bf16.msra.mxu0 %v1066
        %1084 = vmatprep.subr.bf16.mxu0 0
        %1085 = vmatpush2.bf16.msra.mxu0 0
        %1086 = vmatprep.subr.bf16.mxu0 0
        %1087 = vmatpush2.bf16.msra.mxu0 0
        %1088 = vmatprep.subr.bf16.mxu0 0
        %1089 = vmatpush2.bf16.msra.mxu0 0
        %1090 = vmatprep.subr.bf16.mxu0 0
        %1091 = vmatpush2.bf16.msra.mxu0 0
        %1092 = vmatprep.subr.bf16.mxu0 0
        %1093 = vmatpush2.bf16.msra.mxu0 0
        %1094 = vmatprep.subr.bf16.mxu0 0
        %1095 = vmatpush2.bf16.msra.mxu0 0
        %1096 = vmatprep.subr.bf16.mxu0 0
        %1097 = vmatpush2.bf16.msra.mxu0 0
        %1098 = vmatprep.subr.bf16.mxu0 0
        %1099 = vmatpush2.bf16.msra.mxu0 0
        %1100 = vmatprep.mubr.bf16.mxu0 0
        %1101 = vmatmul.mubr.bf16.gmra.mxu0 %v1051
        %v1102 = vpop.f32.mrf.mxu0
        %v1103 = vadd.f32 0.0, %v1102
        %v1104 = vpop.f32.mrf.mxu0
        %v1105 = vpop.f32.mrf.mxu0
        %v1106 = vadd.f32 0.0, %v1105
        %v1107 = vpop.f32.mrf.mxu0
        %1108 = vmatprep.mubr.bf16.mxu0 0
        %1109 = vmatmul.mubr.bf16.gmra.mxu0 %v1054
        %v1110 = vpop.f32.mrf.mxu0
        %v1111 = vadd.f32 0.0, %v1110
        %v1112 = vpop.f32.mrf.mxu0
        %v1113 = vpop.f32.mrf.mxu0
        %v1114 = vadd.f32 0.0, %v1113
        %v1115 = vpop.f32.mrf.mxu0
        %1116 = vmatprep.mubr.bf16.mxu0 0
        %1117 = vmatmul.mubr.bf16.gmra.mxu0 %v1057
        %v1118 = vpop.f32.mrf.mxu0
        %v1119 = vadd.f32 0.0, %v1118
        %v1120 = vpop.f32.mrf.mxu0
        %v1121 = vpop.f32.mrf.mxu0
        %v1122 = vadd.f32 0.0, %v1121
        %v1123 = vpop.f32.mrf.mxu0
        %1124 = vmatprep.mubr.bf16.mxu0 0
        %1125 = vmatmul.mubr.bf16.gmra.mxu0 %v1060
        %v1126 = vpop.f32.mrf.mxu0
        %v1127 = vadd.f32 0.0, %v1126
        %v1128 = vpop.f32.mrf.mxu0
        %v1129 = vpop.f32.mrf.mxu0
        %v1130 = vadd.f32 0.0, %v1129
        %v1131 = vpop.f32.mrf.mxu0
        %1132 = vmatprep.mubr.bf16.mxu0 0
        %1133 = vmatmul.mubr.bf16.gmra.mxu0 %v1063
        %v1134 = vpop.f32.mrf.mxu0
        %v1135 = vadd.f32 0.0, %v1134
        %v1136 = vpop.f32.mrf.mxu0
        %v1137 = vpop.f32.mrf.mxu0
        %v1138 = vpop.f32.mrf.mxu0
        %1139 = vdwg.mxu0
        %v1140 = vadd.f32 %v1025, %v1103
        %v1141 = vadd.f32 %v1026, %v1106
        %v1142 = vadd.f32 %v1027, %v1111
        %v1143 = vadd.f32 %v1028, %v1114
        %v1144 = vadd.f32 %v1029, %v1119
        %v1145 = vadd.f32 %v1030, %v1122
        %v1146 = vadd.f32 %v1031, %v1127
        %v1147 = vadd.f32 %v1032, %v1130
        %v1148 = vadd.f32 %v1033, %v1135
        %v1149 = vld [vmem:[%s359 + $0x15] sm:$0xff]
        %v1150 = vld [vmem:[%s359 + $0x1d] sm:$0xff]
        %v1151 = vld [vmem:[%s359 + $0x25] sm:$0xff]
        %v1152 = vld [vmem:[%s359 + $0x2d] sm:$0xff]
        %v1153 = vld [vmem:[%s359 + $0x35] sm:$0xff]
        %v1154 = vld [vmem:[%s359 + $0x3d] sm:$0xff]
        %v1155 = vld [vmem:[%s359 + $0x45] sm:$0xff]
        %v1156 = vld [vmem:[%s359 + $0x4d] sm:$0xff]
        %v1157 = vld [vmem:[%s359 + $0x55] sm:$0xf]
        %v1158 = vpack.c.bf16 %v1150, %v1149
        %v1159 = vpack.c.bf16 %v1152, %v1151
        %v1160 = vpack.c.bf16 %v1154, %v1153
        %v1161 = vpack.c.bf16 %v1156, %v1155
        %v1162 = vpack.c.bf16 %v1157, %v1157
        %s1163 = scalar_lea.vmem %s1, 7
        %v1164 = vld [vmem:[%s1163] sm:$0x1]
        %v1166 = vsel %vm392, %v1158, 0
        %v1169 = vsel %vm392, %v1159, 0
        %v1172 = vsel %vm392, %v1160, 0
        %v1175 = vsel %vm392, %v1161, 0
        %v1178 = vsel %vm392, %v1162, 0
        %v1181 = vsel %vm408, %v1164, 0
        %1183 = vmatprep.subr.bf16.mxu0 0
        %1184 = vmatpush1.bf16.msra.mxu0 0
        %1185 = vmatprep.subr.bf16.mxu0 0
        %1186 = vmatpush1.bf16.msra.mxu0 0
        %1187 = vmatprep.subr.bf16.mxu0 0
        %1188 = vmatpush1.bf16.msra.mxu0 0
        %1189 = vmatprep.subr.bf16.mxu0 0
        %1190 = vmatpush1.bf16.msra.mxu0 0
        %1191 = vmatprep.subr.bf16.mxu0 0
        %1192 = vmatpush1.bf16.msra.mxu0 0
        %1193 = vmatprep.subr.bf16.mxu0 0
        %1194 = vmatpush1.bf16.msra.mxu0 0
        %1195 = vmatprep.subr.bf16.mxu0 0
        %1196 = vmatpush1.bf16.msra.mxu0 0
        %1197 = vmatprep.subr.bf16.mxu0 0
        %1198 = vmatpush1.bf16.msra.mxu0 %v1181
        %1199 = vmatprep.subr.bf16.mxu0 0
        %1200 = vmatpush2.bf16.msra.mxu0 0
        %1201 = vmatprep.subr.bf16.mxu0 0
        %1202 = vmatpush2.bf16.msra.mxu0 0
        %1203 = vmatprep.subr.bf16.mxu0 0
        %1204 = vmatpush2.bf16.msra.mxu0 0
        %1205 = vmatprep.subr.bf16.mxu0 0
        %1206 = vmatpush2.bf16.msra.mxu0 0
        %1207 = vmatprep.subr.bf16.mxu0 0
        %1208 = vmatpush2.bf16.msra.mxu0 0
        %1209 = vmatprep.subr.bf16.mxu0 0
        %1210 = vmatpush2.bf16.msra.mxu0 0
        %1211 = vmatprep.subr.bf16.mxu0 0
        %1212 = vmatpush2.bf16.msra.mxu0 0
        %1213 = vmatprep.subr.bf16.mxu0 0
        %1214 = vmatpush2.bf16.msra.mxu0 0
        %1215 = vmatprep.mubr.bf16.mxu0 0
        %1216 = vmatmul.mubr.bf16.gmra.mxu0 %v1166
        %v1217 = vpop.f32.mrf.mxu0
        %v1218 = vadd.f32 0.0, %v1217
        %v1219 = vpop.f32.mrf.mxu0
        %v1220 = vpop.f32.mrf.mxu0
        %v1221 = vadd.f32 0.0, %v1220
        %v1222 = vpop.f32.mrf.mxu0
        %1223 = vmatprep.mubr.bf16.mxu0 0
        %1224 = vmatmul.mubr.bf16.gmra.mxu0 %v1169
        %v1225 = vpop.f32.mrf.mxu0
        %v1226 = vadd.f32 0.0, %v1225
        %v1227 = vpop.f32.mrf.mxu0
        %v1228 = vpop.f32.mrf.mxu0
        %v1229 = vadd.f32 0.0, %v1228
        %v1230 = vpop.f32.mrf.mxu0
        %1231 = vmatprep.mubr.bf16.mxu0 0
        %1232 = vmatmul.mubr.bf16.gmra.mxu0 %v1172
        %v1233 = vpop.f32.mrf.mxu0
        %v1234 = vadd.f32 0.0, %v1233
        %v1235 = vpop.f32.mrf.mxu0
        %v1236 = vpop.f32.mrf.mxu0
        %v1237 = vadd.f32 0.0, %v1236
        %v1238 = vpop.f32.mrf.mxu0
        %1239 = vmatprep.mubr.bf16.mxu0 0
        %1240 = vmatmul.mubr.bf16.gmra.mxu0 %v1175
        %v1241 = vpop.f32.mrf.mxu0
        %v1242 = vadd.f32 0.0, %v1241
        %v1243 = vpop.f32.mrf.mxu0
        %v1244 = vpop.f32.mrf.mxu0
        %v1245 = vadd.f32 0.0, %v1244
        %v1246 = vpop.f32.mrf.mxu0
        %1247 = vmatprep.mubr.bf16.mxu0 0
        %1248 = vmatmul.mubr.bf16.gmra.mxu0 %v1178
        %v1249 = vpop.f32.mrf.mxu0
        %v1250 = vadd.f32 0.0, %v1249
        %v1251 = vpop.f32.mrf.mxu0
        %v1252 = vpop.f32.mrf.mxu0
        %v1253 = vpop.f32.mrf.mxu0
        %1254 = vdwg.mxu0
        %v1255 = vadd.f32 %v1140, %v1218
        %v1256 = vadd.f32 %v1141, %v1221
        %v1257 = vadd.f32 %v1142, %v1226
        %v1258 = vadd.f32 %v1143, %v1229
        %v1259 = vadd.f32 %v1144, %v1234
        %v1260 = vadd.f32 %v1145, %v1237
        %v1261 = vadd.f32 %v1146, %v1242
        %v1262 = vadd.f32 %v1147, %v1245
        %v1263 = vadd.f32 %v1148, %v1250
        %v1264 = vld [vmem:[%s359 + $0x16] sm:$0xff]
        %v1265 = vld [vmem:[%s359 + $0x1e] sm:$0xff]
        %v1266 = vld [vmem:[%s359 + $0x26] sm:$0xff]
        %v1267 = vld [vmem:[%s359 + $0x2e] sm:$0xff]
        %v1268 = vld [vmem:[%s359 + $0x36] sm:$0xff]
        %v1269 = vld [vmem:[%s359 + $0x3e] sm:$0xff]
        %v1270 = vld [vmem:[%s359 + $0x46] sm:$0xff]
        %v1271 = vld [vmem:[%s359 + $0x4e] sm:$0xff]
        %v1272 = vld [vmem:[%s359 + $0x56] sm:$0xf]
        %v1273 = vpack.c.bf16 %v1265, %v1264
        %v1274 = vpack.c.bf16 %v1267, %v1266
        %v1275 = vpack.c.bf16 %v1269, %v1268
        %v1276 = vpack.c.bf16 %v1271, %v1270
        %v1277 = vpack.c.bf16 %v1272, %v1272
        %s1278 = scalar_lea.vmem %s1, 8
        %v1279 = vld [vmem:[%s1278] sm:$0x1]
        %v1281 = vsel %vm392, %v1273, 0
        %v1284 = vsel %vm392, %v1274, 0
        %v1287 = vsel %vm392, %v1275, 0
        %v1290 = vsel %vm392, %v1276, 0
        %v1293 = vsel %vm392, %v1277, 0
        %v1296 = vsel %vm408, %v1279, 0
        %1298 = vmatprep.subr.bf16.mxu0 0
        %1299 = vmatpush1.bf16.msra.mxu0 0
        %1300 = vmatprep.subr.bf16.mxu0 0
        %1301 = vmatpush1.bf16.msra.mxu0 0
        %1302 = vmatprep.subr.bf16.mxu0 0
        %1303 = vmatpush1.bf16.msra.mxu0 0
        %1304 = vmatprep.subr.bf16.mxu0 0
        %1305 = vmatpush1.bf16.msra.mxu0 0
        %1306 = vmatprep.subr.bf16.mxu0 0
        %1307 = vmatpush1.bf16.msra.mxu0 0
        %1308 = vmatprep.subr.bf16.mxu0 0
        %1309 = vmatpush1.bf16.msra.mxu0 0
        %1310 = vmatprep.subr.bf16.mxu0 0
        %1311 = vmatpush1.bf16.msra.mxu0 0
        %1312 = vmatprep.subr.bf16.mxu0 0
        %1313 = vmatpush1.bf16.msra.mxu0 %v1296
        %1314 = vmatprep.subr.bf16.mxu0 0
        %1315 = vmatpush2.bf16.msra.mxu0 0
        %1316 = vmatprep.subr.bf16.mxu0 0
        %1317 = vmatpush2.bf16.msra.mxu0 0
        %1318 = vmatprep.subr.bf16.mxu0 0
        %1319 = vmatpush2.bf16.msra.mxu0 0
        %1320 = vmatprep.subr.bf16.mxu0 0
        %1321 = vmatpush2.bf16.msra.mxu0 0
        %1322 = vmatprep.subr.bf16.mxu0 0
        %1323 = vmatpush2.bf16.msra.mxu0 0
        %1324 = vmatprep.subr.bf16.mxu0 0
        %1325 = vmatpush2.bf16.msra.mxu0 0
        %1326 = vmatprep.subr.bf16.mxu0 0
        %1327 = vmatpush2.bf16.msra.mxu0 0
        %1328 = vmatprep.subr.bf16.mxu0 0
        %1329 = vmatpush2.bf16.msra.mxu0 0
        %1330 = vmatprep.mubr.bf16.mxu0 0
        %1331 = vmatmul.mubr.bf16.gmra.mxu0 %v1281
        %v1332 = vpop.f32.mrf.mxu0
        %v1333 = vadd.f32 0.0, %v1332
        %v1334 = vpop.f32.mrf.mxu0
        %v1335 = vpop.f32.mrf.mxu0
        %v1336 = vadd.f32 0.0, %v1335
        %v1337 = vpop.f32.mrf.mxu0
        %1338 = vmatprep.mubr.bf16.mxu0 0
        %1339 = vmatmul.mubr.bf16.gmra.mxu0 %v1284
        %v1340 = vpop.f32.mrf.mxu0
        %v1341 = vadd.f32 0.0, %v1340
        %v1342 = vpop.f32.mrf.mxu0
        %v1343 = vpop.f32.mrf.mxu0
        %v1344 = vadd.f32 0.0, %v1343
        %v1345 = vpop.f32.mrf.mxu0
        %1346 = vmatprep.mubr.bf16.mxu0 0
        %1347 = vmatmul.mubr.bf16.gmra.mxu0 %v1287
        %v1348 = vpop.f32.mrf.mxu0
        %v1349 = vadd.f32 0.0, %v1348
        %v1350 = vpop.f32.mrf.mxu0
        %v1351 = vpop.f32.mrf.mxu0
        %v1352 = vadd.f32 0.0, %v1351
        %v1353 = vpop.f32.mrf.mxu0
        %1354 = vmatprep.mubr.bf16.mxu0 0
        %1355 = vmatmul.mubr.bf16.gmra.mxu0 %v1290
        %v1356 = vpop.f32.mrf.mxu0
        %v1357 = vadd.f32 0.0, %v1356
        %v1358 = vpop.f32.mrf.mxu0
        %v1359 = vpop.f32.mrf.mxu0
        %v1360 = vadd.f32 0.0, %v1359
        %v1361 = vpop.f32.mrf.mxu0
        %1362 = vmatprep.mubr.bf16.mxu0 0
        %1363 = vmatmul.mubr.bf16.gmra.mxu0 %v1293
        %v1364 = vpop.f32.mrf.mxu0
        %v1365 = vadd.f32 0.0, %v1364
        %v1366 = vpop.f32.mrf.mxu0
        %v1367 = vpop.f32.mrf.mxu0
        %v1368 = vpop.f32.mrf.mxu0
        %1369 = vdwg.mxu0
        %v1370 = vadd.f32 %v1255, %v1333
        %v1371 = vadd.f32 %v1256, %v1336
        %v1372 = vadd.f32 %v1257, %v1341
        %v1373 = vadd.f32 %v1258, %v1344
        %v1374 = vadd.f32 %v1259, %v1349
        %v1375 = vadd.f32 %v1260, %v1352
        %v1376 = vadd.f32 %v1261, %v1357
        %v1377 = vadd.f32 %v1262, %v1360
        %v1378 = vadd.f32 %v1263, %v1365
        %v1379 = vld [vmem:[%s2] sm:$0x1]
        %v1381 = vlaneseq
        %v1382 = vshrl.u32 %v1381, 7
        %v1383 = vsub.s32 0, %v1382
        %v1384 = vrot.slane %v1379, %v1383
        %v1386 = vadd.f32 %v1370, %v1384
        %v1387 = vadd.f32 %v1371, %v1384
        %v1388 = vadd.f32 %v1372, %v1384
        %v1389 = vadd.f32 %v1373, %v1384
        %v1390 = vadd.f32 %v1374, %v1384
        %v1391 = vadd.f32 %v1375, %v1384
        %v1392 = vadd.f32 %v1376, %v1384
        %v1393 = vadd.f32 %v1377, %v1384
        %v1394 = vadd.f32 %v1378, %v1384
        %v1395 = vmax.f32 %v1386, 0.0
        %v1396 = vmax.f32 %v1387, 0.0
        %v1397 = vmax.f32 %v1388, 0.0
        %v1398 = vmax.f32 %v1389, 0.0
        %v1399 = vmax.f32 %v1390, 0.0
        %v1400 = vmax.f32 %v1391, 0.0
        %v1401 = vmax.f32 %v1392, 0.0
        %v1402 = vmax.f32 %v1393, 0.0
        %v1403 = vmax.f32 %v1394, 0.0
        %1404 = vst [vmem:[#allocation2] sm:$0xff] %v1395
        %1405 = vst [vmem:[#allocation2 + $0x8] sm:$0xff] %v1396
        %1406 = vst [vmem:[#allocation2 + $0x10] sm:$0xff] %v1397
        %1407 = vst [vmem:[#allocation2 + $0x18] sm:$0xff] %v1398
        %1408 = vst [vmem:[#allocation2 + $0x20] sm:$0xff] %v1399
        %1409 = vst [vmem:[#allocation2 + $0x28] sm:$0xff] %v1400
        %1410 = vst [vmem:[#allocation2 + $0x30] sm:$0xff] %v1401
        %1411 = vst [vmem:[#allocation2 + $0x38] sm:$0xff] %v1402
        %1412 = vst [vmem:[#allocation2 + $0x40] sm:$0xf] %v1403
        %v1413 = vld [vmem:[#allocation2] sm:$0xff]
        %v1414 = vld [vmem:[#allocation2 + $0x8] sm:$0xff]
        %v1415 = vld [vmem:[#allocation2 + $0x10] sm:$0xff]
        %v1416 = vld [vmem:[#allocation2 + $0x18] sm:$0xff]
        %v1417 = vld [vmem:[#allocation2 + $0x20] sm:$0xff]
        %v1418 = vld [vmem:[#allocation2 + $0x28] sm:$0x3f]
        %v1419 = vpack.c.bf16 %v1414, %v1413
        %v1420 = vpack.c.bf16 %v1416, %v1415
        %v1421 = vpack.c.bf16 %v1418, %v1417
        %v1422 = vld [vmem:[#allocation4] sm:$0xf]
        %v1423 = vld [vmem:[#allocation4 + $0x4] sm:$0xf]
        %v1424 = vld [vmem:[#allocation4 + $0x8] sm:$0xf]
        %v1425 = vld [vmem:[#allocation4 + $0xc] sm:$0xf]
        %v1426 = vld [vmem:[#allocation4 + $0x10] sm:$0xf]
        %v1427 = vld [vmem:[#allocation4 + $0x14] sm:$0xf]
        %v1428 = vld [vmem:[#allocation4 + $0x18] sm:$0xf]
        %v1429 = vld [vmem:[#allocation4 + $0x1c] sm:$0xf]
        %v1430 = vld [vmem:[#allocation4 + $0x20] sm:$0xf]
        %v1431 = vld [vmem:[#allocation4 + $0x24] sm:$0xf]
        %v1432 = vld [vmem:[#allocation4 + $0x28] sm:$0xf]
        %v1433 = vld [vmem:[#allocation4 + $0x2c] sm:$0xf]
        %v1434 = vld [vmem:[#allocation4 + $0x30] sm:$0xf]
        %v1435 = vld [vmem:[#allocation4 + $0x34] sm:$0xf]
        %v1436 = vld [vmem:[#allocation4 + $0x38] sm:$0xf]
        %v1437 = vld [vmem:[#allocation4 + $0x3c] sm:$0xf]
        %v1438 = vld [vmem:[#allocation2 + $0x1] sm:$0xff]
        %v1439 = vld [vmem:[#allocation2 + $0x9] sm:$0xff]
        %v1440 = vld [vmem:[#allocation2 + $0x11] sm:$0xff]
        %v1441 = vld [vmem:[#allocation2 + $0x19] sm:$0xff]
        %v1442 = vld [vmem:[#allocation2 + $0x21] sm:$0xff]
        %v1443 = vld [vmem:[#allocation2 + $0x29] sm:$0x3f]
        %v1444 = vpack.c.bf16 %v1439, %v1438
        %v1445 = vpack.c.bf16 %v1441, %v1440
        %v1446 = vpack.c.bf16 %v1443, %v1442
        %s1447 = scalar_lea.vmem [#allocation4], 64
        %v1448 = vld [vmem:[%s1447] sm:$0xf]
        %v1449 = vld [vmem:[%s1447 + $0x4] sm:$0xf]
        %v1450 = vld [vmem:[%s1447 + $0x8] sm:$0xf]
        %v1451 = vld [vmem:[%s1447 + $0xc] sm:$0xf]
        %v1452 = vld [vmem:[%s1447 + $0x10] sm:$0xf]
        %v1453 = vld [vmem:[%s1447 + $0x14] sm:$0xf]
        %v1454 = vld [vmem:[%s1447 + $0x18] sm:$0xf]
        %v1455 = vld [vmem:[%s1447 + $0x1c] sm:$0xf]
        %v1456 = vld [vmem:[%s1447 + $0x20] sm:$0xf]
        %v1457 = vld [vmem:[%s1447 + $0x24] sm:$0xf]
        %v1458 = vld [vmem:[%s1447 + $0x28] sm:$0xf]
        %v1459 = vld [vmem:[%s1447 + $0x2c] sm:$0xf]
        %v1460 = vld [vmem:[%s1447 + $0x30] sm:$0xf]
        %v1461 = vld [vmem:[%s1447 + $0x34] sm:$0xf]
        %v1462 = vld [vmem:[%s1447 + $0x38] sm:$0xf]
        %v1463 = vld [vmem:[%s1447 + $0x3c] sm:$0xf]
        %v1480 = vunpack.c.l.b16 %v1448
        %v1481 = vunpack.c.l.b16 %v1449
        %v1482 = vunpack.c.l.b16 %v1450
        %v1483 = vunpack.c.l.b16 %v1451
        %v1484 = vunpack.c.l.b16 %v1452
        %v1485 = vunpack.c.l.b16 %v1453
        %v1486 = vunpack.c.l.b16 %v1454
        %v1487 = vunpack.c.l.b16 %v1455
        %v1488 = vunpack.c.l.b16 %v1456
        %v1489 = vunpack.c.l.b16 %v1457
        %v1490 = vunpack.c.l.b16 %v1458
        %v1491 = vunpack.c.l.b16 %v1459
        %v1492 = vunpack.c.l.b16 %v1460
        %v1493 = vunpack.c.l.b16 %v1461
        %v1494 = vunpack.c.l.b16 %v1462
        %v1495 = vunpack.c.l.b16 %v1463
        %v1496 = vpack.c.b16 %v1481, %v1480
        %v1497 = vpack.c.b16 %v1483, %v1482
        %v1498 = vpack.c.b16 %v1485, %v1484
        %v1499 = vpack.c.b16 %v1487, %v1486
        %v1500 = vpack.c.b16 %v1489, %v1488
        %v1501 = vpack.c.b16 %v1491, %v1490
        %v1502 = vpack.c.b16 %v1493, %v1492
        %v1503 = vpack.c.b16 %v1495, %v1494
        %1512 = vmatprep.subr.bf16.mxu0 0
        %1513 = vmatpush1.bf16.msra.mxu0 %v1503
        %1514 = vmatprep.subr.bf16.mxu0 0
        %1515 = vmatpush1.bf16.msra.mxu0 %v1502
        %1516 = vmatprep.subr.bf16.mxu0 0
        %1517 = vmatpush1.bf16.msra.mxu0 %v1501
        %1518 = vmatprep.subr.bf16.mxu0 0
        %1519 = vmatpush1.bf16.msra.mxu0 %v1500
        %1520 = vmatprep.subr.bf16.mxu0 0
        %1521 = vmatpush1.bf16.msra.mxu0 %v1499
        %1522 = vmatprep.subr.bf16.mxu0 0
        %1523 = vmatpush1.bf16.msra.mxu0 %v1498
        %1524 = vmatprep.subr.bf16.mxu0 0
        %1525 = vmatpush1.bf16.msra.mxu0 %v1497
        %1526 = vmatprep.subr.bf16.mxu0 0
        %1527 = vmatpush1.bf16.msra.mxu0 %v1496
        %1528 = vmatprep.subr.bf16.mxu0 0
        %1529 = vmatpush2.bf16.msra.mxu0 0
        %1530 = vmatprep.subr.bf16.mxu0 0
        %1531 = vmatpush2.bf16.msra.mxu0 0
        %1532 = vmatprep.subr.bf16.mxu0 0
        %1533 = vmatpush2.bf16.msra.mxu0 0
        %1534 = vmatprep.subr.bf16.mxu0 0
        %1535 = vmatpush2.bf16.msra.mxu0 0
        %1536 = vmatprep.subr.bf16.mxu0 0
        %1537 = vmatpush2.bf16.msra.mxu0 0
        %1538 = vmatprep.subr.bf16.mxu0 0
        %1539 = vmatpush2.bf16.msra.mxu0 0
        %1540 = vmatprep.subr.bf16.mxu0 0
        %1541 = vmatpush2.bf16.msra.mxu0 0
        %1542 = vmatprep.subr.bf16.mxu0 0
        %1543 = vmatpush2.bf16.msra.mxu0 0
        %1544 = vmatprep.mubr.bf16.mxu0 0
        %1545 = vmatmul.mubr.bf16.gmra.mxu0 %v1444
        %v1546 = vpop.f32.mrf.mxu0
        %v1547 = vadd.f32 0.0, %v1546
        %v1548 = vpop.f32.mrf.mxu0
        %v1549 = vpop.f32.mrf.mxu0
        %v1550 = vadd.f32 0.0, %v1549
        %v1551 = vpop.f32.mrf.mxu0
        %1552 = vmatprep.mubr.bf16.mxu0 0
        %1553 = vmatmul.mubr.bf16.gmra.mxu0 %v1445
        %v1554 = vpop.f32.mrf.mxu0
        %v1555 = vadd.f32 0.0, %v1554
        %v1556 = vpop.f32.mrf.mxu0
        %v1557 = vpop.f32.mrf.mxu0
        %v1558 = vadd.f32 0.0, %v1557
        %v1559 = vpop.f32.mrf.mxu0
        %1560 = vmatprep.mubr.bf16.mxu0 0
        %1561 = vmatmul.mubr.bf16.gmra.mxu0 %v1446
        %v1562 = vpop.f32.mrf.mxu0
        %v1563 = vadd.f32 0.0, %v1562
        %v1564 = vpop.f32.mrf.mxu0
        %v1565 = vpop.f32.mrf.mxu0
        %v1566 = vadd.f32 0.0, %v1565
        %v1567 = vpop.f32.mrf.mxu0
        %1568 = vdwg.mxu0
        %v1585 = vunpack.c.l.b16 %v1422
        %v1586 = vunpack.c.l.b16 %v1423
        %v1587 = vunpack.c.l.b16 %v1424
        %v1588 = vunpack.c.l.b16 %v1425
        %v1589 = vunpack.c.l.b16 %v1426
        %v1590 = vunpack.c.l.b16 %v1427
        %v1591 = vunpack.c.l.b16 %v1428
        %v1592 = vunpack.c.l.b16 %v1429
        %v1593 = vunpack.c.l.b16 %v1430
        %v1594 = vunpack.c.l.b16 %v1431
        %v1595 = vunpack.c.l.b16 %v1432
        %v1596 = vunpack.c.l.b16 %v1433
        %v1597 = vunpack.c.l.b16 %v1434
        %v1598 = vunpack.c.l.b16 %v1435
        %v1599 = vunpack.c.l.b16 %v1436
        %v1600 = vunpack.c.l.b16 %v1437
        %v1601 = vpack.c.b16 %v1586, %v1585
        %v1602 = vpack.c.b16 %v1588, %v1587
        %v1603 = vpack.c.b16 %v1590, %v1589
        %v1604 = vpack.c.b16 %v1592, %v1591
        %v1605 = vpack.c.b16 %v1594, %v1593
        %v1606 = vpack.c.b16 %v1596, %v1595
        %v1607 = vpack.c.b16 %v1598, %v1597
        %v1608 = vpack.c.b16 %v1600, %v1599
        %1617 = vmatprep.subr.bf16.mxu0 0
        %1618 = vmatpush1.bf16.msra.mxu0 %v1608
        %1619 = vmatprep.subr.bf16.mxu0 0
        %1620 = vmatpush1.bf16.msra.mxu0 %v1607
        %1621 = vmatprep.subr.bf16.mxu0 0
        %1622 = vmatpush1.bf16.msra.mxu0 %v1606
        %1623 = vmatprep.subr.bf16.mxu0 0
        %1624 = vmatpush1.bf16.msra.mxu0 %v1605
        %1625 = vmatprep.subr.bf16.mxu0 0
        %1626 = vmatpush1.bf16.msra.mxu0 %v1604
        %1627 = vmatprep.subr.bf16.mxu0 0
        %1628 = vmatpush1.bf16.msra.mxu0 %v1603
        %1629 = vmatprep.subr.bf16.mxu0 0
        %1630 = vmatpush1.bf16.msra.mxu0 %v1602
        %1631 = vmatprep.subr.bf16.mxu0 0
        %1632 = vmatpush1.bf16.msra.mxu0 %v1601
        %1633 = vmatprep.subr.bf16.mxu0 0
        %1634 = vmatpush2.bf16.msra.mxu0 0
        %1635 = vmatprep.subr.bf16.mxu0 0
        %1636 = vmatpush2.bf16.msra.mxu0 0
        %1637 = vmatprep.subr.bf16.mxu0 0
        %1638 = vmatpush2.bf16.msra.mxu0 0
        %1639 = vmatprep.subr.bf16.mxu0 0
        %1640 = vmatpush2.bf16.msra.mxu0 0
        %1641 = vmatprep.subr.bf16.mxu0 0
        %1642 = vmatpush2.bf16.msra.mxu0 0
        %1643 = vmatprep.subr.bf16.mxu0 0
        %1644 = vmatpush2.bf16.msra.mxu0 0
        %1645 = vmatprep.subr.bf16.mxu0 0
        %1646 = vmatpush2.bf16.msra.mxu0 0
        %1647 = vmatprep.subr.bf16.mxu0 0
        %1648 = vmatpush2.bf16.msra.mxu0 0
        %1649 = vmatprep.mubr.bf16.mxu0 0
        %1650 = vmatmul.mubr.bf16.gmra.mxu0 %v1419
        %v1651 = vpop.f32.mrf.mxu0
        %v1652 = vadd.f32 %v1547, %v1651
        %v1653 = vpop.f32.mrf.mxu0
        %v1654 = vpop.f32.mrf.mxu0
        %v1655 = vadd.f32 %v1550, %v1654
        %v1656 = vpop.f32.mrf.mxu0
        %1657 = vmatprep.mubr.bf16.mxu0 0
        %1658 = vmatmul.mubr.bf16.gmra.mxu0 %v1420
        %v1659 = vpop.f32.mrf.mxu0
        %v1660 = vadd.f32 %v1555, %v1659
        %v1661 = vpop.f32.mrf.mxu0
        %v1662 = vpop.f32.mrf.mxu0
        %v1663 = vadd.f32 %v1558, %v1662
        %v1664 = vpop.f32.mrf.mxu0
        %1665 = vmatprep.mubr.bf16.mxu0 0
        %1666 = vmatmul.mubr.bf16.gmra.mxu0 %v1421
        %v1667 = vpop.f32.mrf.mxu0
        %v1668 = vadd.f32 %v1563, %v1667
        %v1669 = vpop.f32.mrf.mxu0
        %v1670 = vpop.f32.mrf.mxu0
        %v1671 = vadd.f32 %v1566, %v1670
        %v1672 = vpop.f32.mrf.mxu0
        %1673 = vdwg.mxu0
        %v1674 = vld [vmem:[#allocation2 + $0x2] sm:$0xff]
        %v1675 = vld [vmem:[#allocation2 + $0xa] sm:$0xff]
        %v1676 = vld [vmem:[#allocation2 + $0x12] sm:$0xff]
        %v1677 = vld [vmem:[#allocation2 + $0x1a] sm:$0xff]
        %v1678 = vld [vmem:[#allocation2 + $0x22] sm:$0xff]
        %v1679 = vld [vmem:[#allocation2 + $0x2a] sm:$0x3f]
        %v1680 = vpack.c.bf16 %v1675, %v1674
        %v1681 = vpack.c.bf16 %v1677, %v1676
        %v1682 = vpack.c.bf16 %v1679, %v1678
        %s1683 = scalar_lea.vmem [#allocation4], 128
        %v1684 = vld [vmem:[%s1683] sm:$0xf]
        %v1685 = vld [vmem:[%s1683 + $0x4] sm:$0xf]
        %v1686 = vld [vmem:[%s1683 + $0x8] sm:$0xf]
        %v1687 = vld [vmem:[%s1683 + $0xc] sm:$0xf]
        %v1688 = vld [vmem:[%s1683 + $0x10] sm:$0xf]
        %v1689 = vld [vmem:[%s1683 + $0x14] sm:$0xf]
        %v1690 = vld [vmem:[%s1683 + $0x18] sm:$0xf]
        %v1691 = vld [vmem:[%s1683 + $0x1c] sm:$0xf]
        %v1692 = vld [vmem:[%s1683 + $0x20] sm:$0xf]
        %v1693 = vld [vmem:[%s1683 + $0x24] sm:$0xf]
        %v1694 = vld [vmem:[%s1683 + $0x28] sm:$0xf]
        %v1695 = vld [vmem:[%s1683 + $0x2c] sm:$0xf]
        %v1696 = vld [vmem:[%s1683 + $0x30] sm:$0xf]
        %v1697 = vld [vmem:[%s1683 + $0x34] sm:$0xf]
        %v1698 = vld [vmem:[%s1683 + $0x38] sm:$0xf]
        %v1699 = vld [vmem:[%s1683 + $0x3c] sm:$0xf]
        %v1716 = vunpack.c.l.b16 %v1684
        %v1717 = vunpack.c.l.b16 %v1685
        %v1718 = vunpack.c.l.b16 %v1686
        %v1719 = vunpack.c.l.b16 %v1687
        %v1720 = vunpack.c.l.b16 %v1688
        %v1721 = vunpack.c.l.b16 %v1689
        %v1722 = vunpack.c.l.b16 %v1690
        %v1723 = vunpack.c.l.b16 %v1691
        %v1724 = vunpack.c.l.b16 %v1692
        %v1725 = vunpack.c.l.b16 %v1693
        %v1726 = vunpack.c.l.b16 %v1694
        %v1727 = vunpack.c.l.b16 %v1695
        %v1728 = vunpack.c.l.b16 %v1696
        %v1729 = vunpack.c.l.b16 %v1697
        %v1730 = vunpack.c.l.b16 %v1698
        %v1731 = vunpack.c.l.b16 %v1699
        %v1732 = vpack.c.b16 %v1717, %v1716
        %v1733 = vpack.c.b16 %v1719, %v1718
        %v1734 = vpack.c.b16 %v1721, %v1720
        %v1735 = vpack.c.b16 %v1723, %v1722
        %v1736 = vpack.c.b16 %v1725, %v1724
        %v1737 = vpack.c.b16 %v1727, %v1726
        %v1738 = vpack.c.b16 %v1729, %v1728
        %v1739 = vpack.c.b16 %v1731, %v1730
        %1748 = vmatprep.subr.bf16.mxu0 0
        %1749 = vmatpush1.bf16.msra.mxu0 %v1739
        %1750 = vmatprep.subr.bf16.mxu0 0
        %1751 = vmatpush1.bf16.msra.mxu0 %v1738
        %1752 = vmatprep.subr.bf16.mxu0 0
        %1753 = vmatpush1.bf16.msra.mxu0 %v1737
        %1754 = vmatprep.subr.bf16.mxu0 0
        %1755 = vmatpush1.bf16.msra.mxu0 %v1736
        %1756 = vmatprep.subr.bf16.mxu0 0
        %1757 = vmatpush1.bf16.msra.mxu0 %v1735
        %1758 = vmatprep.subr.bf16.mxu0 0
        %1759 = vmatpush1.bf16.msra.mxu0 %v1734
        %1760 = vmatprep.subr.bf16.mxu0 0
        %1761 = vmatpush1.bf16.msra.mxu0 %v1733
        %1762 = vmatprep.subr.bf16.mxu0 0
        %1763 = vmatpush1.bf16.msra.mxu0 %v1732
        %1764 = vmatprep.subr.bf16.mxu0 0
        %1765 = vmatpush2.bf16.msra.mxu0 0
        %1766 = vmatprep.subr.bf16.mxu0 0
        %1767 = vmatpush2.bf16.msra.mxu0 0
        %1768 = vmatprep.subr.bf16.mxu0 0
        %1769 = vmatpush2.bf16.msra.mxu0 0
        %1770 = vmatprep.subr.bf16.mxu0 0
        %1771 = vmatpush2.bf16.msra.mxu0 0
        %1772 = vmatprep.subr.bf16.mxu0 0
        %1773 = vmatpush2.bf16.msra.mxu0 0
        %1774 = vmatprep.subr.bf16.mxu0 0
        %1775 = vmatpush2.bf16.msra.mxu0 0
        %1776 = vmatprep.subr.bf16.mxu0 0
        %1777 = vmatpush2.bf16.msra.mxu0 0
        %1778 = vmatprep.subr.bf16.mxu0 0
        %1779 = vmatpush2.bf16.msra.mxu0 0
        %1780 = vmatprep.mubr.bf16.mxu0 0
        %1781 = vmatmul.mubr.bf16.gmra.mxu0 %v1680
        %v1782 = vpop.f32.mrf.mxu0
        %v1783 = vadd.f32 0.0, %v1782
        %v1784 = vpop.f32.mrf.mxu0
        %v1785 = vpop.f32.mrf.mxu0
        %v1786 = vadd.f32 0.0, %v1785
        %v1787 = vpop.f32.mrf.mxu0
        %1788 = vmatprep.mubr.bf16.mxu0 0
        %1789 = vmatmul.mubr.bf16.gmra.mxu0 %v1681
        %v1790 = vpop.f32.mrf.mxu0
        %v1791 = vadd.f32 0.0, %v1790
        %v1792 = vpop.f32.mrf.mxu0
        %v1793 = vpop.f32.mrf.mxu0
        %v1794 = vadd.f32 0.0, %v1793
        %v1795 = vpop.f32.mrf.mxu0
        %1796 = vmatprep.mubr.bf16.mxu0 0
        %1797 = vmatmul.mubr.bf16.gmra.mxu0 %v1682
        %v1798 = vpop.f32.mrf.mxu0
        %v1799 = vadd.f32 0.0, %v1798
        %v1800 = vpop.f32.mrf.mxu0
        %v1801 = vpop.f32.mrf.mxu0
        %v1802 = vadd.f32 0.0, %v1801
        %v1803 = vpop.f32.mrf.mxu0
        %1804 = vdwg.mxu0
        %v1805 = vadd.f32 %v1652, %v1783
        %v1806 = vadd.f32 %v1655, %v1786
        %v1807 = vadd.f32 %v1660, %v1791
        %v1808 = vadd.f32 %v1663, %v1794
        %v1809 = vadd.f32 %v1668, %v1799
        %v1810 = vadd.f32 %v1671, %v1802
        %v1811 = vld [vmem:[#allocation2 + $0xa] sm:$0xff]
        %v1812 = vld [vmem:[#allocation2 + $0x12] sm:$0xff]
        %v1813 = vld [vmem:[#allocation2 + $0x1a] sm:$0xff]
        %v1814 = vld [vmem:[#allocation2 + $0x22] sm:$0xff]
        %v1815 = vld [vmem:[#allocation2 + $0x2a] sm:$0xff]
        %v1816 = vld [vmem:[#allocation2 + $0x32] sm:$0x3f]
        %v1817 = vpack.c.bf16 %v1812, %v1811
        %v1818 = vpack.c.bf16 %v1814, %v1813
        %v1819 = vpack.c.bf16 %v1816, %v1815
        %s1820 = scalar_lea.vmem [#allocation4], 192
        %v1821 = vld [vmem:[%s1820] sm:$0xf]
        %v1822 = vld [vmem:[%s1820 + $0x4] sm:$0xf]
        %v1823 = vld [vmem:[%s1820 + $0x8] sm:$0xf]
        %v1824 = vld [vmem:[%s1820 + $0xc] sm:$0xf]
        %v1825 = vld [vmem:[%s1820 + $0x10] sm:$0xf]
        %v1826 = vld [vmem:[%s1820 + $0x14] sm:$0xf]
        %v1827 = vld [vmem:[%s1820 + $0x18] sm:$0xf]
        %v1828 = vld [vmem:[%s1820 + $0x1c] sm:$0xf]
        %v1829 = vld [vmem:[%s1820 + $0x20] sm:$0xf]
        %v1830 = vld [vmem:[%s1820 + $0x24] sm:$0xf]
        %v1831 = vld [vmem:[%s1820 + $0x28] sm:$0xf]
        %v1832 = vld [vmem:[%s1820 + $0x2c] sm:$0xf]
        %v1833 = vld [vmem:[%s1820 + $0x30] sm:$0xf]
        %v1834 = vld [vmem:[%s1820 + $0x34] sm:$0xf]
        %v1835 = vld [vmem:[%s1820 + $0x38] sm:$0xf]
        %v1836 = vld [vmem:[%s1820 + $0x3c] sm:$0xf]
        %v1853 = vunpack.c.l.b16 %v1821
        %v1854 = vunpack.c.l.b16 %v1822
        %v1855 = vunpack.c.l.b16 %v1823
        %v1856 = vunpack.c.l.b16 %v1824
        %v1857 = vunpack.c.l.b16 %v1825
        %v1858 = vunpack.c.l.b16 %v1826
        %v1859 = vunpack.c.l.b16 %v1827
        %v1860 = vunpack.c.l.b16 %v1828
        %v1861 = vunpack.c.l.b16 %v1829
        %v1862 = vunpack.c.l.b16 %v1830
        %v1863 = vunpack.c.l.b16 %v1831
        %v1864 = vunpack.c.l.b16 %v1832
        %v1865 = vunpack.c.l.b16 %v1833
        %v1866 = vunpack.c.l.b16 %v1834
        %v1867 = vunpack.c.l.b16 %v1835
        %v1868 = vunpack.c.l.b16 %v1836
        %v1869 = vpack.c.b16 %v1854, %v1853
        %v1870 = vpack.c.b16 %v1856, %v1855
        %v1871 = vpack.c.b16 %v1858, %v1857
        %v1872 = vpack.c.b16 %v1860, %v1859
        %v1873 = vpack.c.b16 %v1862, %v1861
        %v1874 = vpack.c.b16 %v1864, %v1863
        %v1875 = vpack.c.b16 %v1866, %v1865
        %v1876 = vpack.c.b16 %v1868, %v1867
        %1885 = vmatprep.subr.bf16.mxu0 0
        %1886 = vmatpush1.bf16.msra.mxu0 %v1876
        %1887 = vmatprep.subr.bf16.mxu0 0
        %1888 = vmatpush1.bf16.msra.mxu0 %v1875
        %1889 = vmatprep.subr.bf16.mxu0 0
        %1890 = vmatpush1.bf16.msra.mxu0 %v1874
        %1891 = vmatprep.subr.bf16.mxu0 0
        %1892 = vmatpush1.bf16.msra.mxu0 %v1873
        %1893 = vmatprep.subr.bf16.mxu0 0
        %1894 = vmatpush1.bf16.msra.mxu0 %v1872
        %1895 = vmatprep.subr.bf16.mxu0 0
        %1896 = vmatpush1.bf16.msra.mxu0 %v1871
        %1897 = vmatprep.subr.bf16.mxu0 0
        %1898 = vmatpush1.bf16.msra.mxu0 %v1870
        %1899 = vmatprep.subr.bf16.mxu0 0
        %1900 = vmatpush1.bf16.msra.mxu0 %v1869
        %1901 = vmatprep.subr.bf16.mxu0 0
        %1902 = vmatpush2.bf16.msra.mxu0 0
        %1903 = vmatprep.subr.bf16.mxu0 0
        %1904 = vmatpush2.bf16.msra.mxu0 0
        %1905 = vmatprep.subr.bf16.mxu0 0
        %1906 = vmatpush2.bf16.msra.mxu0 0
        %1907 = vmatprep.subr.bf16.mxu0 0
        %1908 = vmatpush2.bf16.msra.mxu0 0
        %1909 = vmatprep.subr.bf16.mxu0 0
        %1910 = vmatpush2.bf16.msra.mxu0 0
        %1911 = vmatprep.subr.bf16.mxu0 0
        %1912 = vmatpush2.bf16.msra.mxu0 0
        %1913 = vmatprep.subr.bf16.mxu0 0
        %1914 = vmatpush2.bf16.msra.mxu0 0
        %1915 = vmatprep.subr.bf16.mxu0 0
        %1916 = vmatpush2.bf16.msra.mxu0 0
        %1917 = vmatprep.mubr.bf16.mxu0 0
        %1918 = vmatmul.mubr.bf16.gmra.mxu0 %v1817
        %v1919 = vpop.f32.mrf.mxu0
        %v1920 = vadd.f32 0.0, %v1919
        %v1921 = vpop.f32.mrf.mxu0
        %v1922 = vpop.f32.mrf.mxu0
        %v1923 = vadd.f32 0.0, %v1922
        %v1924 = vpop.f32.mrf.mxu0
        %1925 = vmatprep.mubr.bf16.mxu0 0
        %1926 = vmatmul.mubr.bf16.gmra.mxu0 %v1818
        %v1927 = vpop.f32.mrf.mxu0
        %v1928 = vadd.f32 0.0, %v1927
        %v1929 = vpop.f32.mrf.mxu0
        %v1930 = vpop.f32.mrf.mxu0
        %v1931 = vadd.f32 0.0, %v1930
        %v1932 = vpop.f32.mrf.mxu0
        %1933 = vmatprep.mubr.bf16.mxu0 0
        %1934 = vmatmul.mubr.bf16.gmra.mxu0 %v1819
        %v1935 = vpop.f32.mrf.mxu0
        %v1936 = vadd.f32 0.0, %v1935
        %v1937 = vpop.f32.mrf.mxu0
        %v1938 = vpop.f32.mrf.mxu0
        %v1939 = vadd.f32 0.0, %v1938
        %v1940 = vpop.f32.mrf.mxu0
        %1941 = vdwg.mxu0
        %v1942 = vadd.f32 %v1805, %v1920
        %v1943 = vadd.f32 %v1806, %v1923
        %v1944 = vadd.f32 %v1807, %v1928
        %v1945 = vadd.f32 %v1808, %v1931
        %v1946 = vadd.f32 %v1809, %v1936
        %v1947 = vadd.f32 %v1810, %v1939
        %v1948 = vld [vmem:[#allocation2 + $0xb] sm:$0xff]
        %v1949 = vld [vmem:[#allocation2 + $0x13] sm:$0xff]
        %v1950 = vld [vmem:[#allocation2 + $0x1b] sm:$0xff]
        %v1951 = vld [vmem:[#allocation2 + $0x23] sm:$0xff]
        %v1952 = vld [vmem:[#allocation2 + $0x2b] sm:$0xff]
        %v1953 = vld [vmem:[#allocation2 + $0x33] sm:$0x3f]
        %v1954 = vpack.c.bf16 %v1949, %v1948
        %v1955 = vpack.c.bf16 %v1951, %v1950
        %v1956 = vpack.c.bf16 %v1953, %v1952
        %s1957 = scalar_lea.vmem [#allocation4], 256
        %v1958 = vld [vmem:[%s1957] sm:$0xf]
        %v1959 = vld [vmem:[%s1957 + $0x4] sm:$0xf]
        %v1960 = vld [vmem:[%s1957 + $0x8] sm:$0xf]
        %v1961 = vld [vmem:[%s1957 + $0xc] sm:$0xf]
        %v1962 = vld [vmem:[%s1957 + $0x10] sm:$0xf]
        %v1963 = vld [vmem:[%s1957 + $0x14] sm:$0xf]
        %v1964 = vld [vmem:[%s1957 + $0x18] sm:$0xf]
        %v1965 = vld [vmem:[%s1957 + $0x1c] sm:$0xf]
        %v1966 = vld [vmem:[%s1957 + $0x20] sm:$0xf]
        %v1967 = vld [vmem:[%s1957 + $0x24] sm:$0xf]
        %v1968 = vld [vmem:[%s1957 + $0x28] sm:$0xf]
        %v1969 = vld [vmem:[%s1957 + $0x2c] sm:$0xf]
        %v1970 = vld [vmem:[%s1957 + $0x30] sm:$0xf]
        %v1971 = vld [vmem:[%s1957 + $0x34] sm:$0xf]
        %v1972 = vld [vmem:[%s1957 + $0x38] sm:$0xf]
        %v1973 = vld [vmem:[%s1957 + $0x3c] sm:$0xf]
        %v1990 = vunpack.c.l.b16 %v1958
        %v1991 = vunpack.c.l.b16 %v1959
        %v1992 = vunpack.c.l.b16 %v1960
        %v1993 = vunpack.c.l.b16 %v1961
        %v1994 = vunpack.c.l.b16 %v1962
        %v1995 = vunpack.c.l.b16 %v1963
        %v1996 = vunpack.c.l.b16 %v1964
        %v1997 = vunpack.c.l.b16 %v1965
        %v1998 = vunpack.c.l.b16 %v1966
        %v1999 = vunpack.c.l.b16 %v1967
        %v2000 = vunpack.c.l.b16 %v1968
        %v2001 = vunpack.c.l.b16 %v1969
        %v2002 = vunpack.c.l.b16 %v1970
        %v2003 = vunpack.c.l.b16 %v1971
        %v2004 = vunpack.c.l.b16 %v1972
        %v2005 = vunpack.c.l.b16 %v1973
        %v2006 = vpack.c.b16 %v1991, %v1990
        %v2007 = vpack.c.b16 %v1993, %v1992
        %v2008 = vpack.c.b16 %v1995, %v1994
        %v2009 = vpack.c.b16 %v1997, %v1996
        %v2010 = vpack.c.b16 %v1999, %v1998
        %v2011 = vpack.c.b16 %v2001, %v2000
        %v2012 = vpack.c.b16 %v2003, %v2002
        %v2013 = vpack.c.b16 %v2005, %v2004
        %2022 = vmatprep.subr.bf16.mxu0 0
        %2023 = vmatpush1.bf16.msra.mxu0 %v2013
        %2024 = vmatprep.subr.bf16.mxu0 0
        %2025 = vmatpush1.bf16.msra.mxu0 %v2012
        %2026 = vmatprep.subr.bf16.mxu0 0
        %2027 = vmatpush1.bf16.msra.mxu0 %v2011
        %2028 = vmatprep.subr.bf16.mxu0 0
        %2029 = vmatpush1.bf16.msra.mxu0 %v2010
        %2030 = vmatprep.subr.bf16.mxu0 0
        %2031 = vmatpush1.bf16.msra.mxu0 %v2009
        %2032 = vmatprep.subr.bf16.mxu0 0
        %2033 = vmatpush1.bf16.msra.mxu0 %v2008
        %2034 = vmatprep.subr.bf16.mxu0 0
        %2035 = vmatpush1.bf16.msra.mxu0 %v2007
        %2036 = vmatprep.subr.bf16.mxu0 0
        %2037 = vmatpush1.bf16.msra.mxu0 %v2006
        %2038 = vmatprep.subr.bf16.mxu0 0
        %2039 = vmatpush2.bf16.msra.mxu0 0
        %2040 = vmatprep.subr.bf16.mxu0 0
        %2041 = vmatpush2.bf16.msra.mxu0 0
        %2042 = vmatprep.subr.bf16.mxu0 0
        %2043 = vmatpush2.bf16.msra.mxu0 0
        %2044 = vmatprep.subr.bf16.mxu0 0
        %2045 = vmatpush2.bf16.msra.mxu0 0
        %2046 = vmatprep.subr.bf16.mxu0 0
        %2047 = vmatpush2.bf16.msra.mxu0 0
        %2048 = vmatprep.subr.bf16.mxu0 0
        %2049 = vmatpush2.bf16.msra.mxu0 0
        %2050 = vmatprep.subr.bf16.mxu0 0
        %2051 = vmatpush2.bf16.msra.mxu0 0
        %2052 = vmatprep.subr.bf16.mxu0 0
        %2053 = vmatpush2.bf16.msra.mxu0 0
        %2054 = vmatprep.mubr.bf16.mxu0 0
        %2055 = vmatmul.mubr.bf16.gmra.mxu0 %v1954
        %v2056 = vpop.f32.mrf.mxu0
        %v2057 = vadd.f32 0.0, %v2056
        %v2058 = vpop.f32.mrf.mxu0
        %v2059 = vpop.f32.mrf.mxu0
        %v2060 = vadd.f32 0.0, %v2059
        %v2061 = vpop.f32.mrf.mxu0
        %2062 = vmatprep.mubr.bf16.mxu0 0
        %2063 = vmatmul.mubr.bf16.gmra.mxu0 %v1955
        %v2064 = vpop.f32.mrf.mxu0
        %v2065 = vadd.f32 0.0, %v2064
        %v2066 = vpop.f32.mrf.mxu0
        %v2067 = vpop.f32.mrf.mxu0
        %v2068 = vadd.f32 0.0, %v2067
        %v2069 = vpop.f32.mrf.mxu0
        %2070 = vmatprep.mubr.bf16.mxu0 0
        %2071 = vmatmul.mubr.bf16.gmra.mxu0 %v1956
        %v2072 = vpop.f32.mrf.mxu0
        %v2073 = vadd.f32 0.0, %v2072
        %v2074 = vpop.f32.mrf.mxu0
        %v2075 = vpop.f32.mrf.mxu0
        %v2076 = vadd.f32 0.0, %v2075
        %v2077 = vpop.f32.mrf.mxu0
        %2078 = vdwg.mxu0
        %v2079 = vadd.f32 %v1942, %v2057
        %v2080 = vadd.f32 %v1943, %v2060
        %v2081 = vadd.f32 %v1944, %v2065
        %v2082 = vadd.f32 %v1945, %v2068
        %v2083 = vadd.f32 %v1946, %v2073
        %v2084 = vadd.f32 %v1947, %v2076
        %v2085 = vld [vmem:[#allocation2 + $0xc] sm:$0xff]
        %v2086 = vld [vmem:[#allocation2 + $0x14] sm:$0xff]
        %v2087 = vld [vmem:[#allocation2 + $0x1c] sm:$0xff]
        %v2088 = vld [vmem:[#allocation2 + $0x24] sm:$0xff]
        %v2089 = vld [vmem:[#allocation2 + $0x2c] sm:$0xff]
        %v2090 = vld [vmem:[#allocation2 + $0x34] sm:$0x3f]
        %v2091 = vpack.c.bf16 %v2086, %v2085
        %v2092 = vpack.c.bf16 %v2088, %v2087
        %v2093 = vpack.c.bf16 %v2090, %v2089
        %s2094 = scalar_lea.vmem [#allocation4], 320
        %v2095 = vld [vmem:[%s2094] sm:$0xf]
        %v2096 = vld [vmem:[%s2094 + $0x4] sm:$0xf]
        %v2097 = vld [vmem:[%s2094 + $0x8] sm:$0xf]
        %v2098 = vld [vmem:[%s2094 + $0xc] sm:$0xf]
        %v2099 = vld [vmem:[%s2094 + $0x10] sm:$0xf]
        %v2100 = vld [vmem:[%s2094 + $0x14] sm:$0xf]
        %v2101 = vld [vmem:[%s2094 + $0x18] sm:$0xf]
        %v2102 = vld [vmem:[%s2094 + $0x1c] sm:$0xf]
        %v2103 = vld [vmem:[%s2094 + $0x20] sm:$0xf]
        %v2104 = vld [vmem:[%s2094 + $0x24] sm:$0xf]
        %v2105 = vld [vmem:[%s2094 + $0x28] sm:$0xf]
        %v2106 = vld [vmem:[%s2094 + $0x2c] sm:$0xf]
        %v2107 = vld [vmem:[%s2094 + $0x30] sm:$0xf]
        %v2108 = vld [vmem:[%s2094 + $0x34] sm:$0xf]
        %v2109 = vld [vmem:[%s2094 + $0x38] sm:$0xf]
        %v2110 = vld [vmem:[%s2094 + $0x3c] sm:$0xf]
        %v2127 = vunpack.c.l.b16 %v2095
        %v2128 = vunpack.c.l.b16 %v2096
        %v2129 = vunpack.c.l.b16 %v2097
        %v2130 = vunpack.c.l.b16 %v2098
        %v2131 = vunpack.c.l.b16 %v2099
        %v2132 = vunpack.c.l.b16 %v2100
        %v2133 = vunpack.c.l.b16 %v2101
        %v2134 = vunpack.c.l.b16 %v2102
        %v2135 = vunpack.c.l.b16 %v2103
        %v2136 = vunpack.c.l.b16 %v2104
        %v2137 = vunpack.c.l.b16 %v2105
        %v2138 = vunpack.c.l.b16 %v2106
        %v2139 = vunpack.c.l.b16 %v2107
        %v2140 = vunpack.c.l.b16 %v2108
        %v2141 = vunpack.c.l.b16 %v2109
        %v2142 = vunpack.c.l.b16 %v2110
        %v2143 = vpack.c.b16 %v2128, %v2127
        %v2144 = vpack.c.b16 %v2130, %v2129
        %v2145 = vpack.c.b16 %v2132, %v2131
        %v2146 = vpack.c.b16 %v2134, %v2133
        %v2147 = vpack.c.b16 %v2136, %v2135
        %v2148 = vpack.c.b16 %v2138, %v2137
        %v2149 = vpack.c.b16 %v2140, %v2139
        %v2150 = vpack.c.b16 %v2142, %v2141
        %2159 = vmatprep.subr.bf16.mxu0 0
        %2160 = vmatpush1.bf16.msra.mxu0 %v2150
        %2161 = vmatprep.subr.bf16.mxu0 0
        %2162 = vmatpush1.bf16.msra.mxu0 %v2149
        %2163 = vmatprep.subr.bf16.mxu0 0
        %2164 = vmatpush1.bf16.msra.mxu0 %v2148
        %2165 = vmatprep.subr.bf16.mxu0 0
        %2166 = vmatpush1.bf16.msra.mxu0 %v2147
        %2167 = vmatprep.subr.bf16.mxu0 0
        %2168 = vmatpush1.bf16.msra.mxu0 %v2146
        %2169 = vmatprep.subr.bf16.mxu0 0
        %2170 = vmatpush1.bf16.msra.mxu0 %v2145
        %2171 = vmatprep.subr.bf16.mxu0 0
        %2172 = vmatpush1.bf16.msra.mxu0 %v2144
        %2173 = vmatprep.subr.bf16.mxu0 0
        %2174 = vmatpush1.bf16.msra.mxu0 %v2143
        %2175 = vmatprep.subr.bf16.mxu0 0
        %2176 = vmatpush2.bf16.msra.mxu0 0
        %2177 = vmatprep.subr.bf16.mxu0 0
        %2178 = vmatpush2.bf16.msra.mxu0 0
        %2179 = vmatprep.subr.bf16.mxu0 0
        %2180 = vmatpush2.bf16.msra.mxu0 0
        %2181 = vmatprep.subr.bf16.mxu0 0
        %2182 = vmatpush2.bf16.msra.mxu0 0
        %2183 = vmatprep.subr.bf16.mxu0 0
        %2184 = vmatpush2.bf16.msra.mxu0 0
        %2185 = vmatprep.subr.bf16.mxu0 0
        %2186 = vmatpush2.bf16.msra.mxu0 0
        %2187 = vmatprep.subr.bf16.mxu0 0
        %2188 = vmatpush2.bf16.msra.mxu0 0
        %2189 = vmatprep.subr.bf16.mxu0 0
        %2190 = vmatpush2.bf16.msra.mxu0 0
        %2191 = vmatprep.mubr.bf16.mxu0 0
        %2192 = vmatmul.mubr.bf16.gmra.mxu0 %v2091
        %v2193 = vpop.f32.mrf.mxu0
        %v2194 = vadd.f32 0.0, %v2193
        %v2195 = vpop.f32.mrf.mxu0
        %v2196 = vpop.f32.mrf.mxu0
        %v2197 = vadd.f32 0.0, %v2196
        %v2198 = vpop.f32.mrf.mxu0
        %2199 = vmatprep.mubr.bf16.mxu0 0
        %2200 = vmatmul.mubr.bf16.gmra.mxu0 %v2092
        %v2201 = vpop.f32.mrf.mxu0
        %v2202 = vadd.f32 0.0, %v2201
        %v2203 = vpop.f32.mrf.mxu0
        %v2204 = vpop.f32.mrf.mxu0
        %v2205 = vadd.f32 0.0, %v2204
        %v2206 = vpop.f32.mrf.mxu0
        %2207 = vmatprep.mubr.bf16.mxu0 0
        %2208 = vmatmul.mubr.bf16.gmra.mxu0 %v2093
        %v2209 = vpop.f32.mrf.mxu0
        %v2210 = vadd.f32 0.0, %v2209
        %v2211 = vpop.f32.mrf.mxu0
        %v2212 = vpop.f32.mrf.mxu0
        %v2213 = vadd.f32 0.0, %v2212
        %v2214 = vpop.f32.mrf.mxu0
        %2215 = vdwg.mxu0
        %v2216 = vadd.f32 %v2079, %v2194
        %v2217 = vadd.f32 %v2080, %v2197
        %v2218 = vadd.f32 %v2081, %v2202
        %v2219 = vadd.f32 %v2082, %v2205
        %v2220 = vadd.f32 %v2083, %v2210
        %v2221 = vadd.f32 %v2084, %v2213
        %v2222 = vld [vmem:[#allocation2 + $0x14] sm:$0xff]
        %v2223 = vld [vmem:[#allocation2 + $0x1c] sm:$0xff]
        %v2224 = vld [vmem:[#allocation2 + $0x24] sm:$0xff]
        %v2225 = vld [vmem:[#allocation2 + $0x2c] sm:$0xff]
        %v2226 = vld [vmem:[#allocation2 + $0x34] sm:$0xff]
        %v2227 = vld [vmem:[#allocation2 + $0x3c] sm:$0x3f]
        %v2228 = vpack.c.bf16 %v2223, %v2222
        %v2229 = vpack.c.bf16 %v2225, %v2224
        %v2230 = vpack.c.bf16 %v2227, %v2226
        %s2231 = scalar_lea.vmem [#allocation4], 384
        %v2232 = vld [vmem:[%s2231] sm:$0xf]
        %v2233 = vld [vmem:[%s2231 + $0x4] sm:$0xf]
        %v2234 = vld [vmem:[%s2231 + $0x8] sm:$0xf]
        %v2235 = vld [vmem:[%s2231 + $0xc] sm:$0xf]
        %v2236 = vld [vmem:[%s2231 + $0x10] sm:$0xf]
        %v2237 = vld [vmem:[%s2231 + $0x14] sm:$0xf]
        %v2238 = vld [vmem:[%s2231 + $0x18] sm:$0xf]
        %v2239 = vld [vmem:[%s2231 + $0x1c] sm:$0xf]
        %v2240 = vld [vmem:[%s2231 + $0x20] sm:$0xf]
        %v2241 = vld [vmem:[%s2231 + $0x24] sm:$0xf]
        %v2242 = vld [vmem:[%s2231 + $0x28] sm:$0xf]
        %v2243 = vld [vmem:[%s2231 + $0x2c] sm:$0xf]
        %v2244 = vld [vmem:[%s2231 + $0x30] sm:$0xf]
        %v2245 = vld [vmem:[%s2231 + $0x34] sm:$0xf]
        %v2246 = vld [vmem:[%s2231 + $0x38] sm:$0xf]
        %v2247 = vld [vmem:[%s2231 + $0x3c] sm:$0xf]
        %v2264 = vunpack.c.l.b16 %v2232
        %v2265 = vunpack.c.l.b16 %v2233
        %v2266 = vunpack.c.l.b16 %v2234
        %v2267 = vunpack.c.l.b16 %v2235
        %v2268 = vunpack.c.l.b16 %v2236
        %v2269 = vunpack.c.l.b16 %v2237
        %v2270 = vunpack.c.l.b16 %v2238
        %v2271 = vunpack.c.l.b16 %v2239
        %v2272 = vunpack.c.l.b16 %v2240
        %v2273 = vunpack.c.l.b16 %v2241
        %v2274 = vunpack.c.l.b16 %v2242
        %v2275 = vunpack.c.l.b16 %v2243
        %v2276 = vunpack.c.l.b16 %v2244
        %v2277 = vunpack.c.l.b16 %v2245
        %v2278 = vunpack.c.l.b16 %v2246
        %v2279 = vunpack.c.l.b16 %v2247
        %v2280 = vpack.c.b16 %v2265, %v2264
        %v2281 = vpack.c.b16 %v2267, %v2266
        %v2282 = vpack.c.b16 %v2269, %v2268
        %v2283 = vpack.c.b16 %v2271, %v2270
        %v2284 = vpack.c.b16 %v2273, %v2272
        %v2285 = vpack.c.b16 %v2275, %v2274
        %v2286 = vpack.c.b16 %v2277, %v2276
        %v2287 = vpack.c.b16 %v2279, %v2278
        %2296 = vmatprep.subr.bf16.mxu0 0
        %2297 = vmatpush1.bf16.msra.mxu0 %v2287
        %2298 = vmatprep.subr.bf16.mxu0 0
        %2299 = vmatpush1.bf16.msra.mxu0 %v2286
        %2300 = vmatprep.subr.bf16.mxu0 0
        %2301 = vmatpush1.bf16.msra.mxu0 %v2285
        %2302 = vmatprep.subr.bf16.mxu0 0
        %2303 = vmatpush1.bf16.msra.mxu0 %v2284
        %2304 = vmatprep.subr.bf16.mxu0 0
        %2305 = vmatpush1.bf16.msra.mxu0 %v2283
        %2306 = vmatprep.subr.bf16.mxu0 0
        %2307 = vmatpush1.bf16.msra.mxu0 %v2282
        %2308 = vmatprep.subr.bf16.mxu0 0
        %2309 = vmatpush1.bf16.msra.mxu0 %v2281
        %2310 = vmatprep.subr.bf16.mxu0 0
        %2311 = vmatpush1.bf16.msra.mxu0 %v2280
        %2312 = vmatprep.subr.bf16.mxu0 0
        %2313 = vmatpush2.bf16.msra.mxu0 0
        %2314 = vmatprep.subr.bf16.mxu0 0
        %2315 = vmatpush2.bf16.msra.mxu0 0
        %2316 = vmatprep.subr.bf16.mxu0 0
        %2317 = vmatpush2.bf16.msra.mxu0 0
        %2318 = vmatprep.subr.bf16.mxu0 0
        %2319 = vmatpush2.bf16.msra.mxu0 0
        %2320 = vmatprep.subr.bf16.mxu0 0
        %2321 = vmatpush2.bf16.msra.mxu0 0
        %2322 = vmatprep.subr.bf16.mxu0 0
        %2323 = vmatpush2.bf16.msra.mxu0 0
        %2324 = vmatprep.subr.bf16.mxu0 0
        %2325 = vmatpush2.bf16.msra.mxu0 0
        %2326 = vmatprep.subr.bf16.mxu0 0
        %2327 = vmatpush2.bf16.msra.mxu0 0
        %2328 = vmatprep.mubr.bf16.mxu0 0
        %2329 = vmatmul.mubr.bf16.gmra.mxu0 %v2228
        %v2330 = vpop.f32.mrf.mxu0
        %v2331 = vadd.f32 0.0, %v2330
        %v2332 = vpop.f32.mrf.mxu0
        %v2333 = vpop.f32.mrf.mxu0
        %v2334 = vadd.f32 0.0, %v2333
        %v2335 = vpop.f32.mrf.mxu0
        %2336 = vmatprep.mubr.bf16.mxu0 0
        %2337 = vmatmul.mubr.bf16.gmra.mxu0 %v2229
        %v2338 = vpop.f32.mrf.mxu0
        %v2339 = vadd.f32 0.0, %v2338
        %v2340 = vpop.f32.mrf.mxu0
        %v2341 = vpop.f32.mrf.mxu0
        %v2342 = vadd.f32 0.0, %v2341
        %v2343 = vpop.f32.mrf.mxu0
        %2344 = vmatprep.mubr.bf16.mxu0 0
        %2345 = vmatmul.mubr.bf16.gmra.mxu0 %v2230
        %v2346 = vpop.f32.mrf.mxu0
        %v2347 = vadd.f32 0.0, %v2346
        %v2348 = vpop.f32.mrf.mxu0
        %v2349 = vpop.f32.mrf.mxu0
        %v2350 = vadd.f32 0.0, %v2349
        %v2351 = vpop.f32.mrf.mxu0
        %2352 = vdwg.mxu0
        %v2353 = vadd.f32 %v2216, %v2331
        %v2354 = vadd.f32 %v2217, %v2334
        %v2355 = vadd.f32 %v2218, %v2339
        %v2356 = vadd.f32 %v2219, %v2342
        %v2357 = vadd.f32 %v2220, %v2347
        %v2358 = vadd.f32 %v2221, %v2350
        %v2359 = vld [vmem:[#allocation2 + $0x15] sm:$0xff]
        %v2360 = vld [vmem:[#allocation2 + $0x1d] sm:$0xff]
        %v2361 = vld [vmem:[#allocation2 + $0x25] sm:$0xff]
        %v2362 = vld [vmem:[#allocation2 + $0x2d] sm:$0xff]
        %v2363 = vld [vmem:[#allocation2 + $0x35] sm:$0xff]
        %v2364 = vld [vmem:[#allocation2 + $0x3d] sm:$0x3f]
        %v2365 = vpack.c.bf16 %v2360, %v2359
        %v2366 = vpack.c.bf16 %v2362, %v2361
        %v2367 = vpack.c.bf16 %v2364, %v2363
        %s2368 = scalar_lea.vmem [#allocation4], 448
        %v2369 = vld [vmem:[%s2368] sm:$0xf]
        %v2370 = vld [vmem:[%s2368 + $0x4] sm:$0xf]
        %v2371 = vld [vmem:[%s2368 + $0x8] sm:$0xf]
        %v2372 = vld [vmem:[%s2368 + $0xc] sm:$0xf]
        %v2373 = vld [vmem:[%s2368 + $0x10] sm:$0xf]
        %v2374 = vld [vmem:[%s2368 + $0x14] sm:$0xf]
        %v2375 = vld [vmem:[%s2368 + $0x18] sm:$0xf]
        %v2376 = vld [vmem:[%s2368 + $0x1c] sm:$0xf]
        %v2377 = vld [vmem:[%s2368 + $0x20] sm:$0xf]
        %v2378 = vld [vmem:[%s2368 + $0x24] sm:$0xf]
        %v2379 = vld [vmem:[%s2368 + $0x28] sm:$0xf]
        %v2380 = vld [vmem:[%s2368 + $0x2c] sm:$0xf]
        %v2381 = vld [vmem:[%s2368 + $0x30] sm:$0xf]
        %v2382 = vld [vmem:[%s2368 + $0x34] sm:$0xf]
        %v2383 = vld [vmem:[%s2368 + $0x38] sm:$0xf]
        %v2384 = vld [vmem:[%s2368 + $0x3c] sm:$0xf]
        %v2401 = vunpack.c.l.b16 %v2369
        %v2402 = vunpack.c.l.b16 %v2370
        %v2403 = vunpack.c.l.b16 %v2371
        %v2404 = vunpack.c.l.b16 %v2372
        %v2405 = vunpack.c.l.b16 %v2373
        %v2406 = vunpack.c.l.b16 %v2374
        %v2407 = vunpack.c.l.b16 %v2375
        %v2408 = vunpack.c.l.b16 %v2376
        %v2409 = vunpack.c.l.b16 %v2377
        %v2410 = vunpack.c.l.b16 %v2378
        %v2411 = vunpack.c.l.b16 %v2379
        %v2412 = vunpack.c.l.b16 %v2380
        %v2413 = vunpack.c.l.b16 %v2381
        %v2414 = vunpack.c.l.b16 %v2382
        %v2415 = vunpack.c.l.b16 %v2383
        %v2416 = vunpack.c.l.b16 %v2384
        %v2417 = vpack.c.b16 %v2402, %v2401
        %v2418 = vpack.c.b16 %v2404, %v2403
        %v2419 = vpack.c.b16 %v2406, %v2405
        %v2420 = vpack.c.b16 %v2408, %v2407
        %v2421 = vpack.c.b16 %v2410, %v2409
        %v2422 = vpack.c.b16 %v2412, %v2411
        %v2423 = vpack.c.b16 %v2414, %v2413
        %v2424 = vpack.c.b16 %v2416, %v2415
        %2433 = vmatprep.subr.bf16.mxu0 0
        %2434 = vmatpush1.bf16.msra.mxu0 %v2424
        %2435 = vmatprep.subr.bf16.mxu0 0
        %2436 = vmatpush1.bf16.msra.mxu0 %v2423
        %2437 = vmatprep.subr.bf16.mxu0 0
        %2438 = vmatpush1.bf16.msra.mxu0 %v2422
        %2439 = vmatprep.subr.bf16.mxu0 0
        %2440 = vmatpush1.bf16.msra.mxu0 %v2421
        %2441 = vmatprep.subr.bf16.mxu0 0
        %2442 = vmatpush1.bf16.msra.mxu0 %v2420
        %2443 = vmatprep.subr.bf16.mxu0 0
        %2444 = vmatpush1.bf16.msra.mxu0 %v2419
        %2445 = vmatprep.subr.bf16.mxu0 0
        %2446 = vmatpush1.bf16.msra.mxu0 %v2418
        %2447 = vmatprep.subr.bf16.mxu0 0
        %2448 = vmatpush1.bf16.msra.mxu0 %v2417
        %2449 = vmatprep.subr.bf16.mxu0 0
        %2450 = vmatpush2.bf16.msra.mxu0 0
        %2451 = vmatprep.subr.bf16.mxu0 0
        %2452 = vmatpush2.bf16.msra.mxu0 0
        %2453 = vmatprep.subr.bf16.mxu0 0
        %2454 = vmatpush2.bf16.msra.mxu0 0
        %2455 = vmatprep.subr.bf16.mxu0 0
        %2456 = vmatpush2.bf16.msra.mxu0 0
        %2457 = vmatprep.subr.bf16.mxu0 0
        %2458 = vmatpush2.bf16.msra.mxu0 0
        %2459 = vmatprep.subr.bf16.mxu0 0
        %2460 = vmatpush2.bf16.msra.mxu0 0
        %2461 = vmatprep.subr.bf16.mxu0 0
        %2462 = vmatpush2.bf16.msra.mxu0 0
        %2463 = vmatprep.subr.bf16.mxu0 0
        %2464 = vmatpush2.bf16.msra.mxu0 0
        %2465 = vmatprep.mubr.bf16.mxu0 0
        %2466 = vmatmul.mubr.bf16.gmra.mxu0 %v2365
        %v2467 = vpop.f32.mrf.mxu0
        %v2468 = vadd.f32 0.0, %v2467
        %v2469 = vpop.f32.mrf.mxu0
        %v2470 = vpop.f32.mrf.mxu0
        %v2471 = vadd.f32 0.0, %v2470
        %v2472 = vpop.f32.mrf.mxu0
        %2473 = vmatprep.mubr.bf16.mxu0 0
        %2474 = vmatmul.mubr.bf16.gmra.mxu0 %v2366
        %v2475 = vpop.f32.mrf.mxu0
        %v2476 = vadd.f32 0.0, %v2475
        %v2477 = vpop.f32.mrf.mxu0
        %v2478 = vpop.f32.mrf.mxu0
        %v2479 = vadd.f32 0.0, %v2478
        %v2480 = vpop.f32.mrf.mxu0
        %2481 = vmatprep.mubr.bf16.mxu0 0
        %2482 = vmatmul.mubr.bf16.gmra.mxu0 %v2367
        %v2483 = vpop.f32.mrf.mxu0
        %v2484 = vadd.f32 0.0, %v2483
        %v2485 = vpop.f32.mrf.mxu0
        %v2486 = vpop.f32.mrf.mxu0
        %v2487 = vadd.f32 0.0, %v2486
        %v2488 = vpop.f32.mrf.mxu0
        %2489 = vdwg.mxu0
        %v2490 = vadd.f32 %v2353, %v2468
        %v2491 = vadd.f32 %v2354, %v2471
        %v2492 = vadd.f32 %v2355, %v2476
        %v2493 = vadd.f32 %v2356, %v2479
        %v2494 = vadd.f32 %v2357, %v2484
        %v2495 = vadd.f32 %v2358, %v2487
        %v2496 = vld [vmem:[#allocation2 + $0x16] sm:$0xff]
        %v2497 = vld [vmem:[#allocation2 + $0x1e] sm:$0xff]
        %v2498 = vld [vmem:[#allocation2 + $0x26] sm:$0xff]
        %v2499 = vld [vmem:[#allocation2 + $0x2e] sm:$0xff]
        %v2500 = vld [vmem:[#allocation2 + $0x36] sm:$0xff]
        %v2501 = vld [vmem:[#allocation2 + $0x3e] sm:$0x3f]
        %v2502 = vpack.c.bf16 %v2497, %v2496
        %v2503 = vpack.c.bf16 %v2499, %v2498
        %v2504 = vpack.c.bf16 %v2501, %v2500
        %s2505 = scalar_lea.vmem [#allocation4], 512
        %v2506 = vld [vmem:[%s2505] sm:$0xf]
        %v2507 = vld [vmem:[%s2505 + $0x4] sm:$0xf]
        %v2508 = vld [vmem:[%s2505 + $0x8] sm:$0xf]
        %v2509 = vld [vmem:[%s2505 + $0xc] sm:$0xf]
        %v2510 = vld [vmem:[%s2505 + $0x10] sm:$0xf]
        %v2511 = vld [vmem:[%s2505 + $0x14] sm:$0xf]
        %v2512 = vld [vmem:[%s2505 + $0x18] sm:$0xf]
        %v2513 = vld [vmem:[%s2505 + $0x1c] sm:$0xf]
        %v2514 = vld [vmem:[%s2505 + $0x20] sm:$0xf]
        %v2515 = vld [vmem:[%s2505 + $0x24] sm:$0xf]
        %v2516 = vld [vmem:[%s2505 + $0x28] sm:$0xf]
        %v2517 = vld [vmem:[%s2505 + $0x2c] sm:$0xf]
        %v2518 = vld [vmem:[%s2505 + $0x30] sm:$0xf]
        %v2519 = vld [vmem:[%s2505 + $0x34] sm:$0xf]
        %v2520 = vld [vmem:[%s2505 + $0x38] sm:$0xf]
        %v2521 = vld [vmem:[%s2505 + $0x3c] sm:$0xf]
        %v2538 = vunpack.c.l.b16 %v2506
        %v2539 = vunpack.c.l.b16 %v2507
        %v2540 = vunpack.c.l.b16 %v2508
        %v2541 = vunpack.c.l.b16 %v2509
        %v2542 = vunpack.c.l.b16 %v2510
        %v2543 = vunpack.c.l.b16 %v2511
        %v2544 = vunpack.c.l.b16 %v2512
        %v2545 = vunpack.c.l.b16 %v2513
        %v2546 = vunpack.c.l.b16 %v2514
        %v2547 = vunpack.c.l.b16 %v2515
        %v2548 = vunpack.c.l.b16 %v2516
        %v2549 = vunpack.c.l.b16 %v2517
        %v2550 = vunpack.c.l.b16 %v2518
        %v2551 = vunpack.c.l.b16 %v2519
        %v2552 = vunpack.c.l.b16 %v2520
        %v2553 = vunpack.c.l.b16 %v2521
        %v2554 = vpack.c.b16 %v2539, %v2538
        %v2555 = vpack.c.b16 %v2541, %v2540
        %v2556 = vpack.c.b16 %v2543, %v2542
        %v2557 = vpack.c.b16 %v2545, %v2544
        %v2558 = vpack.c.b16 %v2547, %v2546
        %v2559 = vpack.c.b16 %v2549, %v2548
        %v2560 = vpack.c.b16 %v2551, %v2550
        %v2561 = vpack.c.b16 %v2553, %v2552
        %2570 = vmatprep.subr.bf16.mxu0 0
        %2571 = vmatpush1.bf16.msra.mxu0 %v2561
        %2572 = vmatprep.subr.bf16.mxu0 0
        %2573 = vmatpush1.bf16.msra.mxu0 %v2560
        %2574 = vmatprep.subr.bf16.mxu0 0
        %2575 = vmatpush1.bf16.msra.mxu0 %v2559
        %2576 = vmatprep.subr.bf16.mxu0 0
        %2577 = vmatpush1.bf16.msra.mxu0 %v2558
        %2578 = vmatprep.subr.bf16.mxu0 0
        %2579 = vmatpush1.bf16.msra.mxu0 %v2557
        %2580 = vmatprep.subr.bf16.mxu0 0
        %2581 = vmatpush1.bf16.msra.mxu0 %v2556
        %2582 = vmatprep.subr.bf16.mxu0 0
        %2583 = vmatpush1.bf16.msra.mxu0 %v2555
        %2584 = vmatprep.subr.bf16.mxu0 0
        %2585 = vmatpush1.bf16.msra.mxu0 %v2554
        %2586 = vmatprep.subr.bf16.mxu0 0
        %2587 = vmatpush2.bf16.msra.mxu0 0
        %2588 = vmatprep.subr.bf16.mxu0 0
        %2589 = vmatpush2.bf16.msra.mxu0 0
        %2590 = vmatprep.subr.bf16.mxu0 0
        %2591 = vmatpush2.bf16.msra.mxu0 0
        %2592 = vmatprep.subr.bf16.mxu0 0
        %2593 = vmatpush2.bf16.msra.mxu0 0
        %2594 = vmatprep.subr.bf16.mxu0 0
        %2595 = vmatpush2.bf16.msra.mxu0 0
        %2596 = vmatprep.subr.bf16.mxu0 0
        %2597 = vmatpush2.bf16.msra.mxu0 0
        %2598 = vmatprep.subr.bf16.mxu0 0
        %2599 = vmatpush2.bf16.msra.mxu0 0
        %2600 = vmatprep.subr.bf16.mxu0 0
        %2601 = vmatpush2.bf16.msra.mxu0 0
        %2602 = vmatprep.mubr.bf16.mxu0 0
        %2603 = vmatmul.mubr.bf16.gmra.mxu0 %v2502
        %v2604 = vpop.f32.mrf.mxu0
        %v2605 = vadd.f32 0.0, %v2604
        %v2606 = vpop.f32.mrf.mxu0
        %v2607 = vpop.f32.mrf.mxu0
        %v2608 = vadd.f32 0.0, %v2607
        %v2609 = vpop.f32.mrf.mxu0
        %2610 = vmatprep.mubr.bf16.mxu0 0
        %2611 = vmatmul.mubr.bf16.gmra.mxu0 %v2503
        %v2612 = vpop.f32.mrf.mxu0
        %v2613 = vadd.f32 0.0, %v2612
        %v2614 = vpop.f32.mrf.mxu0
        %v2615 = vpop.f32.mrf.mxu0
        %v2616 = vadd.f32 0.0, %v2615
        %v2617 = vpop.f32.mrf.mxu0
        %2618 = vmatprep.mubr.bf16.mxu0 0
        %2619 = vmatmul.mubr.bf16.gmra.mxu0 %v2504
        %v2620 = vpop.f32.mrf.mxu0
        %v2621 = vadd.f32 0.0, %v2620
        %v2622 = vpop.f32.mrf.mxu0
        %v2623 = vpop.f32.mrf.mxu0
        %v2624 = vadd.f32 0.0, %v2623
        %v2625 = vpop.f32.mrf.mxu0
        %2626 = vdwg.mxu0
        %v2627 = vadd.f32 %v2490, %v2605
        %v2628 = vadd.f32 %v2491, %v2608
        %v2629 = vadd.f32 %v2492, %v2613
        %v2630 = vadd.f32 %v2493, %v2616
        %v2631 = vadd.f32 %v2494, %v2621
        %v2632 = vadd.f32 %v2495, %v2624
        %v2633 = vld [vmem:[%s4] sm:$0x1]
        %v2635 = vlaneseq
        %v2636 = vshrl.u32 %v2635, 7
        %v2637 = vsub.s32 0, %v2636
        %v2638 = vrot.slane %v2633, %v2637
        %v2640 = vadd.f32 %v2627, %v2638
        %v2641 = vadd.f32 %v2628, %v2638
        %v2642 = vadd.f32 %v2629, %v2638
        %v2643 = vadd.f32 %v2630, %v2638
        %v2644 = vadd.f32 %v2631, %v2638
        %v2645 = vadd.f32 %v2632, %v2638
        %v2646 = vmax.f32 %v2640, 0.0
        %v2647 = vmax.f32 %v2641, 0.0
        %v2648 = vmax.f32 %v2642, 0.0
        %v2649 = vmax.f32 %v2643, 0.0
        %v2650 = vmax.f32 %v2644, 0.0
        %v2651 = vmax.f32 %v2645, 0.0
        %2652 = vst [vmem:[#allocation3] sm:$0xff] %v2646
        %2653 = vst [vmem:[#allocation3 + $0x8] sm:$0xff] %v2647
        %2654 = vst [vmem:[#allocation3 + $0x10] sm:$0xff] %v2648
        %2655 = vst [vmem:[#allocation3 + $0x18] sm:$0xff] %v2649
        %2656 = vst [vmem:[#allocation3 + $0x20] sm:$0xff] %v2650
        %2657 = vst [vmem:[#allocation3 + $0x28] sm:$0x3f] %v2651
        %v2658 = vld [vmem:[#allocation3] sm:$0x1]
        %v2659 = vld [vmem:[#allocation3 + $0x1] sm:$0x1]
        %v2660 = vld [vmem:[#allocation3 + $0x2] sm:$0x1]
        %v2661 = vld [vmem:[#allocation3 + $0x3] sm:$0x1]
        %v2662 = vld [vmem:[#allocation3 + $0x4] sm:$0x1]
        %v2663 = vld [vmem:[#allocation3 + $0x5] sm:$0x1]
        %v2664 = vld [vmem:[#allocation3 + $0xa] sm:$0x1]
        %v2665 = vld [vmem:[#allocation3 + $0xb] sm:$0x1]
        %v2666 = vld [vmem:[#allocation3 + $0xc] sm:$0x1]
        %v2667 = vld [vmem:[#allocation3 + $0xd] sm:$0x1]
        %v2668 = vld [vmem:[#allocation3 + $0xe] sm:$0x1]
        %v2669 = vld [vmem:[#allocation3 + $0xf] sm:$0x1]
        %v2670 = vld [vmem:[#allocation3 + $0x14] sm:$0x1]
        %v2671 = vld [vmem:[#allocation3 + $0x15] sm:$0x1]
        %v2672 = vld [vmem:[#allocation3 + $0x16] sm:$0x1]
        %v2673 = vld [vmem:[#allocation3 + $0x17] sm:$0x1]
        %v2674 = vld [vmem:[#allocation3 + $0x18] sm:$0x1]
        %v2675 = vld [vmem:[#allocation3 + $0x19] sm:$0x1]
        %v2676 = vld [vmem:[#allocation3 + $0x1e] sm:$0x1]
        %v2677 = vld [vmem:[#allocation3 + $0x1f] sm:$0x1]
        %v2678 = vld [vmem:[#allocation3 + $0x20] sm:$0x1]
        %v2679 = vld [vmem:[#allocation3 + $0x21] sm:$0x1]
        %v2680 = vld [vmem:[#allocation3 + $0x22] sm:$0x1]
        %v2681 = vld [vmem:[#allocation3 + $0x23] sm:$0x1]
        %v2682 = vld [vmem:[#allocation3 + $0x28] sm:$0x1]
        %v2683 = vld [vmem:[#allocation3 + $0x29] sm:$0x1]
        %v2684 = vld [vmem:[#allocation3 + $0x2a] sm:$0x1]
        %v2685 = vld [vmem:[#allocation3 + $0x2b] sm:$0x1]
        %v2686 = vld [vmem:[#allocation3 + $0x2c] sm:$0x1]
        %v2687 = vld [vmem:[#allocation3 + $0x2d] sm:$0x1]
        %v2688 = vpack.c.bf16 %v2658, %v2658
        %v2689 = vpack.c.bf16 %v2659, %v2659
        %v2690 = vpack.c.bf16 %v2660, %v2660
        %v2691 = vpack.c.bf16 %v2661, %v2661
        %v2692 = vpack.c.bf16 %v2662, %v2662
        %v2693 = vpack.c.bf16 %v2663, %v2663
        %v2694 = vpack.c.bf16 %v2664, %v2664
        %v2695 = vpack.c.bf16 %v2665, %v2665
        %v2696 = vpack.c.bf16 %v2666, %v2666
        %v2697 = vpack.c.bf16 %v2667, %v2667
        %v2698 = vpack.c.bf16 %v2668, %v2668
        %v2699 = vpack.c.bf16 %v2669, %v2669
        %v2700 = vpack.c.bf16 %v2670, %v2670
        %v2701 = vpack.c.bf16 %v2671, %v2671
        %v2702 = vpack.c.bf16 %v2672, %v2672
        %v2703 = vpack.c.bf16 %v2673, %v2673
        %v2704 = vpack.c.bf16 %v2674, %v2674
        %v2705 = vpack.c.bf16 %v2675, %v2675
        %v2706 = vpack.c.bf16 %v2676, %v2676
        %v2707 = vpack.c.bf16 %v2677, %v2677
        %v2708 = vpack.c.bf16 %v2678, %v2678
        %v2709 = vpack.c.bf16 %v2679, %v2679
        %v2710 = vpack.c.bf16 %v2680, %v2680
        %v2711 = vpack.c.bf16 %v2681, %v2681
        %v2712 = vpack.c.bf16 %v2682, %v2682
        %v2713 = vpack.c.bf16 %v2683, %v2683
        %v2714 = vpack.c.bf16 %v2684, %v2684
        %v2715 = vpack.c.bf16 %v2685, %v2685
        %v2716 = vpack.c.bf16 %v2686, %v2686
        %v2717 = vpack.c.bf16 %v2687, %v2687
        %v2718 = vld [vmem:[#allocation7] sm:$0xf]
        %v2719 = vld [vmem:[#allocation7 + $0x4] sm:$0xf]
        %v2720 = vld [vmem:[#allocation7 + $0x8] sm:$0xf]
        %v2721 = vld [vmem:[#allocation7 + $0xc] sm:$0xf]
        %v2722 = vld [vmem:[#allocation7 + $0x10] sm:$0xf]
        %v2723 = vld [vmem:[#allocation7 + $0x14] sm:$0xf]
        %v2724 = vld [vmem:[#allocation7 + $0x18] sm:$0xf]
        %v2725 = vld [vmem:[#allocation7 + $0x1c] sm:$0xf]
        %v2726 = vld [vmem:[#allocation7 + $0x20] sm:$0xf]
        %v2727 = vld [vmem:[#allocation7 + $0x24] sm:$0xf]
        %v2728 = vld [vmem:[#allocation7 + $0x28] sm:$0xf]
        %v2729 = vld [vmem:[#allocation7 + $0x2c] sm:$0xf]
        %v2730 = vld [vmem:[#allocation7 + $0x30] sm:$0xf]
        %v2731 = vld [vmem:[#allocation7 + $0x34] sm:$0xf]
        %v2732 = vld [vmem:[#allocation7 + $0x38] sm:$0xf]
        %v2733 = vld [vmem:[#allocation7 + $0x3c] sm:$0xf]
        %v2734 = vld [vmem:[#allocation7 + $0x40] sm:$0xf]
        %v2735 = vld [vmem:[#allocation7 + $0x44] sm:$0xf]
        %v2736 = vld [vmem:[#allocation7 + $0x48] sm:$0xf]
        %v2737 = vld [vmem:[#allocation7 + $0x4c] sm:$0xf]
        %v2738 = vld [vmem:[#allocation7 + $0x50] sm:$0xf]
        %v2739 = vld [vmem:[#allocation7 + $0x54] sm:$0xf]
        %v2740 = vld [vmem:[#allocation7 + $0x58] sm:$0xf]
        %v2741 = vld [vmem:[#allocation7 + $0x5c] sm:$0xf]
        %v2742 = vld [vmem:[#allocation7 + $0x60] sm:$0xf]
        %v2743 = vld [vmem:[#allocation7 + $0x64] sm:$0xf]
        %v2744 = vld [vmem:[#allocation7 + $0x68] sm:$0xf]
        %v2745 = vld [vmem:[#allocation7 + $0x6c] sm:$0xf]
        %v2746 = vld [vmem:[#allocation7 + $0x70] sm:$0xf]
        %v2747 = vld [vmem:[#allocation7 + $0x74] sm:$0xf]
        %v2748 = vld [vmem:[#allocation7 + $0x78] sm:$0xf]
        %v2749 = vld [vmem:[#allocation7 + $0x7c] sm:$0xf]
        %v2750 = vld [vmem:[#allocation7 + $0x80] sm:$0xf]
        %v2751 = vld [vmem:[#allocation7 + $0x84] sm:$0xf]
        %v2752 = vld [vmem:[#allocation7 + $0x88] sm:$0xf]
        %v2753 = vld [vmem:[#allocation7 + $0x8c] sm:$0xf]
        %v2754 = vld [vmem:[#allocation7 + $0x90] sm:$0xf]
        %v2755 = vld [vmem:[#allocation7 + $0x94] sm:$0xf]
        %v2756 = vld [vmem:[#allocation7 + $0x98] sm:$0xf]
        %v2757 = vld [vmem:[#allocation7 + $0x9c] sm:$0xf]
        %v2758 = vld [vmem:[#allocation7 + $0xa0] sm:$0xf]
        %v2759 = vld [vmem:[#allocation7 + $0xa4] sm:$0xf]
        %v2760 = vld [vmem:[#allocation7 + $0xa8] sm:$0xf]
        %v2761 = vld [vmem:[#allocation7 + $0xac] sm:$0xf]
        %v2762 = vld [vmem:[#allocation7 + $0xb0] sm:$0xf]
        %v2763 = vld [vmem:[#allocation7 + $0xb4] sm:$0xf]
        %v2764 = vld [vmem:[#allocation7 + $0xb8] sm:$0xf]
        %v2765 = vld [vmem:[#allocation7 + $0xbc] sm:$0xf]
        %v2766 = vld [vmem:[#allocation7 + $0xc0] sm:$0xf]
        %v2767 = vld [vmem:[#allocation7 + $0xc4] sm:$0xf]
        %v2768 = vld [vmem:[#allocation7 + $0xc8] sm:$0xf]
        %v2769 = vld [vmem:[#allocation7 + $0xcc] sm:$0xf]
        %v2770 = vld [vmem:[#allocation7 + $0xd0] sm:$0xf]
        %v2771 = vld [vmem:[#allocation7 + $0xd4] sm:$0xf]
        %v2772 = vld [vmem:[#allocation7 + $0xd8] sm:$0xf]
        %v2773 = vld [vmem:[#allocation7 + $0xdc] sm:$0xf]
        %v2774 = vld [vmem:[#allocation7 + $0xe0] sm:$0xf]
        %v2775 = vld [vmem:[#allocation7 + $0xe4] sm:$0xf]
        %v2776 = vld [vmem:[#allocation7 + $0xe8] sm:$0xf]
        %v2777 = vld [vmem:[#allocation7 + $0xec] sm:$0xf]
        %v2778 = vld [vmem:[#allocation7 + $0xf0] sm:$0xf]
        %v2779 = vld [vmem:[#allocation7 + $0xf4] sm:$0xf]
        %v2780 = vld [vmem:[#allocation7 + $0xf8] sm:$0xf]
        %v2781 = vld [vmem:[#allocation7 + $0xfc] sm:$0xf]
        %v2782 = vld [vmem:[#allocation7 + $0x100] sm:$0xf]
        %v2783 = vld [vmem:[#allocation7 + $0x104] sm:$0xf]
        %v2784 = vld [vmem:[#allocation7 + $0x108] sm:$0xf]
        %v2785 = vld [vmem:[#allocation7 + $0x10c] sm:$0xf]
        %v2786 = vld [vmem:[#allocation7 + $0x110] sm:$0xf]
        %v2787 = vld [vmem:[#allocation7 + $0x114] sm:$0xf]
        %v2788 = vld [vmem:[#allocation7 + $0x118] sm:$0xf]
        %v2789 = vld [vmem:[#allocation7 + $0x11c] sm:$0xf]
        %v2790 = vld [vmem:[#allocation7 + $0x120] sm:$0xf]
        %v2791 = vld [vmem:[#allocation7 + $0x124] sm:$0xf]
        %v2792 = vld [vmem:[#allocation7 + $0x128] sm:$0xf]
        %v2793 = vld [vmem:[#allocation7 + $0x12c] sm:$0xf]
        %v2794 = vld [vmem:[#allocation7 + $0x130] sm:$0xf]
        %v2795 = vld [vmem:[#allocation7 + $0x134] sm:$0xf]
        %v2796 = vld [vmem:[#allocation7 + $0x138] sm:$0xf]
        %v2797 = vld [vmem:[#allocation7 + $0x13c] sm:$0xf]
        %v2798 = vld [vmem:[#allocation7 + $0x140] sm:$0xf]
        %v2799 = vld [vmem:[#allocation7 + $0x144] sm:$0xf]
        %v2800 = vld [vmem:[#allocation7 + $0x148] sm:$0xf]
        %v2801 = vld [vmem:[#allocation7 + $0x14c] sm:$0xf]
        %v2802 = vld [vmem:[#allocation7 + $0x150] sm:$0xf]
        %v2803 = vld [vmem:[#allocation7 + $0x154] sm:$0xf]
        %v2804 = vld [vmem:[#allocation7 + $0x158] sm:$0xf]
        %v2805 = vld [vmem:[#allocation7 + $0x15c] sm:$0xf]
        %v2806 = vld [vmem:[#allocation7 + $0x160] sm:$0xf]
        %v2807 = vld [vmem:[#allocation7 + $0x164] sm:$0xf]
        %v2808 = vld [vmem:[#allocation7 + $0x168] sm:$0xf]
        %v2809 = vld [vmem:[#allocation7 + $0x16c] sm:$0xf]
        %v2810 = vld [vmem:[#allocation7 + $0x170] sm:$0xf]
        %v2811 = vld [vmem:[#allocation7 + $0x174] sm:$0xf]
        %v2812 = vld [vmem:[#allocation7 + $0x178] sm:$0xf]
        %v2813 = vld [vmem:[#allocation7 + $0x17c] sm:$0xf]
        %v2814 = vld [vmem:[#allocation7 + $0x180] sm:$0xf]
        %v2815 = vld [vmem:[#allocation7 + $0x184] sm:$0xf]
        %v2816 = vld [vmem:[#allocation7 + $0x188] sm:$0xf]
        %v2817 = vld [vmem:[#allocation7 + $0x18c] sm:$0xf]
        %v2818 = vld [vmem:[#allocation7 + $0x190] sm:$0xf]
        %v2819 = vld [vmem:[#allocation7 + $0x194] sm:$0xf]
        %v2820 = vld [vmem:[#allocation7 + $0x198] sm:$0xf]
        %v2821 = vld [vmem:[#allocation7 + $0x19c] sm:$0xf]
        %v2822 = vld [vmem:[#allocation7 + $0x1a0] sm:$0xf]
        %v2823 = vld [vmem:[#allocation7 + $0x1a4] sm:$0xf]
        %v2824 = vld [vmem:[#allocation7 + $0x1a8] sm:$0xf]
        %v2825 = vld [vmem:[#allocation7 + $0x1ac] sm:$0xf]
        %v2826 = vld [vmem:[#allocation7 + $0x1b0] sm:$0xf]
        %v2827 = vld [vmem:[#allocation7 + $0x1b4] sm:$0xf]
        %v2828 = vld [vmem:[#allocation7 + $0x1b8] sm:$0xf]
        %v2829 = vld [vmem:[#allocation7 + $0x1bc] sm:$0xf]
        %v2830 = vld [vmem:[#allocation7 + $0x1c0] sm:$0xf]
        %v2831 = vld [vmem:[#allocation7 + $0x1c4] sm:$0xf]
        %v2832 = vld [vmem:[#allocation7 + $0x1c8] sm:$0xf]
        %v2833 = vld [vmem:[#allocation7 + $0x1cc] sm:$0xf]
        %v2834 = vld [vmem:[#allocation7 + $0x1d0] sm:$0xf]
        %v2835 = vld [vmem:[#allocation7 + $0x1d4] sm:$0xf]
        %v2836 = vld [vmem:[#allocation7 + $0x1d8] sm:$0xf]
        %v2837 = vld [vmem:[#allocation7 + $0x1dc] sm:$0xf]
        %v2838 = vld [vmem:[#allocation7 + $0x1e0] sm:$0xf]
        %v2839 = vld [vmem:[#allocation7 + $0x1e4] sm:$0xf]
        %v2840 = vld [vmem:[#allocation7 + $0x1e8] sm:$0xf]
        %v2841 = vld [vmem:[#allocation7 + $0x1ec] sm:$0xf]
        %v2842 = vld [vmem:[#allocation7 + $0x1f0] sm:$0xf]
        %v2843 = vld [vmem:[#allocation7 + $0x1f4] sm:$0xf]
        %v2844 = vld [vmem:[#allocation7 + $0x1f8] sm:$0xf]
        %v2845 = vld [vmem:[#allocation7 + $0x1fc] sm:$0xf]
        %v2846 = vld [vmem:[#allocation7 + $0x200] sm:$0xf]
        %v2847 = vld [vmem:[#allocation7 + $0x204] sm:$0xf]
        %v2848 = vld [vmem:[#allocation7 + $0x208] sm:$0xf]
        %v2849 = vld [vmem:[#allocation7 + $0x20c] sm:$0xf]
        %v2850 = vld [vmem:[#allocation7 + $0x210] sm:$0xf]
        %v2851 = vld [vmem:[#allocation7 + $0x214] sm:$0xf]
        %v2852 = vld [vmem:[#allocation7 + $0x218] sm:$0xf]
        %v2853 = vld [vmem:[#allocation7 + $0x21c] sm:$0xf]
        %v2854 = vld [vmem:[#allocation7 + $0x220] sm:$0xf]
        %v2855 = vld [vmem:[#allocation7 + $0x224] sm:$0xf]
        %v2856 = vld [vmem:[#allocation7 + $0x228] sm:$0xf]
        %v2857 = vld [vmem:[#allocation7 + $0x22c] sm:$0xf]
        %v2858 = vld [vmem:[#allocation7 + $0x230] sm:$0xf]
        %v2859 = vld [vmem:[#allocation7 + $0x234] sm:$0xf]
        %v2860 = vld [vmem:[#allocation7 + $0x238] sm:$0xf]
        %v2861 = vld [vmem:[#allocation7 + $0x23c] sm:$0xf]
        %v2862 = vld [vmem:[#allocation7 + $0x240] sm:$0xf]
        %v2863 = vld [vmem:[#allocation7 + $0x244] sm:$0xf]
        %v2864 = vld [vmem:[#allocation7 + $0x248] sm:$0xf]
        %v2865 = vld [vmem:[#allocation7 + $0x24c] sm:$0xf]
        %v2866 = vld [vmem:[#allocation7 + $0x250] sm:$0xf]
        %v2867 = vld [vmem:[#allocation7 + $0x254] sm:$0xf]
        %v2868 = vld [vmem:[#allocation7 + $0x258] sm:$0xf]
        %v2869 = vld [vmem:[#allocation7 + $0x25c] sm:$0xf]
        %v2870 = vld [vmem:[#allocation7 + $0x260] sm:$0xf]
        %v2871 = vld [vmem:[#allocation7 + $0x264] sm:$0xf]
        %v2872 = vld [vmem:[#allocation7 + $0x268] sm:$0xf]
        %v2873 = vld [vmem:[#allocation7 + $0x26c] sm:$0xf]
        %v2874 = vld [vmem:[#allocation7 + $0x270] sm:$0xf]
        %v2875 = vld [vmem:[#allocation7 + $0x274] sm:$0xf]
        %v2876 = vld [vmem:[#allocation7 + $0x278] sm:$0xf]
        %v2877 = vld [vmem:[#allocation7 + $0x27c] sm:$0xf]
        %v2878 = vld [vmem:[#allocation7 + $0x280] sm:$0xf]
        %v2879 = vld [vmem:[#allocation7 + $0x284] sm:$0xf]
        %v2880 = vld [vmem:[#allocation7 + $0x288] sm:$0xf]
        %v2881 = vld [vmem:[#allocation7 + $0x28c] sm:$0xf]
        %v2882 = vld [vmem:[#allocation7 + $0x290] sm:$0xf]
        %v2883 = vld [vmem:[#allocation7 + $0x294] sm:$0xf]
        %v2884 = vld [vmem:[#allocation7 + $0x298] sm:$0xf]
        %v2885 = vld [vmem:[#allocation7 + $0x29c] sm:$0xf]
        %v2886 = vld [vmem:[#allocation7 + $0x2a0] sm:$0xf]
        %v2887 = vld [vmem:[#allocation7 + $0x2a4] sm:$0xf]
        %v2888 = vld [vmem:[#allocation7 + $0x2a8] sm:$0xf]
        %v2889 = vld [vmem:[#allocation7 + $0x2ac] sm:$0xf]
        %v2890 = vld [vmem:[#allocation7 + $0x2b0] sm:$0xf]
        %v2891 = vld [vmem:[#allocation7 + $0x2b4] sm:$0xf]
        %v2892 = vld [vmem:[#allocation7 + $0x2b8] sm:$0xf]
        %v2893 = vld [vmem:[#allocation7 + $0x2bc] sm:$0xf]
        %v2894 = vld [vmem:[#allocation7 + $0x2c0] sm:$0xf]
        %v2895 = vld [vmem:[#allocation7 + $0x2c4] sm:$0xf]
        %v2896 = vld [vmem:[#allocation7 + $0x2c8] sm:$0xf]
        %v2897 = vld [vmem:[#allocation7 + $0x2cc] sm:$0xf]
        %v2898 = vld [vmem:[#allocation7 + $0x2d0] sm:$0xf]
        %v2899 = vld [vmem:[#allocation7 + $0x2d4] sm:$0xf]
        %v2900 = vld [vmem:[#allocation7 + $0x2d8] sm:$0xf]
        %v2901 = vld [vmem:[#allocation7 + $0x2dc] sm:$0xf]
        %v2902 = vld [vmem:[#allocation7 + $0x2e0] sm:$0xf]
        %v2903 = vld [vmem:[#allocation7 + $0x2e4] sm:$0xf]
        %v2904 = vld [vmem:[#allocation7 + $0x2e8] sm:$0xf]
        %v2905 = vld [vmem:[#allocation7 + $0x2ec] sm:$0xf]
        %v2906 = vld [vmem:[#allocation7 + $0x2f0] sm:$0xf]
        %v2907 = vld [vmem:[#allocation7 + $0x2f4] sm:$0xf]
        %v2908 = vld [vmem:[#allocation7 + $0x2f8] sm:$0xf]
        %v2909 = vld [vmem:[#allocation7 + $0x2fc] sm:$0xf]
        %v2910 = vld [vmem:[#allocation7 + $0x300] sm:$0xf]
        %v2911 = vld [vmem:[#allocation7 + $0x304] sm:$0xf]
        %v2912 = vld [vmem:[#allocation7 + $0x308] sm:$0xf]
        %v2913 = vld [vmem:[#allocation7 + $0x30c] sm:$0xf]
        %v2914 = vld [vmem:[#allocation7 + $0x310] sm:$0xf]
        %v2915 = vld [vmem:[#allocation7 + $0x314] sm:$0xf]
        %v2916 = vld [vmem:[#allocation7 + $0x318] sm:$0xf]
        %v2917 = vld [vmem:[#allocation7 + $0x31c] sm:$0xf]
        %v2918 = vld [vmem:[#allocation7 + $0x320] sm:$0xf]
        %v2919 = vld [vmem:[#allocation7 + $0x324] sm:$0xf]
        %v2920 = vld [vmem:[#allocation7 + $0x328] sm:$0xf]
        %v2921 = vld [vmem:[#allocation7 + $0x32c] sm:$0xf]
        %v2922 = vld [vmem:[#allocation7 + $0x330] sm:$0xf]
        %v2923 = vld [vmem:[#allocation7 + $0x334] sm:$0xf]
        %v2924 = vld [vmem:[#allocation7 + $0x338] sm:$0xf]
        %v2925 = vld [vmem:[#allocation7 + $0x33c] sm:$0xf]
        %v2926 = vld [vmem:[#allocation7 + $0x340] sm:$0xf]
        %v2927 = vld [vmem:[#allocation7 + $0x344] sm:$0xf]
        %v2928 = vld [vmem:[#allocation7 + $0x348] sm:$0xf]
        %v2929 = vld [vmem:[#allocation7 + $0x34c] sm:$0xf]
        %v2930 = vld [vmem:[#allocation7 + $0x350] sm:$0xf]
        %v2931 = vld [vmem:[#allocation7 + $0x354] sm:$0xf]
        %v2932 = vld [vmem:[#allocation7 + $0x358] sm:$0xf]
        %v2933 = vld [vmem:[#allocation7 + $0x35c] sm:$0xf]
        %v2934 = vld [vmem:[#allocation7 + $0x360] sm:$0xf]
        %v2935 = vld [vmem:[#allocation7 + $0x364] sm:$0xf]
        %v2936 = vld [vmem:[#allocation7 + $0x368] sm:$0xf]
        %v2937 = vld [vmem:[#allocation7 + $0x36c] sm:$0xf]
        %v2938 = vld [vmem:[#allocation7 + $0x370] sm:$0xf]
        %v2939 = vld [vmem:[#allocation7 + $0x374] sm:$0xf]
        %v2940 = vld [vmem:[#allocation7 + $0x378] sm:$0xf]
        %v2941 = vld [vmem:[#allocation7 + $0x37c] sm:$0xf]
        %v2942 = vld [vmem:[#allocation7 + $0x380] sm:$0xf]
        %v2943 = vld [vmem:[#allocation7 + $0x384] sm:$0xf]
        %v2944 = vld [vmem:[#allocation7 + $0x388] sm:$0xf]
        %v2945 = vld [vmem:[#allocation7 + $0x38c] sm:$0xf]
        %v2946 = vld [vmem:[#allocation7 + $0x390] sm:$0xf]
        %v2947 = vld [vmem:[#allocation7 + $0x394] sm:$0xf]
        %v2948 = vld [vmem:[#allocation7 + $0x398] sm:$0xf]
        %v2949 = vld [vmem:[#allocation7 + $0x39c] sm:$0xf]
        %v2950 = vld [vmem:[#allocation7 + $0x3a0] sm:$0xf]
        %v2951 = vld [vmem:[#allocation7 + $0x3a4] sm:$0xf]
        %v2952 = vld [vmem:[#allocation7 + $0x3a8] sm:$0xf]
        %v2953 = vld [vmem:[#allocation7 + $0x3ac] sm:$0xf]
        %v2954 = vld [vmem:[#allocation7 + $0x3b0] sm:$0xf]
        %v2955 = vld [vmem:[#allocation7 + $0x3b4] sm:$0xf]
        %v2956 = vld [vmem:[#allocation7 + $0x3b8] sm:$0xf]
        %v2957 = vld [vmem:[#allocation7 + $0x3bc] sm:$0xf]
        %v2958 = vld [vmem:[#allocation7 + $0x3c0] sm:$0xf]
        %v2959 = vld [vmem:[#allocation7 + $0x3c4] sm:$0xf]
        %v2960 = vld [vmem:[#allocation7 + $0x3c8] sm:$0xf]
        %v2961 = vld [vmem:[#allocation7 + $0x3cc] sm:$0xf]
        %v2962 = vld [vmem:[#allocation7 + $0x3d0] sm:$0xf]
        %v2963 = vld [vmem:[#allocation7 + $0x3d4] sm:$0xf]
        %v2964 = vld [vmem:[#allocation7 + $0x3d8] sm:$0xf]
        %v2965 = vld [vmem:[#allocation7 + $0x3dc] sm:$0xf]
        %v2966 = vld [vmem:[#allocation7 + $0x3e0] sm:$0xf]
        %v2967 = vld [vmem:[#allocation7 + $0x3e4] sm:$0xf]
        %v2968 = vld [vmem:[#allocation7 + $0x3e8] sm:$0xf]
        %v2969 = vld [vmem:[#allocation7 + $0x3ec] sm:$0xf]
        %v2970 = vld [vmem:[#allocation7 + $0x3f0] sm:$0xf]
        %v2971 = vld [vmem:[#allocation7 + $0x3f4] sm:$0xf]
        %v2972 = vld [vmem:[#allocation7 + $0x3f8] sm:$0xf]
        %v2973 = vld [vmem:[#allocation7 + $0x3fc] sm:$0xf]
        %v2974 = vld [vmem:[#allocation7 + $0x400] sm:$0xf]
        %v2975 = vld [vmem:[#allocation7 + $0x404] sm:$0xf]
        %v2976 = vld [vmem:[#allocation7 + $0x408] sm:$0xf]
        %v2977 = vld [vmem:[#allocation7 + $0x40c] sm:$0xf]
        %v2978 = vld [vmem:[#allocation7 + $0x410] sm:$0xf]
        %v2979 = vld [vmem:[#allocation7 + $0x414] sm:$0xf]
        %v2980 = vld [vmem:[#allocation7 + $0x418] sm:$0xf]
        %v2981 = vld [vmem:[#allocation7 + $0x41c] sm:$0xf]
        %v2982 = vld [vmem:[#allocation7 + $0x420] sm:$0xf]
        %v2983 = vld [vmem:[#allocation7 + $0x424] sm:$0xf]
        %v2984 = vld [vmem:[#allocation7 + $0x428] sm:$0xf]
        %v2985 = vld [vmem:[#allocation7 + $0x42c] sm:$0xf]
        %v2986 = vld [vmem:[#allocation7 + $0x430] sm:$0xf]
        %v2987 = vld [vmem:[#allocation7 + $0x434] sm:$0xf]
        %v2988 = vld [vmem:[#allocation7 + $0x438] sm:$0xf]
        %v2989 = vld [vmem:[#allocation7 + $0x43c] sm:$0xf]
        %v2990 = vld [vmem:[#allocation7 + $0x440] sm:$0xf]
        %v2991 = vld [vmem:[#allocation7 + $0x444] sm:$0xf]
        %v2992 = vld [vmem:[#allocation7 + $0x448] sm:$0xf]
        %v2993 = vld [vmem:[#allocation7 + $0x44c] sm:$0xf]
        %v2994 = vld [vmem:[#allocation7 + $0x450] sm:$0xf]
        %v2995 = vld [vmem:[#allocation7 + $0x454] sm:$0xf]
        %v2996 = vld [vmem:[#allocation7 + $0x458] sm:$0xf]
        %v2997 = vld [vmem:[#allocation7 + $0x45c] sm:$0xf]
        %v2998 = vld [vmem:[#allocation7 + $0x460] sm:$0xf]
        %v2999 = vld [vmem:[#allocation7 + $0x464] sm:$0xf]
        %v3000 = vld [vmem:[#allocation7 + $0x468] sm:$0xf]
        %v3001 = vld [vmem:[#allocation7 + $0x46c] sm:$0xf]
        %v3002 = vld [vmem:[#allocation7 + $0x470] sm:$0xf]
        %v3003 = vld [vmem:[#allocation7 + $0x474] sm:$0xf]
        %v3004 = vld [vmem:[#allocation7 + $0x478] sm:$0xf]
        %v3005 = vld [vmem:[#allocation7 + $0x47c] sm:$0xf]
        %v3006 = vld [vmem:[#allocation7 + $0x480] sm:$0xf]
        %v3007 = vld [vmem:[#allocation7 + $0x484] sm:$0xf]
        %v3008 = vld [vmem:[#allocation7 + $0x488] sm:$0xf]
        %v3009 = vld [vmem:[#allocation7 + $0x48c] sm:$0xf]
        %v3010 = vld [vmem:[#allocation7 + $0x490] sm:$0xf]
        %v3011 = vld [vmem:[#allocation7 + $0x494] sm:$0xf]
        %v3012 = vld [vmem:[#allocation7 + $0x498] sm:$0xf]
        %v3013 = vld [vmem:[#allocation7 + $0x49c] sm:$0xf]
        %v3014 = vld [vmem:[#allocation7 + $0x4a0] sm:$0xf]
        %v3015 = vld [vmem:[#allocation7 + $0x4a4] sm:$0xf]
        %v3016 = vld [vmem:[#allocation7 + $0x4a8] sm:$0xf]
        %v3017 = vld [vmem:[#allocation7 + $0x4ac] sm:$0xf]
        %v3018 = vld [vmem:[#allocation7 + $0x4b0] sm:$0xf]
        %v3019 = vld [vmem:[#allocation7 + $0x4b4] sm:$0xf]
        %v3020 = vld [vmem:[#allocation7 + $0x4b8] sm:$0xf]
        %v3021 = vld [vmem:[#allocation7 + $0x4bc] sm:$0xf]
        %v3022 = vld [vmem:[#allocation7 + $0x4c0] sm:$0xf]
        %v3023 = vld [vmem:[#allocation7 + $0x4c4] sm:$0xf]
        %v3024 = vld [vmem:[#allocation7 + $0x4c8] sm:$0xf]
        %v3025 = vld [vmem:[#allocation7 + $0x4cc] sm:$0xf]
        %v3026 = vld [vmem:[#allocation7 + $0x4d0] sm:$0xf]
        %v3027 = vld [vmem:[#allocation7 + $0x4d4] sm:$0xf]
        %v3028 = vld [vmem:[#allocation7 + $0x4d8] sm:$0xf]
        %v3029 = vld [vmem:[#allocation7 + $0x4dc] sm:$0xf]
        %v3030 = vld [vmem:[#allocation7 + $0x4e0] sm:$0xf]
        %v3031 = vld [vmem:[#allocation7 + $0x4e4] sm:$0xf]
        %v3032 = vld [vmem:[#allocation7 + $0x4e8] sm:$0xf]
        %v3033 = vld [vmem:[#allocation7 + $0x4ec] sm:$0xf]
        %v3034 = vld [vmem:[#allocation7 + $0x4f0] sm:$0xf]
        %v3035 = vld [vmem:[#allocation7 + $0x4f4] sm:$0xf]
        %v3036 = vld [vmem:[#allocation7 + $0x4f8] sm:$0xf]
        %v3037 = vld [vmem:[#allocation7 + $0x4fc] sm:$0xf]
        %v3038 = vld [vmem:[#allocation7 + $0x500] sm:$0xf]
        %v3039 = vld [vmem:[#allocation7 + $0x504] sm:$0xf]
        %v3040 = vld [vmem:[#allocation7 + $0x508] sm:$0xf]
        %v3041 = vld [vmem:[#allocation7 + $0x50c] sm:$0xf]
        %v3042 = vld [vmem:[#allocation7 + $0x510] sm:$0xf]
        %v3043 = vld [vmem:[#allocation7 + $0x514] sm:$0xf]
        %v3044 = vld [vmem:[#allocation7 + $0x518] sm:$0xf]
        %v3045 = vld [vmem:[#allocation7 + $0x51c] sm:$0xf]
        %v3046 = vld [vmem:[#allocation7 + $0x520] sm:$0xf]
        %v3047 = vld [vmem:[#allocation7 + $0x524] sm:$0xf]
        %v3048 = vld [vmem:[#allocation7 + $0x528] sm:$0xf]
        %v3049 = vld [vmem:[#allocation7 + $0x52c] sm:$0xf]
        %v3050 = vld [vmem:[#allocation7 + $0x530] sm:$0xf]
        %v3051 = vld [vmem:[#allocation7 + $0x534] sm:$0xf]
        %v3052 = vld [vmem:[#allocation7 + $0x538] sm:$0xf]
        %v3053 = vld [vmem:[#allocation7 + $0x53c] sm:$0xf]
        %v3054 = vld [vmem:[#allocation7 + $0x540] sm:$0xf]
        %v3055 = vld [vmem:[#allocation7 + $0x544] sm:$0xf]
        %v3056 = vld [vmem:[#allocation7 + $0x548] sm:$0xf]
        %v3057 = vld [vmem:[#allocation7 + $0x54c] sm:$0xf]
        %v3058 = vld [vmem:[#allocation7 + $0x550] sm:$0xf]
        %v3059 = vld [vmem:[#allocation7 + $0x554] sm:$0xf]
        %v3060 = vld [vmem:[#allocation7 + $0x558] sm:$0xf]
        %v3061 = vld [vmem:[#allocation7 + $0x55c] sm:$0xf]
        %v3062 = vld [vmem:[#allocation7 + $0x560] sm:$0xf]
        %v3063 = vld [vmem:[#allocation7 + $0x564] sm:$0xf]
        %v3064 = vld [vmem:[#allocation7 + $0x568] sm:$0xf]
        %v3065 = vld [vmem:[#allocation7 + $0x56c] sm:$0xf]
        %v3066 = vld [vmem:[#allocation7 + $0x570] sm:$0xf]
        %v3067 = vld [vmem:[#allocation7 + $0x574] sm:$0xf]
        %v3068 = vld [vmem:[#allocation7 + $0x578] sm:$0xf]
        %v3069 = vld [vmem:[#allocation7 + $0x57c] sm:$0xf]
        %v3070 = vld [vmem:[#allocation7 + $0x580] sm:$0xf]
        %v3071 = vld [vmem:[#allocation7 + $0x584] sm:$0xf]
        %v3072 = vld [vmem:[#allocation7 + $0x588] sm:$0xf]
        %v3073 = vld [vmem:[#allocation7 + $0x58c] sm:$0xf]
        %v3074 = vld [vmem:[#allocation7 + $0x590] sm:$0xf]
        %v3075 = vld [vmem:[#allocation7 + $0x594] sm:$0xf]
        %v3076 = vld [vmem:[#allocation7 + $0x598] sm:$0xf]
        %v3077 = vld [vmem:[#allocation7 + $0x59c] sm:$0xf]
        %v3078 = vld [vmem:[#allocation7 + $0x5a0] sm:$0xf]
        %v3079 = vld [vmem:[#allocation7 + $0x5a4] sm:$0xf]
        %v3080 = vld [vmem:[#allocation7 + $0x5a8] sm:$0xf]
        %v3081 = vld [vmem:[#allocation7 + $0x5ac] sm:$0xf]
        %v3082 = vld [vmem:[#allocation7 + $0x5b0] sm:$0xf]
        %v3083 = vld [vmem:[#allocation7 + $0x5b4] sm:$0xf]
        %v3084 = vld [vmem:[#allocation7 + $0x5b8] sm:$0xf]
        %v3085 = vld [vmem:[#allocation7 + $0x5bc] sm:$0xf]
        %v3086 = vld [vmem:[#allocation7 + $0x5c0] sm:$0xf]
        %v3087 = vld [vmem:[#allocation7 + $0x5c4] sm:$0xf]
        %v3088 = vld [vmem:[#allocation7 + $0x5c8] sm:$0xf]
        %v3089 = vld [vmem:[#allocation7 + $0x5cc] sm:$0xf]
        %v3090 = vld [vmem:[#allocation7 + $0x5d0] sm:$0xf]
        %v3091 = vld [vmem:[#allocation7 + $0x5d4] sm:$0xf]
        %v3092 = vld [vmem:[#allocation7 + $0x5d8] sm:$0xf]
        %v3093 = vld [vmem:[#allocation7 + $0x5dc] sm:$0xf]
        %v3094 = vld [vmem:[#allocation7 + $0x5e0] sm:$0xf]
        %v3095 = vld [vmem:[#allocation7 + $0x5e4] sm:$0xf]
        %v3096 = vld [vmem:[#allocation7 + $0x5e8] sm:$0xf]
        %v3097 = vld [vmem:[#allocation7 + $0x5ec] sm:$0xf]
        %v3098 = vld [vmem:[#allocation7 + $0x5f0] sm:$0xf]
        %v3099 = vld [vmem:[#allocation7 + $0x5f4] sm:$0xf]
        %v3100 = vld [vmem:[#allocation7 + $0x5f8] sm:$0xf]
        %v3101 = vld [vmem:[#allocation7 + $0x5fc] sm:$0xf]
        %v3102 = vld [vmem:[#allocation7 + $0x600] sm:$0xf]
        %v3103 = vld [vmem:[#allocation7 + $0x604] sm:$0xf]
        %v3104 = vld [vmem:[#allocation7 + $0x608] sm:$0xf]
        %v3105 = vld [vmem:[#allocation7 + $0x60c] sm:$0xf]
        %v3106 = vld [vmem:[#allocation7 + $0x610] sm:$0xf]
        %v3107 = vld [vmem:[#allocation7 + $0x614] sm:$0xf]
        %v3108 = vld [vmem:[#allocation7 + $0x618] sm:$0xf]
        %v3109 = vld [vmem:[#allocation7 + $0x61c] sm:$0xf]
        %v3110 = vld [vmem:[#allocation7 + $0x620] sm:$0xf]
        %v3111 = vld [vmem:[#allocation7 + $0x624] sm:$0xf]
        %v3112 = vld [vmem:[#allocation7 + $0x628] sm:$0xf]
        %v3113 = vld [vmem:[#allocation7 + $0x62c] sm:$0xf]
        %v3114 = vld [vmem:[#allocation7 + $0x630] sm:$0xf]
        %v3115 = vld [vmem:[#allocation7 + $0x634] sm:$0xf]
        %v3116 = vld [vmem:[#allocation7 + $0x638] sm:$0xf]
        %v3117 = vld [vmem:[#allocation7 + $0x63c] sm:$0xf]
        %v3118 = vld [vmem:[#allocation7 + $0x640] sm:$0xf]
        %v3119 = vld [vmem:[#allocation7 + $0x644] sm:$0xf]
        %v3120 = vld [vmem:[#allocation7 + $0x648] sm:$0xf]
        %v3121 = vld [vmem:[#allocation7 + $0x64c] sm:$0xf]
        %v3122 = vld [vmem:[#allocation7 + $0x650] sm:$0xf]
        %v3123 = vld [vmem:[#allocation7 + $0x654] sm:$0xf]
        %v3124 = vld [vmem:[#allocation7 + $0x658] sm:$0xf]
        %v3125 = vld [vmem:[#allocation7 + $0x65c] sm:$0xf]
        %v3126 = vld [vmem:[#allocation7 + $0x660] sm:$0xf]
        %v3127 = vld [vmem:[#allocation7 + $0x664] sm:$0xf]
        %v3128 = vld [vmem:[#allocation7 + $0x668] sm:$0xf]
        %v3129 = vld [vmem:[#allocation7 + $0x66c] sm:$0xf]
        %v3130 = vld [vmem:[#allocation7 + $0x670] sm:$0xf]
        %v3131 = vld [vmem:[#allocation7 + $0x674] sm:$0xf]
        %v3132 = vld [vmem:[#allocation7 + $0x678] sm:$0xf]
        %v3133 = vld [vmem:[#allocation7 + $0x67c] sm:$0xf]
        %v3134 = vld [vmem:[#allocation7 + $0x680] sm:$0xf]
        %v3135 = vld [vmem:[#allocation7 + $0x684] sm:$0xf]
        %v3136 = vld [vmem:[#allocation7 + $0x688] sm:$0xf]
        %v3137 = vld [vmem:[#allocation7 + $0x68c] sm:$0xf]
        %v3138 = vld [vmem:[#allocation7 + $0x690] sm:$0xf]
        %v3139 = vld [vmem:[#allocation7 + $0x694] sm:$0xf]
        %v3140 = vld [vmem:[#allocation7 + $0x698] sm:$0xf]
        %v3141 = vld [vmem:[#allocation7 + $0x69c] sm:$0xf]
        %v3142 = vld [vmem:[#allocation7 + $0x6a0] sm:$0xf]
        %v3143 = vld [vmem:[#allocation7 + $0x6a4] sm:$0xf]
        %v3144 = vld [vmem:[#allocation7 + $0x6a8] sm:$0xf]
        %v3145 = vld [vmem:[#allocation7 + $0x6ac] sm:$0xf]
        %v3146 = vld [vmem:[#allocation7 + $0x6b0] sm:$0xf]
        %v3147 = vld [vmem:[#allocation7 + $0x6b4] sm:$0xf]
        %v3148 = vld [vmem:[#allocation7 + $0x6b8] sm:$0xf]
        %v3149 = vld [vmem:[#allocation7 + $0x6bc] sm:$0xf]
        %v3150 = vld [vmem:[#allocation7 + $0x6c0] sm:$0xf]
        %v3151 = vld [vmem:[#allocation7 + $0x6c4] sm:$0xf]
        %v3152 = vld [vmem:[#allocation7 + $0x6c8] sm:$0xf]
        %v3153 = vld [vmem:[#allocation7 + $0x6cc] sm:$0xf]
        %v3154 = vld [vmem:[#allocation7 + $0x6d0] sm:$0xf]
        %v3155 = vld [vmem:[#allocation7 + $0x6d4] sm:$0xf]
        %v3156 = vld [vmem:[#allocation7 + $0x6d8] sm:$0xf]
        %v3157 = vld [vmem:[#allocation7 + $0x6dc] sm:$0xf]
        %v3158 = vld [vmem:[#allocation7 + $0x6e0] sm:$0xf]
        %v3159 = vld [vmem:[#allocation7 + $0x6e4] sm:$0xf]
        %v3160 = vld [vmem:[#allocation7 + $0x6e8] sm:$0xf]
        %v3161 = vld [vmem:[#allocation7 + $0x6ec] sm:$0xf]
        %v3162 = vld [vmem:[#allocation7 + $0x6f0] sm:$0xf]
        %v3163 = vld [vmem:[#allocation7 + $0x6f4] sm:$0xf]
        %v3164 = vld [vmem:[#allocation7 + $0x6f8] sm:$0xf]
        %v3165 = vld [vmem:[#allocation7 + $0x6fc] sm:$0xf]
        %v3166 = vld [vmem:[#allocation7 + $0x700] sm:$0xf]
        %v3167 = vld [vmem:[#allocation7 + $0x704] sm:$0xf]
        %v3168 = vld [vmem:[#allocation7 + $0x708] sm:$0xf]
        %v3169 = vld [vmem:[#allocation7 + $0x70c] sm:$0xf]
        %v3170 = vld [vmem:[#allocation7 + $0x710] sm:$0xf]
        %v3171 = vld [vmem:[#allocation7 + $0x714] sm:$0xf]
        %v3172 = vld [vmem:[#allocation7 + $0x718] sm:$0xf]
        %v3173 = vld [vmem:[#allocation7 + $0x71c] sm:$0xf]
        %v3174 = vld [vmem:[#allocation7 + $0x720] sm:$0xf]
        %v3175 = vld [vmem:[#allocation7 + $0x724] sm:$0xf]
        %v3176 = vld [vmem:[#allocation7 + $0x728] sm:$0xf]
        %v3177 = vld [vmem:[#allocation7 + $0x72c] sm:$0xf]
        %v3178 = vld [vmem:[#allocation7 + $0x730] sm:$0xf]
        %v3179 = vld [vmem:[#allocation7 + $0x734] sm:$0xf]
        %v3180 = vld [vmem:[#allocation7 + $0x738] sm:$0xf]
        %v3181 = vld [vmem:[#allocation7 + $0x73c] sm:$0xf]
        %v3182 = vld [vmem:[#allocation7 + $0x740] sm:$0xf]
        %v3183 = vld [vmem:[#allocation7 + $0x744] sm:$0xf]
        %v3184 = vld [vmem:[#allocation7 + $0x748] sm:$0xf]
        %v3185 = vld [vmem:[#allocation7 + $0x74c] sm:$0xf]
        %v3186 = vld [vmem:[#allocation7 + $0x750] sm:$0xf]
        %v3187 = vld [vmem:[#allocation7 + $0x754] sm:$0xf]
        %v3188 = vld [vmem:[#allocation7 + $0x758] sm:$0xf]
        %v3189 = vld [vmem:[#allocation7 + $0x75c] sm:$0xf]
        %v3190 = vld [vmem:[#allocation7 + $0x760] sm:$0xf]
        %v3191 = vld [vmem:[#allocation7 + $0x764] sm:$0xf]
        %v3192 = vld [vmem:[#allocation7 + $0x768] sm:$0xf]
        %v3193 = vld [vmem:[#allocation7 + $0x76c] sm:$0xf]
        %v3194 = vld [vmem:[#allocation7 + $0x770] sm:$0xf]
        %v3195 = vld [vmem:[#allocation7 + $0x774] sm:$0xf]
        %v3196 = vld [vmem:[#allocation7 + $0x778] sm:$0xf]
        %v3197 = vld [vmem:[#allocation7 + $0x77c] sm:$0xf]
        %v3198 = vld [vmem:[%s6] sm:$0x1]
        %v3679 = vunpack.c.l.b16 %v2718
        %v3680 = vunpack.c.l.b16 %v2719
        %v3681 = vunpack.c.l.b16 %v2720
        %v3682 = vunpack.c.l.b16 %v2721
        %v3683 = vunpack.c.l.b16 %v2722
        %v3684 = vunpack.c.l.b16 %v2723
        %v3685 = vunpack.c.l.b16 %v2724
        %v3686 = vunpack.c.l.b16 %v2725
        %v3687 = vunpack.c.l.b16 %v2726
        %v3688 = vunpack.c.l.b16 %v2727
        %v3689 = vunpack.c.l.b16 %v2728
        %v3690 = vunpack.c.l.b16 %v2729
        %v3691 = vunpack.c.l.b16 %v2730
        %v3692 = vunpack.c.l.b16 %v2731
        %v3693 = vunpack.c.l.b16 %v2732
        %v3694 = vunpack.c.l.b16 %v2733
        %v3695 = vunpack.c.l.b16 %v2734
        %v3696 = vunpack.c.l.b16 %v2735
        %v3697 = vunpack.c.l.b16 %v2736
        %v3698 = vunpack.c.l.b16 %v2737
        %v3699 = vunpack.c.l.b16 %v2738
        %v3700 = vunpack.c.l.b16 %v2739
        %v3701 = vunpack.c.l.b16 %v2740
        %v3702 = vunpack.c.l.b16 %v2741
        %v3703 = vunpack.c.l.b16 %v2742
        %v3704 = vunpack.c.l.b16 %v2743
        %v3705 = vunpack.c.l.b16 %v2744
        %v3706 = vunpack.c.l.b16 %v2745
        %v3707 = vunpack.c.l.b16 %v2746
        %v3708 = vunpack.c.l.b16 %v2747
        %v3709 = vunpack.c.l.b16 %v2748
        %v3710 = vunpack.c.l.b16 %v2749
        %v3711 = vunpack.c.l.b16 %v2750
        %v3712 = vunpack.c.l.b16 %v2751
        %v3713 = vunpack.c.l.b16 %v2752
        %v3714 = vunpack.c.l.b16 %v2753
        %v3715 = vunpack.c.l.b16 %v2754
        %v3716 = vunpack.c.l.b16 %v2755
        %v3717 = vunpack.c.l.b16 %v2756
        %v3718 = vunpack.c.l.b16 %v2757
        %v3719 = vunpack.c.l.b16 %v2758
        %v3720 = vunpack.c.l.b16 %v2759
        %v3721 = vunpack.c.l.b16 %v2760
        %v3722 = vunpack.c.l.b16 %v2761
        %v3723 = vunpack.c.l.b16 %v2762
        %v3724 = vunpack.c.l.b16 %v2763
        %v3725 = vunpack.c.l.b16 %v2764
        %v3726 = vunpack.c.l.b16 %v2765
        %v3727 = vunpack.c.l.b16 %v2766
        %v3728 = vunpack.c.l.b16 %v2767
        %v3729 = vunpack.c.l.b16 %v2768
        %v3730 = vunpack.c.l.b16 %v2769
        %v3731 = vunpack.c.l.b16 %v2770
        %v3732 = vunpack.c.l.b16 %v2771
        %v3733 = vunpack.c.l.b16 %v2772
        %v3734 = vunpack.c.l.b16 %v2773
        %v3735 = vunpack.c.l.b16 %v2774
        %v3736 = vunpack.c.l.b16 %v2775
        %v3737 = vunpack.c.l.b16 %v2776
        %v3738 = vunpack.c.l.b16 %v2777
        %v3739 = vunpack.c.l.b16 %v2778
        %v3740 = vunpack.c.l.b16 %v2779
        %v3741 = vunpack.c.l.b16 %v2780
        %v3742 = vunpack.c.l.b16 %v2781
        %v3743 = vunpack.c.l.b16 %v2782
        %v3744 = vunpack.c.l.b16 %v2783
        %v3745 = vunpack.c.l.b16 %v2784
        %v3746 = vunpack.c.l.b16 %v2785
        %v3747 = vunpack.c.l.b16 %v2786
        %v3748 = vunpack.c.l.b16 %v2787
        %v3749 = vunpack.c.l.b16 %v2788
        %v3750 = vunpack.c.l.b16 %v2789
        %v3751 = vunpack.c.l.b16 %v2790
        %v3752 = vunpack.c.l.b16 %v2791
        %v3753 = vunpack.c.l.b16 %v2792
        %v3754 = vunpack.c.l.b16 %v2793
        %v3755 = vunpack.c.l.b16 %v2794
        %v3756 = vunpack.c.l.b16 %v2795
        %v3757 = vunpack.c.l.b16 %v2796
        %v3758 = vunpack.c.l.b16 %v2797
        %v3759 = vunpack.c.l.b16 %v2798
        %v3760 = vunpack.c.l.b16 %v2799
        %v3761 = vunpack.c.l.b16 %v2800
        %v3762 = vunpack.c.l.b16 %v2801
        %v3763 = vunpack.c.l.b16 %v2802
        %v3764 = vunpack.c.l.b16 %v2803
        %v3765 = vunpack.c.l.b16 %v2804
        %v3766 = vunpack.c.l.b16 %v2805
        %v3767 = vunpack.c.l.b16 %v2806
        %v3768 = vunpack.c.l.b16 %v2807
        %v3769 = vunpack.c.l.b16 %v2808
        %v3770 = vunpack.c.l.b16 %v2809
        %v3771 = vunpack.c.l.b16 %v2810
        %v3772 = vunpack.c.l.b16 %v2811
        %v3773 = vunpack.c.l.b16 %v2812
        %v3774 = vunpack.c.l.b16 %v2813
        %v3775 = vunpack.c.l.b16 %v2814
        %v3776 = vunpack.c.l.b16 %v2815
        %v3777 = vunpack.c.l.b16 %v2816
        %v3778 = vunpack.c.l.b16 %v2817
        %v3779 = vunpack.c.l.b16 %v2818
        %v3780 = vunpack.c.l.b16 %v2819
        %v3781 = vunpack.c.l.b16 %v2820
        %v3782 = vunpack.c.l.b16 %v2821
        %v3783 = vunpack.c.l.b16 %v2822
        %v3784 = vunpack.c.l.b16 %v2823
        %v3785 = vunpack.c.l.b16 %v2824
        %v3786 = vunpack.c.l.b16 %v2825
        %v3787 = vunpack.c.l.b16 %v2826
        %v3788 = vunpack.c.l.b16 %v2827
        %v3789 = vunpack.c.l.b16 %v2828
        %v3790 = vunpack.c.l.b16 %v2829
        %v3791 = vunpack.c.l.b16 %v2830
        %v3792 = vunpack.c.l.b16 %v2831
        %v3793 = vunpack.c.l.b16 %v2832
        %v3794 = vunpack.c.l.b16 %v2833
        %v3795 = vunpack.c.l.b16 %v2834
        %v3796 = vunpack.c.l.b16 %v2835
        %v3797 = vunpack.c.l.b16 %v2836
        %v3798 = vunpack.c.l.b16 %v2837
        %v3799 = vunpack.c.l.b16 %v2838
        %v3800 = vunpack.c.l.b16 %v2839
        %v3801 = vunpack.c.l.b16 %v2840
        %v3802 = vunpack.c.l.b16 %v2841
        %v3803 = vunpack.c.l.b16 %v2842
        %v3804 = vunpack.c.l.b16 %v2843
        %v3805 = vunpack.c.l.b16 %v2844
        %v3806 = vunpack.c.l.b16 %v2845
        %v3807 = vunpack.c.l.b16 %v2846
        %v3808 = vunpack.c.l.b16 %v2847
        %v3809 = vunpack.c.l.b16 %v2848
        %v3810 = vunpack.c.l.b16 %v2849
        %v3811 = vunpack.c.l.b16 %v2850
        %v3812 = vunpack.c.l.b16 %v2851
        %v3813 = vunpack.c.l.b16 %v2852
        %v3814 = vunpack.c.l.b16 %v2853
        %v3815 = vunpack.c.l.b16 %v2854
        %v3816 = vunpack.c.l.b16 %v2855
        %v3817 = vunpack.c.l.b16 %v2856
        %v3818 = vunpack.c.l.b16 %v2857
        %v3819 = vunpack.c.l.b16 %v2858
        %v3820 = vunpack.c.l.b16 %v2859
        %v3821 = vunpack.c.l.b16 %v2860
        %v3822 = vunpack.c.l.b16 %v2861
        %v3823 = vunpack.c.l.b16 %v2862
        %v3824 = vunpack.c.l.b16 %v2863
        %v3825 = vunpack.c.l.b16 %v2864
        %v3826 = vunpack.c.l.b16 %v2865
        %v3827 = vunpack.c.l.b16 %v2866
        %v3828 = vunpack.c.l.b16 %v2867
        %v3829 = vunpack.c.l.b16 %v2868
        %v3830 = vunpack.c.l.b16 %v2869
        %v3831 = vunpack.c.l.b16 %v2870
        %v3832 = vunpack.c.l.b16 %v2871
        %v3833 = vunpack.c.l.b16 %v2872
        %v3834 = vunpack.c.l.b16 %v2873
        %v3835 = vunpack.c.l.b16 %v2874
        %v3836 = vunpack.c.l.b16 %v2875
        %v3837 = vunpack.c.l.b16 %v2876
        %v3838 = vunpack.c.l.b16 %v2877
        %v3839 = vunpack.c.l.b16 %v2878
        %v3840 = vunpack.c.l.b16 %v2879
        %v3841 = vunpack.c.l.b16 %v2880
        %v3842 = vunpack.c.l.b16 %v2881
        %v3843 = vunpack.c.l.b16 %v2882
        %v3844 = vunpack.c.l.b16 %v2883
        %v3845 = vunpack.c.l.b16 %v2884
        %v3846 = vunpack.c.l.b16 %v2885
        %v3847 = vunpack.c.l.b16 %v2886
        %v3848 = vunpack.c.l.b16 %v2887
        %v3849 = vunpack.c.l.b16 %v2888
        %v3850 = vunpack.c.l.b16 %v2889
        %v3851 = vunpack.c.l.b16 %v2890
        %v3852 = vunpack.c.l.b16 %v2891
        %v3853 = vunpack.c.l.b16 %v2892
        %v3854 = vunpack.c.l.b16 %v2893
        %v3855 = vunpack.c.l.b16 %v2894
        %v3856 = vunpack.c.l.b16 %v2895
        %v3857 = vunpack.c.l.b16 %v2896
        %v3858 = vunpack.c.l.b16 %v2897
        %v3859 = vunpack.c.l.b16 %v2898
        %v3860 = vunpack.c.l.b16 %v2899
        %v3861 = vunpack.c.l.b16 %v2900
        %v3862 = vunpack.c.l.b16 %v2901
        %v3863 = vunpack.c.l.b16 %v2902
        %v3864 = vunpack.c.l.b16 %v2903
        %v3865 = vunpack.c.l.b16 %v2904
        %v3866 = vunpack.c.l.b16 %v2905
        %v3867 = vunpack.c.l.b16 %v2906
        %v3868 = vunpack.c.l.b16 %v2907
        %v3869 = vunpack.c.l.b16 %v2908
        %v3870 = vunpack.c.l.b16 %v2909
        %v3871 = vunpack.c.l.b16 %v2910
        %v3872 = vunpack.c.l.b16 %v2911
        %v3873 = vunpack.c.l.b16 %v2912
        %v3874 = vunpack.c.l.b16 %v2913
        %v3875 = vunpack.c.l.b16 %v2914
        %v3876 = vunpack.c.l.b16 %v2915
        %v3877 = vunpack.c.l.b16 %v2916
        %v3878 = vunpack.c.l.b16 %v2917
        %v3879 = vunpack.c.l.b16 %v2918
        %v3880 = vunpack.c.l.b16 %v2919
        %v3881 = vunpack.c.l.b16 %v2920
        %v3882 = vunpack.c.l.b16 %v2921
        %v3883 = vunpack.c.l.b16 %v2922
        %v3884 = vunpack.c.l.b16 %v2923
        %v3885 = vunpack.c.l.b16 %v2924
        %v3886 = vunpack.c.l.b16 %v2925
        %v3887 = vunpack.c.l.b16 %v2926
        %v3888 = vunpack.c.l.b16 %v2927
        %v3889 = vunpack.c.l.b16 %v2928
        %v3890 = vunpack.c.l.b16 %v2929
        %v3891 = vunpack.c.l.b16 %v2930
        %v3892 = vunpack.c.l.b16 %v2931
        %v3893 = vunpack.c.l.b16 %v2932
        %v3894 = vunpack.c.l.b16 %v2933
        %v3895 = vunpack.c.l.b16 %v2934
        %v3896 = vunpack.c.l.b16 %v2935
        %v3897 = vunpack.c.l.b16 %v2936
        %v3898 = vunpack.c.l.b16 %v2937
        %v3899 = vunpack.c.l.b16 %v2938
        %v3900 = vunpack.c.l.b16 %v2939
        %v3901 = vunpack.c.l.b16 %v2940
        %v3902 = vunpack.c.l.b16 %v2941
        %v3903 = vunpack.c.l.b16 %v2942
        %v3904 = vunpack.c.l.b16 %v2943
        %v3905 = vunpack.c.l.b16 %v2944
        %v3906 = vunpack.c.l.b16 %v2945
        %v3907 = vunpack.c.l.b16 %v2946
        %v3908 = vunpack.c.l.b16 %v2947
        %v3909 = vunpack.c.l.b16 %v2948
        %v3910 = vunpack.c.l.b16 %v2949
        %v3911 = vunpack.c.l.b16 %v2950
        %v3912 = vunpack.c.l.b16 %v2951
        %v3913 = vunpack.c.l.b16 %v2952
        %v3914 = vunpack.c.l.b16 %v2953
        %v3915 = vunpack.c.l.b16 %v2954
        %v3916 = vunpack.c.l.b16 %v2955
        %v3917 = vunpack.c.l.b16 %v2956
        %v3918 = vunpack.c.l.b16 %v2957
        %v3919 = vunpack.c.l.b16 %v2958
        %v3920 = vunpack.c.l.b16 %v2959
        %v3921 = vunpack.c.l.b16 %v2960
        %v3922 = vunpack.c.l.b16 %v2961
        %v3923 = vunpack.c.l.b16 %v2962
        %v3924 = vunpack.c.l.b16 %v2963
        %v3925 = vunpack.c.l.b16 %v2964
        %v3926 = vunpack.c.l.b16 %v2965
        %v3927 = vunpack.c.l.b16 %v2966
        %v3928 = vunpack.c.l.b16 %v2967
        %v3929 = vunpack.c.l.b16 %v2968
        %v3930 = vunpack.c.l.b16 %v2969
        %v3931 = vunpack.c.l.b16 %v2970
        %v3932 = vunpack.c.l.b16 %v2971
        %v3933 = vunpack.c.l.b16 %v2972
        %v3934 = vunpack.c.l.b16 %v2973
        %v3935 = vunpack.c.l.b16 %v2974
        %v3936 = vunpack.c.l.b16 %v2975
        %v3937 = vunpack.c.l.b16 %v2976
        %v3938 = vunpack.c.l.b16 %v2977
        %v3939 = vunpack.c.l.b16 %v2978
        %v3940 = vunpack.c.l.b16 %v2979
        %v3941 = vunpack.c.l.b16 %v2980
        %v3942 = vunpack.c.l.b16 %v2981
        %v3943 = vunpack.c.l.b16 %v2982
        %v3944 = vunpack.c.l.b16 %v2983
        %v3945 = vunpack.c.l.b16 %v2984
        %v3946 = vunpack.c.l.b16 %v2985
        %v3947 = vunpack.c.l.b16 %v2986
        %v3948 = vunpack.c.l.b16 %v2987
        %v3949 = vunpack.c.l.b16 %v2988
        %v3950 = vunpack.c.l.b16 %v2989
        %v3951 = vunpack.c.l.b16 %v2990
        %v3952 = vunpack.c.l.b16 %v2991
        %v3953 = vunpack.c.l.b16 %v2992
        %v3954 = vunpack.c.l.b16 %v2993
        %v3955 = vunpack.c.l.b16 %v2994
        %v3956 = vunpack.c.l.b16 %v2995
        %v3957 = vunpack.c.l.b16 %v2996
        %v3958 = vunpack.c.l.b16 %v2997
        %v3959 = vunpack.c.l.b16 %v2998
        %v3960 = vunpack.c.l.b16 %v2999
        %v3961 = vunpack.c.l.b16 %v3000
        %v3962 = vunpack.c.l.b16 %v3001
        %v3963 = vunpack.c.l.b16 %v3002
        %v3964 = vunpack.c.l.b16 %v3003
        %v3965 = vunpack.c.l.b16 %v3004
        %v3966 = vunpack.c.l.b16 %v3005
        %v3967 = vunpack.c.l.b16 %v3006
        %v3968 = vunpack.c.l.b16 %v3007
        %v3969 = vunpack.c.l.b16 %v3008
        %v3970 = vunpack.c.l.b16 %v3009
        %v3971 = vunpack.c.l.b16 %v3010
        %v3972 = vunpack.c.l.b16 %v3011
        %v3973 = vunpack.c.l.b16 %v3012
        %v3974 = vunpack.c.l.b16 %v3013
        %v3975 = vunpack.c.l.b16 %v3014
        %v3976 = vunpack.c.l.b16 %v3015
        %v3977 = vunpack.c.l.b16 %v3016
        %v3978 = vunpack.c.l.b16 %v3017
        %v3979 = vunpack.c.l.b16 %v3018
        %v3980 = vunpack.c.l.b16 %v3019
        %v3981 = vunpack.c.l.b16 %v3020
        %v3982 = vunpack.c.l.b16 %v3021
        %v3983 = vunpack.c.l.b16 %v3022
        %v3984 = vunpack.c.l.b16 %v3023
        %v3985 = vunpack.c.l.b16 %v3024
        %v3986 = vunpack.c.l.b16 %v3025
        %v3987 = vunpack.c.l.b16 %v3026
        %v3988 = vunpack.c.l.b16 %v3027
        %v3989 = vunpack.c.l.b16 %v3028
        %v3990 = vunpack.c.l.b16 %v3029
        %v3991 = vunpack.c.l.b16 %v3030
        %v3992 = vunpack.c.l.b16 %v3031
        %v3993 = vunpack.c.l.b16 %v3032
        %v3994 = vunpack.c.l.b16 %v3033
        %v3995 = vunpack.c.l.b16 %v3034
        %v3996 = vunpack.c.l.b16 %v3035
        %v3997 = vunpack.c.l.b16 %v3036
        %v3998 = vunpack.c.l.b16 %v3037
        %v3999 = vunpack.c.l.b16 %v3038
        %v4000 = vunpack.c.l.b16 %v3039
        %v4001 = vunpack.c.l.b16 %v3040
        %v4002 = vunpack.c.l.b16 %v3041
        %v4003 = vunpack.c.l.b16 %v3042
        %v4004 = vunpack.c.l.b16 %v3043
        %v4005 = vunpack.c.l.b16 %v3044
        %v4006 = vunpack.c.l.b16 %v3045
        %v4007 = vunpack.c.l.b16 %v3046
        %v4008 = vunpack.c.l.b16 %v3047
        %v4009 = vunpack.c.l.b16 %v3048
        %v4010 = vunpack.c.l.b16 %v3049
        %v4011 = vunpack.c.l.b16 %v3050
        %v4012 = vunpack.c.l.b16 %v3051
        %v4013 = vunpack.c.l.b16 %v3052
        %v4014 = vunpack.c.l.b16 %v3053
        %v4015 = vunpack.c.l.b16 %v3054
        %v4016 = vunpack.c.l.b16 %v3055
        %v4017 = vunpack.c.l.b16 %v3056
        %v4018 = vunpack.c.l.b16 %v3057
        %v4019 = vunpack.c.l.b16 %v3058
        %v4020 = vunpack.c.l.b16 %v3059
        %v4021 = vunpack.c.l.b16 %v3060
        %v4022 = vunpack.c.l.b16 %v3061
        %v4023 = vunpack.c.l.b16 %v3062
        %v4024 = vunpack.c.l.b16 %v3063
        %v4025 = vunpack.c.l.b16 %v3064
        %v4026 = vunpack.c.l.b16 %v3065
        %v4027 = vunpack.c.l.b16 %v3066
        %v4028 = vunpack.c.l.b16 %v3067
        %v4029 = vunpack.c.l.b16 %v3068
        %v4030 = vunpack.c.l.b16 %v3069
        %v4031 = vunpack.c.l.b16 %v3070
        %v4032 = vunpack.c.l.b16 %v3071
        %v4033 = vunpack.c.l.b16 %v3072
        %v4034 = vunpack.c.l.b16 %v3073
        %v4035 = vunpack.c.l.b16 %v3074
        %v4036 = vunpack.c.l.b16 %v3075
        %v4037 = vunpack.c.l.b16 %v3076
        %v4038 = vunpack.c.l.b16 %v3077
        %v4039 = vunpack.c.l.b16 %v3078
        %v4040 = vunpack.c.l.b16 %v3079
        %v4041 = vunpack.c.l.b16 %v3080
        %v4042 = vunpack.c.l.b16 %v3081
        %v4043 = vunpack.c.l.b16 %v3082
        %v4044 = vunpack.c.l.b16 %v3083
        %v4045 = vunpack.c.l.b16 %v3084
        %v4046 = vunpack.c.l.b16 %v3085
        %v4047 = vunpack.c.l.b16 %v3086
        %v4048 = vunpack.c.l.b16 %v3087
        %v4049 = vunpack.c.l.b16 %v3088
        %v4050 = vunpack.c.l.b16 %v3089
        %v4051 = vunpack.c.l.b16 %v3090
        %v4052 = vunpack.c.l.b16 %v3091
        %v4053 = vunpack.c.l.b16 %v3092
        %v4054 = vunpack.c.l.b16 %v3093
        %v4055 = vunpack.c.l.b16 %v3094
        %v4056 = vunpack.c.l.b16 %v3095
        %v4057 = vunpack.c.l.b16 %v3096
        %v4058 = vunpack.c.l.b16 %v3097
        %v4059 = vunpack.c.l.b16 %v3098
        %v4060 = vunpack.c.l.b16 %v3099
        %v4061 = vunpack.c.l.b16 %v3100
        %v4062 = vunpack.c.l.b16 %v3101
        %v4063 = vunpack.c.l.b16 %v3102
        %v4064 = vunpack.c.l.b16 %v3103
        %v4065 = vunpack.c.l.b16 %v3104
        %v4066 = vunpack.c.l.b16 %v3105
        %v4067 = vunpack.c.l.b16 %v3106
        %v4068 = vunpack.c.l.b16 %v3107
        %v4069 = vunpack.c.l.b16 %v3108
        %v4070 = vunpack.c.l.b16 %v3109
        %v4071 = vunpack.c.l.b16 %v3110
        %v4072 = vunpack.c.l.b16 %v3111
        %v4073 = vunpack.c.l.b16 %v3112
        %v4074 = vunpack.c.l.b16 %v3113
        %v4075 = vunpack.c.l.b16 %v3114
        %v4076 = vunpack.c.l.b16 %v3115
        %v4077 = vunpack.c.l.b16 %v3116
        %v4078 = vunpack.c.l.b16 %v3117
        %v4079 = vunpack.c.l.b16 %v3118
        %v4080 = vunpack.c.l.b16 %v3119
        %v4081 = vunpack.c.l.b16 %v3120
        %v4082 = vunpack.c.l.b16 %v3121
        %v4083 = vunpack.c.l.b16 %v3122
        %v4084 = vunpack.c.l.b16 %v3123
        %v4085 = vunpack.c.l.b16 %v3124
        %v4086 = vunpack.c.l.b16 %v3125
        %v4087 = vunpack.c.l.b16 %v3126
        %v4088 = vunpack.c.l.b16 %v3127
        %v4089 = vunpack.c.l.b16 %v3128
        %v4090 = vunpack.c.l.b16 %v3129
        %v4091 = vunpack.c.l.b16 %v3130
        %v4092 = vunpack.c.l.b16 %v3131
        %v4093 = vunpack.c.l.b16 %v3132
        %v4094 = vunpack.c.l.b16 %v3133
        %v4095 = vunpack.c.l.b16 %v3134
        %v4096 = vunpack.c.l.b16 %v3135
        %v4097 = vunpack.c.l.b16 %v3136
        %v4098 = vunpack.c.l.b16 %v3137
        %v4099 = vunpack.c.l.b16 %v3138
        %v4100 = vunpack.c.l.b16 %v3139
        %v4101 = vunpack.c.l.b16 %v3140
        %v4102 = vunpack.c.l.b16 %v3141
        %v4103 = vunpack.c.l.b16 %v3142
        %v4104 = vunpack.c.l.b16 %v3143
        %v4105 = vunpack.c.l.b16 %v3144
        %v4106 = vunpack.c.l.b16 %v3145
        %v4107 = vunpack.c.l.b16 %v3146
        %v4108 = vunpack.c.l.b16 %v3147
        %v4109 = vunpack.c.l.b16 %v3148
        %v4110 = vunpack.c.l.b16 %v3149
        %v4111 = vunpack.c.l.b16 %v3150
        %v4112 = vunpack.c.l.b16 %v3151
        %v4113 = vunpack.c.l.b16 %v3152
        %v4114 = vunpack.c.l.b16 %v3153
        %v4115 = vunpack.c.l.b16 %v3154
        %v4116 = vunpack.c.l.b16 %v3155
        %v4117 = vunpack.c.l.b16 %v3156
        %v4118 = vunpack.c.l.b16 %v3157
        %v4119 = vunpack.c.l.b16 %v3158
        %v4120 = vunpack.c.l.b16 %v3159
        %v4121 = vunpack.c.l.b16 %v3160
        %v4122 = vunpack.c.l.b16 %v3161
        %v4123 = vunpack.c.l.b16 %v3162
        %v4124 = vunpack.c.l.b16 %v3163
        %v4125 = vunpack.c.l.b16 %v3164
        %v4126 = vunpack.c.l.b16 %v3165
        %v4127 = vunpack.c.l.b16 %v3166
        %v4128 = vunpack.c.l.b16 %v3167
        %v4129 = vunpack.c.l.b16 %v3168
        %v4130 = vunpack.c.l.b16 %v3169
        %v4131 = vunpack.c.l.b16 %v3170
        %v4132 = vunpack.c.l.b16 %v3171
        %v4133 = vunpack.c.l.b16 %v3172
        %v4134 = vunpack.c.l.b16 %v3173
        %v4135 = vunpack.c.l.b16 %v3174
        %v4136 = vunpack.c.l.b16 %v3175
        %v4137 = vunpack.c.l.b16 %v3176
        %v4138 = vunpack.c.l.b16 %v3177
        %v4139 = vunpack.c.l.b16 %v3178
        %v4140 = vunpack.c.l.b16 %v3179
        %v4141 = vunpack.c.l.b16 %v3180
        %v4142 = vunpack.c.l.b16 %v3181
        %v4143 = vunpack.c.l.b16 %v3182
        %v4144 = vunpack.c.l.b16 %v3183
        %v4145 = vunpack.c.l.b16 %v3184
        %v4146 = vunpack.c.l.b16 %v3185
        %v4147 = vunpack.c.l.b16 %v3186
        %v4148 = vunpack.c.l.b16 %v3187
        %v4149 = vunpack.c.l.b16 %v3188
        %v4150 = vunpack.c.l.b16 %v3189
        %v4151 = vunpack.c.l.b16 %v3190
        %v4152 = vunpack.c.l.b16 %v3191
        %v4153 = vunpack.c.l.b16 %v3192
        %v4154 = vunpack.c.l.b16 %v3193
        %v4155 = vunpack.c.l.b16 %v3194
        %v4156 = vunpack.c.l.b16 %v3195
        %v4157 = vunpack.c.l.b16 %v3196
        %v4158 = vunpack.c.l.b16 %v3197
        %v4159 = vpack.c.b16 %v3680, %v3679
        %v4160 = vpack.c.b16 %v3682, %v3681
        %v4161 = vpack.c.b16 %v3684, %v3683
        %v4162 = vpack.c.b16 %v3686, %v3685
        %v4163 = vpack.c.b16 %v3688, %v3687
        %v4164 = vpack.c.b16 %v3690, %v3689
        %v4165 = vpack.c.b16 %v3692, %v3691
        %v4166 = vpack.c.b16 %v3694, %v3693
        %v4167 = vpack.c.b16 %v3696, %v3695
        %v4168 = vpack.c.b16 %v3698, %v3697
        %v4169 = vpack.c.b16 %v3700, %v3699
        %v4170 = vpack.c.b16 %v3702, %v3701
        %v4171 = vpack.c.b16 %v3704, %v3703
        %v4172 = vpack.c.b16 %v3706, %v3705
        %v4173 = vpack.c.b16 %v3708, %v3707
        %v4174 = vpack.c.b16 %v3710, %v3709
        %v4175 = vpack.c.b16 %v3712, %v3711
        %v4176 = vpack.c.b16 %v3714, %v3713
        %v4177 = vpack.c.b16 %v3716, %v3715
        %v4178 = vpack.c.b16 %v3718, %v3717
        %v4179 = vpack.c.b16 %v3720, %v3719
        %v4180 = vpack.c.b16 %v3722, %v3721
        %v4181 = vpack.c.b16 %v3724, %v3723
        %v4182 = vpack.c.b16 %v3726, %v3725
        %v4183 = vpack.c.b16 %v3728, %v3727
        %v4184 = vpack.c.b16 %v3730, %v3729
        %v4185 = vpack.c.b16 %v3732, %v3731
        %v4186 = vpack.c.b16 %v3734, %v3733
        %v4187 = vpack.c.b16 %v3736, %v3735
        %v4188 = vpack.c.b16 %v3738, %v3737
        %v4189 = vpack.c.b16 %v3740, %v3739
        %v4190 = vpack.c.b16 %v3742, %v3741
        %v4191 = vpack.c.b16 %v3744, %v3743
        %v4192 = vpack.c.b16 %v3746, %v3745
        %v4193 = vpack.c.b16 %v3748, %v3747
        %v4194 = vpack.c.b16 %v3750, %v3749
        %v4195 = vpack.c.b16 %v3752, %v3751
        %v4196 = vpack.c.b16 %v3754, %v3753
        %v4197 = vpack.c.b16 %v3756, %v3755
        %v4198 = vpack.c.b16 %v3758, %v3757
        %v4199 = vpack.c.b16 %v3760, %v3759
        %v4200 = vpack.c.b16 %v3762, %v3761
        %v4201 = vpack.c.b16 %v3764, %v3763
        %v4202 = vpack.c.b16 %v3766, %v3765
        %v4203 = vpack.c.b16 %v3768, %v3767
        %v4204 = vpack.c.b16 %v3770, %v3769
        %v4205 = vpack.c.b16 %v3772, %v3771
        %v4206 = vpack.c.b16 %v3774, %v3773
        %v4207 = vpack.c.b16 %v3776, %v3775
        %v4208 = vpack.c.b16 %v3778, %v3777
        %v4209 = vpack.c.b16 %v3780, %v3779
        %v4210 = vpack.c.b16 %v3782, %v3781
        %v4211 = vpack.c.b16 %v3784, %v3783
        %v4212 = vpack.c.b16 %v3786, %v3785
        %v4213 = vpack.c.b16 %v3788, %v3787
        %v4214 = vpack.c.b16 %v3790, %v3789
        %v4215 = vpack.c.b16 %v3792, %v3791
        %v4216 = vpack.c.b16 %v3794, %v3793
        %v4217 = vpack.c.b16 %v3796, %v3795
        %v4218 = vpack.c.b16 %v3798, %v3797
        %v4219 = vpack.c.b16 %v3800, %v3799
        %v4220 = vpack.c.b16 %v3802, %v3801
        %v4221 = vpack.c.b16 %v3804, %v3803
        %v4222 = vpack.c.b16 %v3806, %v3805
        %v4223 = vpack.c.b16 %v3808, %v3807
        %v4224 = vpack.c.b16 %v3810, %v3809
        %v4225 = vpack.c.b16 %v3812, %v3811
        %v4226 = vpack.c.b16 %v3814, %v3813
        %v4227 = vpack.c.b16 %v3816, %v3815
        %v4228 = vpack.c.b16 %v3818, %v3817
        %v4229 = vpack.c.b16 %v3820, %v3819
        %v4230 = vpack.c.b16 %v3822, %v3821
        %v4231 = vpack.c.b16 %v3824, %v3823
        %v4232 = vpack.c.b16 %v3826, %v3825
        %v4233 = vpack.c.b16 %v3828, %v3827
        %v4234 = vpack.c.b16 %v3830, %v3829
        %v4235 = vpack.c.b16 %v3832, %v3831
        %v4236 = vpack.c.b16 %v3834, %v3833
        %v4237 = vpack.c.b16 %v3836, %v3835
        %v4238 = vpack.c.b16 %v3838, %v3837
        %v4239 = vpack.c.b16 %v3840, %v3839
        %v4240 = vpack.c.b16 %v3842, %v3841
        %v4241 = vpack.c.b16 %v3844, %v3843
        %v4242 = vpack.c.b16 %v3846, %v3845
        %v4243 = vpack.c.b16 %v3848, %v3847
        %v4244 = vpack.c.b16 %v3850, %v3849
        %v4245 = vpack.c.b16 %v3852, %v3851
        %v4246 = vpack.c.b16 %v3854, %v3853
        %v4247 = vpack.c.b16 %v3856, %v3855
        %v4248 = vpack.c.b16 %v3858, %v3857
        %v4249 = vpack.c.b16 %v3860, %v3859
        %v4250 = vpack.c.b16 %v3862, %v3861
        %v4251 = vpack.c.b16 %v3864, %v3863
        %v4252 = vpack.c.b16 %v3866, %v3865
        %v4253 = vpack.c.b16 %v3868, %v3867
        %v4254 = vpack.c.b16 %v3870, %v3869
        %v4255 = vpack.c.b16 %v3872, %v3871
        %v4256 = vpack.c.b16 %v3874, %v3873
        %v4257 = vpack.c.b16 %v3876, %v3875
        %v4258 = vpack.c.b16 %v3878, %v3877
        %v4259 = vpack.c.b16 %v3880, %v3879
        %v4260 = vpack.c.b16 %v3882, %v3881
        %v4261 = vpack.c.b16 %v3884, %v3883
        %v4262 = vpack.c.b16 %v3886, %v3885
        %v4263 = vpack.c.b16 %v3888, %v3887
        %v4264 = vpack.c.b16 %v3890, %v3889
        %v4265 = vpack.c.b16 %v3892, %v3891
        %v4266 = vpack.c.b16 %v3894, %v3893
        %v4267 = vpack.c.b16 %v3896, %v3895
        %v4268 = vpack.c.b16 %v3898, %v3897
        %v4269 = vpack.c.b16 %v3900, %v3899
        %v4270 = vpack.c.b16 %v3902, %v3901
        %v4271 = vpack.c.b16 %v3904, %v3903
        %v4272 = vpack.c.b16 %v3906, %v3905
        %v4273 = vpack.c.b16 %v3908, %v3907
        %v4274 = vpack.c.b16 %v3910, %v3909
        %v4275 = vpack.c.b16 %v3912, %v3911
        %v4276 = vpack.c.b16 %v3914, %v3913
        %v4277 = vpack.c.b16 %v3916, %v3915
        %v4278 = vpack.c.b16 %v3918, %v3917
        %v4279 = vpack.c.b16 %v3920, %v3919
        %v4280 = vpack.c.b16 %v3922, %v3921
        %v4281 = vpack.c.b16 %v3924, %v3923
        %v4282 = vpack.c.b16 %v3926, %v3925
        %v4283 = vpack.c.b16 %v3928, %v3927
        %v4284 = vpack.c.b16 %v3930, %v3929
        %v4285 = vpack.c.b16 %v3932, %v3931
        %v4286 = vpack.c.b16 %v3934, %v3933
        %v4287 = vpack.c.b16 %v3936, %v3935
        %v4288 = vpack.c.b16 %v3938, %v3937
        %v4289 = vpack.c.b16 %v3940, %v3939
        %v4290 = vpack.c.b16 %v3942, %v3941
        %v4291 = vpack.c.b16 %v3944, %v3943
        %v4292 = vpack.c.b16 %v3946, %v3945
        %v4293 = vpack.c.b16 %v3948, %v3947
        %v4294 = vpack.c.b16 %v3950, %v3949
        %v4295 = vpack.c.b16 %v3952, %v3951
        %v4296 = vpack.c.b16 %v3954, %v3953
        %v4297 = vpack.c.b16 %v3956, %v3955
        %v4298 = vpack.c.b16 %v3958, %v3957
        %v4299 = vpack.c.b16 %v3960, %v3959
        %v4300 = vpack.c.b16 %v3962, %v3961
        %v4301 = vpack.c.b16 %v3964, %v3963
        %v4302 = vpack.c.b16 %v3966, %v3965
        %v4303 = vpack.c.b16 %v3968, %v3967
        %v4304 = vpack.c.b16 %v3970, %v3969
        %v4305 = vpack.c.b16 %v3972, %v3971
        %v4306 = vpack.c.b16 %v3974, %v3973
        %v4307 = vpack.c.b16 %v3976, %v3975
        %v4308 = vpack.c.b16 %v3978, %v3977
        %v4309 = vpack.c.b16 %v3980, %v3979
        %v4310 = vpack.c.b16 %v3982, %v3981
        %v4311 = vpack.c.b16 %v3984, %v3983
        %v4312 = vpack.c.b16 %v3986, %v3985
        %v4313 = vpack.c.b16 %v3988, %v3987
        %v4314 = vpack.c.b16 %v3990, %v3989
        %v4315 = vpack.c.b16 %v3992, %v3991
        %v4316 = vpack.c.b16 %v3994, %v3993
        %v4317 = vpack.c.b16 %v3996, %v3995
        %v4318 = vpack.c.b16 %v3998, %v3997
        %v4319 = vpack.c.b16 %v4000, %v3999
        %v4320 = vpack.c.b16 %v4002, %v4001
        %v4321 = vpack.c.b16 %v4004, %v4003
        %v4322 = vpack.c.b16 %v4006, %v4005
        %v4323 = vpack.c.b16 %v4008, %v4007
        %v4324 = vpack.c.b16 %v4010, %v4009
        %v4325 = vpack.c.b16 %v4012, %v4011
        %v4326 = vpack.c.b16 %v4014, %v4013
        %v4327 = vpack.c.b16 %v4016, %v4015
        %v4328 = vpack.c.b16 %v4018, %v4017
        %v4329 = vpack.c.b16 %v4020, %v4019
        %v4330 = vpack.c.b16 %v4022, %v4021
        %v4331 = vpack.c.b16 %v4024, %v4023
        %v4332 = vpack.c.b16 %v4026, %v4025
        %v4333 = vpack.c.b16 %v4028, %v4027
        %v4334 = vpack.c.b16 %v4030, %v4029
        %v4335 = vpack.c.b16 %v4032, %v4031
        %v4336 = vpack.c.b16 %v4034, %v4033
        %v4337 = vpack.c.b16 %v4036, %v4035
        %v4338 = vpack.c.b16 %v4038, %v4037
        %v4339 = vpack.c.b16 %v4040, %v4039
        %v4340 = vpack.c.b16 %v4042, %v4041
        %v4341 = vpack.c.b16 %v4044, %v4043
        %v4342 = vpack.c.b16 %v4046, %v4045
        %v4343 = vpack.c.b16 %v4048, %v4047
        %v4344 = vpack.c.b16 %v4050, %v4049
        %v4345 = vpack.c.b16 %v4052, %v4051
        %v4346 = vpack.c.b16 %v4054, %v4053
        %v4347 = vpack.c.b16 %v4056, %v4055
        %v4348 = vpack.c.b16 %v4058, %v4057
        %v4349 = vpack.c.b16 %v4060, %v4059
        %v4350 = vpack.c.b16 %v4062, %v4061
        %v4351 = vpack.c.b16 %v4064, %v4063
        %v4352 = vpack.c.b16 %v4066, %v4065
        %v4353 = vpack.c.b16 %v4068, %v4067
        %v4354 = vpack.c.b16 %v4070, %v4069
        %v4355 = vpack.c.b16 %v4072, %v4071
        %v4356 = vpack.c.b16 %v4074, %v4073
        %v4357 = vpack.c.b16 %v4076, %v4075
        %v4358 = vpack.c.b16 %v4078, %v4077
        %v4359 = vpack.c.b16 %v4080, %v4079
        %v4360 = vpack.c.b16 %v4082, %v4081
        %v4361 = vpack.c.b16 %v4084, %v4083
        %v4362 = vpack.c.b16 %v4086, %v4085
        %v4363 = vpack.c.b16 %v4088, %v4087
        %v4364 = vpack.c.b16 %v4090, %v4089
        %v4365 = vpack.c.b16 %v4092, %v4091
        %v4366 = vpack.c.b16 %v4094, %v4093
        %v4367 = vpack.c.b16 %v4096, %v4095
        %v4368 = vpack.c.b16 %v4098, %v4097
        %v4369 = vpack.c.b16 %v4100, %v4099
        %v4370 = vpack.c.b16 %v4102, %v4101
        %v4371 = vpack.c.b16 %v4104, %v4103
        %v4372 = vpack.c.b16 %v4106, %v4105
        %v4373 = vpack.c.b16 %v4108, %v4107
        %v4374 = vpack.c.b16 %v4110, %v4109
        %v4375 = vpack.c.b16 %v4112, %v4111
        %v4376 = vpack.c.b16 %v4114, %v4113
        %v4377 = vpack.c.b16 %v4116, %v4115
        %v4378 = vpack.c.b16 %v4118, %v4117
        %v4379 = vpack.c.b16 %v4120, %v4119
        %v4380 = vpack.c.b16 %v4122, %v4121
        %v4381 = vpack.c.b16 %v4124, %v4123
        %v4382 = vpack.c.b16 %v4126, %v4125
        %v4383 = vpack.c.b16 %v4128, %v4127
        %v4384 = vpack.c.b16 %v4130, %v4129
        %v4385 = vpack.c.b16 %v4132, %v4131
        %v4386 = vpack.c.b16 %v4134, %v4133
        %v4387 = vpack.c.b16 %v4136, %v4135
        %v4388 = vpack.c.b16 %v4138, %v4137
        %v4389 = vpack.c.b16 %v4140, %v4139
        %v4390 = vpack.c.b16 %v4142, %v4141
        %v4391 = vpack.c.b16 %v4144, %v4143
        %v4392 = vpack.c.b16 %v4146, %v4145
        %v4393 = vpack.c.b16 %v4148, %v4147
        %v4394 = vpack.c.b16 %v4150, %v4149
        %v4395 = vpack.c.b16 %v4152, %v4151
        %v4396 = vpack.c.b16 %v4154, %v4153
        %v4397 = vpack.c.b16 %v4156, %v4155
        %v4398 = vpack.c.b16 %v4158, %v4157
        %4639 = vmatprep.subr.bf16.mxu0 0
        %4640 = vmatpush1.bf16.msra.mxu0 %v4166
        %4641 = vmatprep.subr.bf16.mxu0 0
        %4642 = vmatpush1.bf16.msra.mxu0 %v4165
        %4643 = vmatprep.subr.bf16.mxu0 0
        %4644 = vmatpush1.bf16.msra.mxu0 %v4164
        %4645 = vmatprep.subr.bf16.mxu0 0
        %4646 = vmatpush1.bf16.msra.mxu0 %v4163
        %4647 = vmatprep.subr.bf16.mxu0 0
        %4648 = vmatpush1.bf16.msra.mxu0 %v4162
        %4649 = vmatprep.subr.bf16.mxu0 0
        %4650 = vmatpush1.bf16.msra.mxu0 %v4161
        %4651 = vmatprep.subr.bf16.mxu0 0
        %4652 = vmatpush1.bf16.msra.mxu0 %v4160
        %4653 = vmatprep.subr.bf16.mxu0 0
        %4654 = vmatpush1.bf16.msra.mxu0 %v4159
        %4655 = vmatprep.subr.bf16.mxu0 0
        %4656 = vmatpush2.bf16.msra.mxu0 %v4174
        %4657 = vmatprep.subr.bf16.mxu0 0
        %4658 = vmatpush2.bf16.msra.mxu0 %v4173
        %4659 = vmatprep.subr.bf16.mxu0 0
        %4660 = vmatpush2.bf16.msra.mxu0 %v4172
        %4661 = vmatprep.subr.bf16.mxu0 0
        %4662 = vmatpush2.bf16.msra.mxu0 %v4171
        %4663 = vmatprep.subr.bf16.mxu0 0
        %4664 = vmatpush2.bf16.msra.mxu0 %v4170
        %4665 = vmatprep.subr.bf16.mxu0 0
        %4666 = vmatpush2.bf16.msra.mxu0 %v4169
        %4667 = vmatprep.subr.bf16.mxu0 0
        %4668 = vmatpush2.bf16.msra.mxu0 %v4168
        %4669 = vmatprep.subr.bf16.mxu0 0
        %4670 = vmatpush2.bf16.msra.mxu0 %v4167
        %4671 = vmatprep.mubr.bf16.mxu0 %v2689
        %4672 = vmatmul.mubr.bf16.gmra.mxu0 %v2688
        %v4673 = vpop.f32.mrf.mxu0
        %v4674 = vadd.f32 %v3198, %v4673
        %v4675 = vpop.f32.mrf.mxu0
        %v4676 = vpop.f32.mrf.mxu0
        %v4677 = vpop.f32.mrf.mxu0
        %4678 = vdwg.mxu0
        %4679 = vmatprep.subr.bf16.mxu0 0
        %4680 = vmatpush1.bf16.msra.mxu0 %v4182
        %4681 = vmatprep.subr.bf16.mxu0 0
        %4682 = vmatpush1.bf16.msra.mxu0 %v4181
        %4683 = vmatprep.subr.bf16.mxu0 0
        %4684 = vmatpush1.bf16.msra.mxu0 %v4180
        %4685 = vmatprep.subr.bf16.mxu0 0
        %4686 = vmatpush1.bf16.msra.mxu0 %v4179
        %4687 = vmatprep.subr.bf16.mxu0 0
        %4688 = vmatpush1.bf16.msra.mxu0 %v4178
        %4689 = vmatprep.subr.bf16.mxu0 0
        %4690 = vmatpush1.bf16.msra.mxu0 %v4177
        %4691 = vmatprep.subr.bf16.mxu0 0
        %4692 = vmatpush1.bf16.msra.mxu0 %v4176
        %4693 = vmatprep.subr.bf16.mxu0 0
        %4694 = vmatpush1.bf16.msra.mxu0 %v4175
        %4695 = vmatprep.subr.bf16.mxu0 0
        %4696 = vmatpush2.bf16.msra.mxu0 %v4190
        %4697 = vmatprep.subr.bf16.mxu0 0
        %4698 = vmatpush2.bf16.msra.mxu0 %v4189
        %4699 = vmatprep.subr.bf16.mxu0 0
        %4700 = vmatpush2.bf16.msra.mxu0 %v4188
        %4701 = vmatprep.subr.bf16.mxu0 0
        %4702 = vmatpush2.bf16.msra.mxu0 %v4187
        %4703 = vmatprep.subr.bf16.mxu0 0
        %4704 = vmatpush2.bf16.msra.mxu0 %v4186
        %4705 = vmatprep.subr.bf16.mxu0 0
        %4706 = vmatpush2.bf16.msra.mxu0 %v4185
        %4707 = vmatprep.subr.bf16.mxu0 0
        %4708 = vmatpush2.bf16.msra.mxu0 %v4184
        %4709 = vmatprep.subr.bf16.mxu0 0
        %4710 = vmatpush2.bf16.msra.mxu0 %v4183
        %4711 = vmatprep.mubr.bf16.mxu0 %v2691
        %4712 = vmatmul.mubr.bf16.gmra.mxu0 %v2690
        %v4713 = vpop.f32.mrf.mxu0
        %v4714 = vadd.f32 %v4674, %v4713
        %v4715 = vpop.f32.mrf.mxu0
        %v4716 = vpop.f32.mrf.mxu0
        %v4717 = vpop.f32.mrf.mxu0
        %4718 = vdwg.mxu0
        %4719 = vmatprep.subr.bf16.mxu0 0
        %4720 = vmatpush1.bf16.msra.mxu0 %v4198
        %4721 = vmatprep.subr.bf16.mxu0 0
        %4722 = vmatpush1.bf16.msra.mxu0 %v4197
        %4723 = vmatprep.subr.bf16.mxu0 0
        %4724 = vmatpush1.bf16.msra.mxu0 %v4196
        %4725 = vmatprep.subr.bf16.mxu0 0
        %4726 = vmatpush1.bf16.msra.mxu0 %v4195
        %4727 = vmatprep.subr.bf16.mxu0 0
        %4728 = vmatpush1.bf16.msra.mxu0 %v4194
        %4729 = vmatprep.subr.bf16.mxu0 0
        %4730 = vmatpush1.bf16.msra.mxu0 %v4193
        %4731 = vmatprep.subr.bf16.mxu0 0
        %4732 = vmatpush1.bf16.msra.mxu0 %v4192
        %4733 = vmatprep.subr.bf16.mxu0 0
        %4734 = vmatpush1.bf16.msra.mxu0 %v4191
        %4735 = vmatprep.subr.bf16.mxu0 0
        %4736 = vmatpush2.bf16.msra.mxu0 %v4206
        %4737 = vmatprep.subr.bf16.mxu0 0
        %4738 = vmatpush2.bf16.msra.mxu0 %v4205
        %4739 = vmatprep.subr.bf16.mxu0 0
        %4740 = vmatpush2.bf16.msra.mxu0 %v4204
        %4741 = vmatprep.subr.bf16.mxu0 0
        %4742 = vmatpush2.bf16.msra.mxu0 %v4203
        %4743 = vmatprep.subr.bf16.mxu0 0
        %4744 = vmatpush2.bf16.msra.mxu0 %v4202
        %4745 = vmatprep.subr.bf16.mxu0 0
        %4746 = vmatpush2.bf16.msra.mxu0 %v4201
        %4747 = vmatprep.subr.bf16.mxu0 0
        %4748 = vmatpush2.bf16.msra.mxu0 %v4200
        %4749 = vmatprep.subr.bf16.mxu0 0
        %4750 = vmatpush2.bf16.msra.mxu0 %v4199
        %4751 = vmatprep.mubr.bf16.mxu0 %v2693
        %4752 = vmatmul.mubr.bf16.gmra.mxu0 %v2692
        %v4753 = vpop.f32.mrf.mxu0
        %v4754 = vadd.f32 %v4714, %v4753
        %v4755 = vpop.f32.mrf.mxu0
        %v4756 = vpop.f32.mrf.mxu0
        %v4757 = vpop.f32.mrf.mxu0
        %4758 = vdwg.mxu0
        %4759 = vmatprep.subr.bf16.mxu0 0
        %4760 = vmatpush1.bf16.msra.mxu0 %v4214
        %4761 = vmatprep.subr.bf16.mxu0 0
        %4762 = vmatpush1.bf16.msra.mxu0 %v4213
        %4763 = vmatprep.subr.bf16.mxu0 0
        %4764 = vmatpush1.bf16.msra.mxu0 %v4212
        %4765 = vmatprep.subr.bf16.mxu0 0
        %4766 = vmatpush1.bf16.msra.mxu0 %v4211
        %4767 = vmatprep.subr.bf16.mxu0 0
        %4768 = vmatpush1.bf16.msra.mxu0 %v4210
        %4769 = vmatprep.subr.bf16.mxu0 0
        %4770 = vmatpush1.bf16.msra.mxu0 %v4209
        %4771 = vmatprep.subr.bf16.mxu0 0
        %4772 = vmatpush1.bf16.msra.mxu0 %v4208
        %4773 = vmatprep.subr.bf16.mxu0 0
        %4774 = vmatpush1.bf16.msra.mxu0 %v4207
        %4775 = vmatprep.subr.bf16.mxu0 0
        %4776 = vmatpush2.bf16.msra.mxu0 %v4222
        %4777 = vmatprep.subr.bf16.mxu0 0
        %4778 = vmatpush2.bf16.msra.mxu0 %v4221
        %4779 = vmatprep.subr.bf16.mxu0 0
        %4780 = vmatpush2.bf16.msra.mxu0 %v4220
        %4781 = vmatprep.subr.bf16.mxu0 0
        %4782 = vmatpush2.bf16.msra.mxu0 %v4219
        %4783 = vmatprep.subr.bf16.mxu0 0
        %4784 = vmatpush2.bf16.msra.mxu0 %v4218
        %4785 = vmatprep.subr.bf16.mxu0 0
        %4786 = vmatpush2.bf16.msra.mxu0 %v4217
        %4787 = vmatprep.subr.bf16.mxu0 0
        %4788 = vmatpush2.bf16.msra.mxu0 %v4216
        %4789 = vmatprep.subr.bf16.mxu0 0
        %4790 = vmatpush2.bf16.msra.mxu0 %v4215
        %4791 = vmatprep.mubr.bf16.mxu0 %v2695
        %4792 = vmatmul.mubr.bf16.gmra.mxu0 %v2694
        %v4793 = vpop.f32.mrf.mxu0
        %v4794 = vadd.f32 %v4754, %v4793
        %v4795 = vpop.f32.mrf.mxu0
        %v4796 = vpop.f32.mrf.mxu0
        %v4797 = vpop.f32.mrf.mxu0
        %4798 = vdwg.mxu0
        %4799 = vmatprep.subr.bf16.mxu0 0
        %4800 = vmatpush1.bf16.msra.mxu0 %v4230
        %4801 = vmatprep.subr.bf16.mxu0 0
        %4802 = vmatpush1.bf16.msra.mxu0 %v4229
        %4803 = vmatprep.subr.bf16.mxu0 0
        %4804 = vmatpush1.bf16.msra.mxu0 %v4228
        %4805 = vmatprep.subr.bf16.mxu0 0
        %4806 = vmatpush1.bf16.msra.mxu0 %v4227
        %4807 = vmatprep.subr.bf16.mxu0 0
        %4808 = vmatpush1.bf16.msra.mxu0 %v4226
        %4809 = vmatprep.subr.bf16.mxu0 0
        %4810 = vmatpush1.bf16.msra.mxu0 %v4225
        %4811 = vmatprep.subr.bf16.mxu0 0
        %4812 = vmatpush1.bf16.msra.mxu0 %v4224
        %4813 = vmatprep.subr.bf16.mxu0 0
        %4814 = vmatpush1.bf16.msra.mxu0 %v4223
        %4815 = vmatprep.subr.bf16.mxu0 0
        %4816 = vmatpush2.bf16.msra.mxu0 %v4238
        %4817 = vmatprep.subr.bf16.mxu0 0
        %4818 = vmatpush2.bf16.msra.mxu0 %v4237
        %4819 = vmatprep.subr.bf16.mxu0 0
        %4820 = vmatpush2.bf16.msra.mxu0 %v4236
        %4821 = vmatprep.subr.bf16.mxu0 0
        %4822 = vmatpush2.bf16.msra.mxu0 %v4235
        %4823 = vmatprep.subr.bf16.mxu0 0
        %4824 = vmatpush2.bf16.msra.mxu0 %v4234
        %4825 = vmatprep.subr.bf16.mxu0 0
        %4826 = vmatpush2.bf16.msra.mxu0 %v4233
        %4827 = vmatprep.subr.bf16.mxu0 0
        %4828 = vmatpush2.bf16.msra.mxu0 %v4232
        %4829 = vmatprep.subr.bf16.mxu0 0
        %4830 = vmatpush2.bf16.msra.mxu0 %v4231
        %4831 = vmatprep.mubr.bf16.mxu0 %v2697
        %4832 = vmatmul.mubr.bf16.gmra.mxu0 %v2696
        %v4833 = vpop.f32.mrf.mxu0
        %v4834 = vadd.f32 %v4794, %v4833
        %v4835 = vpop.f32.mrf.mxu0
        %v4836 = vpop.f32.mrf.mxu0
        %v4837 = vpop.f32.mrf.mxu0
        %4838 = vdwg.mxu0
        %4839 = vmatprep.subr.bf16.mxu0 0
        %4840 = vmatpush1.bf16.msra.mxu0 %v4246
        %4841 = vmatprep.subr.bf16.mxu0 0
        %4842 = vmatpush1.bf16.msra.mxu0 %v4245
        %4843 = vmatprep.subr.bf16.mxu0 0
        %4844 = vmatpush1.bf16.msra.mxu0 %v4244
        %4845 = vmatprep.subr.bf16.mxu0 0
        %4846 = vmatpush1.bf16.msra.mxu0 %v4243
        %4847 = vmatprep.subr.bf16.mxu0 0
        %4848 = vmatpush1.bf16.msra.mxu0 %v4242
        %4849 = vmatprep.subr.bf16.mxu0 0
        %4850 = vmatpush1.bf16.msra.mxu0 %v4241
        %4851 = vmatprep.subr.bf16.mxu0 0
        %4852 = vmatpush1.bf16.msra.mxu0 %v4240
        %4853 = vmatprep.subr.bf16.mxu0 0
        %4854 = vmatpush1.bf16.msra.mxu0 %v4239
        %4855 = vmatprep.subr.bf16.mxu0 0
        %4856 = vmatpush2.bf16.msra.mxu0 %v4254
        %4857 = vmatprep.subr.bf16.mxu0 0
        %4858 = vmatpush2.bf16.msra.mxu0 %v4253
        %4859 = vmatprep.subr.bf16.mxu0 0
        %4860 = vmatpush2.bf16.msra.mxu0 %v4252
        %4861 = vmatprep.subr.bf16.mxu0 0
        %4862 = vmatpush2.bf16.msra.mxu0 %v4251
        %4863 = vmatprep.subr.bf16.mxu0 0
        %4864 = vmatpush2.bf16.msra.mxu0 %v4250
        %4865 = vmatprep.subr.bf16.mxu0 0
        %4866 = vmatpush2.bf16.msra.mxu0 %v4249
        %4867 = vmatprep.subr.bf16.mxu0 0
        %4868 = vmatpush2.bf16.msra.mxu0 %v4248
        %4869 = vmatprep.subr.bf16.mxu0 0
        %4870 = vmatpush2.bf16.msra.mxu0 %v4247
        %4871 = vmatprep.mubr.bf16.mxu0 %v2699
        %4872 = vmatmul.mubr.bf16.gmra.mxu0 %v2698
        %v4873 = vpop.f32.mrf.mxu0
        %v4874 = vadd.f32 %v4834, %v4873
        %v4875 = vpop.f32.mrf.mxu0
        %v4876 = vpop.f32.mrf.mxu0
        %v4877 = vpop.f32.mrf.mxu0
        %4878 = vdwg.mxu0
        %4879 = vmatprep.subr.bf16.mxu0 0
        %4880 = vmatpush1.bf16.msra.mxu0 %v4262
        %4881 = vmatprep.subr.bf16.mxu0 0
        %4882 = vmatpush1.bf16.msra.mxu0 %v4261
        %4883 = vmatprep.subr.bf16.mxu0 0
        %4884 = vmatpush1.bf16.msra.mxu0 %v4260
        %4885 = vmatprep.subr.bf16.mxu0 0
        %4886 = vmatpush1.bf16.msra.mxu0 %v4259
        %4887 = vmatprep.subr.bf16.mxu0 0
        %4888 = vmatpush1.bf16.msra.mxu0 %v4258
        %4889 = vmatprep.subr.bf16.mxu0 0
        %4890 = vmatpush1.bf16.msra.mxu0 %v4257
        %4891 = vmatprep.subr.bf16.mxu0 0
        %4892 = vmatpush1.bf16.msra.mxu0 %v4256
        %4893 = vmatprep.subr.bf16.mxu0 0
        %4894 = vmatpush1.bf16.msra.mxu0 %v4255
        %4895 = vmatprep.subr.bf16.mxu0 0
        %4896 = vmatpush2.bf16.msra.mxu0 %v4270
        %4897 = vmatprep.subr.bf16.mxu0 0
        %4898 = vmatpush2.bf16.msra.mxu0 %v4269
        %4899 = vmatprep.subr.bf16.mxu0 0
        %4900 = vmatpush2.bf16.msra.mxu0 %v4268
        %4901 = vmatprep.subr.bf16.mxu0 0
        %4902 = vmatpush2.bf16.msra.mxu0 %v4267
        %4903 = vmatprep.subr.bf16.mxu0 0
        %4904 = vmatpush2.bf16.msra.mxu0 %v4266
        %4905 = vmatprep.subr.bf16.mxu0 0
        %4906 = vmatpush2.bf16.msra.mxu0 %v4265
        %4907 = vmatprep.subr.bf16.mxu0 0
        %4908 = vmatpush2.bf16.msra.mxu0 %v4264
        %4909 = vmatprep.subr.bf16.mxu0 0
        %4910 = vmatpush2.bf16.msra.mxu0 %v4263
        %4911 = vmatprep.mubr.bf16.mxu0 %v2701
        %4912 = vmatmul.mubr.bf16.gmra.mxu0 %v2700
        %v4913 = vpop.f32.mrf.mxu0
        %v4914 = vadd.f32 %v4874, %v4913
        %v4915 = vpop.f32.mrf.mxu0
        %v4916 = vpop.f32.mrf.mxu0
        %v4917 = vpop.f32.mrf.mxu0
        %4918 = vdwg.mxu0
        %4919 = vmatprep.subr.bf16.mxu0 0
        %4920 = vmatpush1.bf16.msra.mxu0 %v4278
        %4921 = vmatprep.subr.bf16.mxu0 0
        %4922 = vmatpush1.bf16.msra.mxu0 %v4277
        %4923 = vmatprep.subr.bf16.mxu0 0
        %4924 = vmatpush1.bf16.msra.mxu0 %v4276
        %4925 = vmatprep.subr.bf16.mxu0 0
        %4926 = vmatpush1.bf16.msra.mxu0 %v4275
        %4927 = vmatprep.subr.bf16.mxu0 0
        %4928 = vmatpush1.bf16.msra.mxu0 %v4274
        %4929 = vmatprep.subr.bf16.mxu0 0
        %4930 = vmatpush1.bf16.msra.mxu0 %v4273
        %4931 = vmatprep.subr.bf16.mxu0 0
        %4932 = vmatpush1.bf16.msra.mxu0 %v4272
        %4933 = vmatprep.subr.bf16.mxu0 0
        %4934 = vmatpush1.bf16.msra.mxu0 %v4271
        %4935 = vmatprep.subr.bf16.mxu0 0
        %4936 = vmatpush2.bf16.msra.mxu0 %v4286
        %4937 = vmatprep.subr.bf16.mxu0 0
        %4938 = vmatpush2.bf16.msra.mxu0 %v4285
        %4939 = vmatprep.subr.bf16.mxu0 0
        %4940 = vmatpush2.bf16.msra.mxu0 %v4284
        %4941 = vmatprep.subr.bf16.mxu0 0
        %4942 = vmatpush2.bf16.msra.mxu0 %v4283
        %4943 = vmatprep.subr.bf16.mxu0 0
        %4944 = vmatpush2.bf16.msra.mxu0 %v4282
        %4945 = vmatprep.subr.bf16.mxu0 0
        %4946 = vmatpush2.bf16.msra.mxu0 %v4281
        %4947 = vmatprep.subr.bf16.mxu0 0
        %4948 = vmatpush2.bf16.msra.mxu0 %v4280
        %4949 = vmatprep.subr.bf16.mxu0 0
        %4950 = vmatpush2.bf16.msra.mxu0 %v4279
        %4951 = vmatprep.mubr.bf16.mxu0 %v2703
        %4952 = vmatmul.mubr.bf16.gmra.mxu0 %v2702
        %v4953 = vpop.f32.mrf.mxu0
        %v4954 = vadd.f32 %v4914, %v4953
        %v4955 = vpop.f32.mrf.mxu0
        %v4956 = vpop.f32.mrf.mxu0
        %v4957 = vpop.f32.mrf.mxu0
        %4958 = vdwg.mxu0
        %4959 = vmatprep.subr.bf16.mxu0 0
        %4960 = vmatpush1.bf16.msra.mxu0 %v4294
        %4961 = vmatprep.subr.bf16.mxu0 0
        %4962 = vmatpush1.bf16.msra.mxu0 %v4293
        %4963 = vmatprep.subr.bf16.mxu0 0
        %4964 = vmatpush1.bf16.msra.mxu0 %v4292
        %4965 = vmatprep.subr.bf16.mxu0 0
        %4966 = vmatpush1.bf16.msra.mxu0 %v4291
        %4967 = vmatprep.subr.bf16.mxu0 0
        %4968 = vmatpush1.bf16.msra.mxu0 %v4290
        %4969 = vmatprep.subr.bf16.mxu0 0
        %4970 = vmatpush1.bf16.msra.mxu0 %v4289
        %4971 = vmatprep.subr.bf16.mxu0 0
        %4972 = vmatpush1.bf16.msra.mxu0 %v4288
        %4973 = vmatprep.subr.bf16.mxu0 0
        %4974 = vmatpush1.bf16.msra.mxu0 %v4287
        %4975 = vmatprep.subr.bf16.mxu0 0
        %4976 = vmatpush2.bf16.msra.mxu0 %v4302
        %4977 = vmatprep.subr.bf16.mxu0 0
        %4978 = vmatpush2.bf16.msra.mxu0 %v4301
        %4979 = vmatprep.subr.bf16.mxu0 0
        %4980 = vmatpush2.bf16.msra.mxu0 %v4300
        %4981 = vmatprep.subr.bf16.mxu0 0
        %4982 = vmatpush2.bf16.msra.mxu0 %v4299
        %4983 = vmatprep.subr.bf16.mxu0 0
        %4984 = vmatpush2.bf16.msra.mxu0 %v4298
        %4985 = vmatprep.subr.bf16.mxu0 0
        %4986 = vmatpush2.bf16.msra.mxu0 %v4297
        %4987 = vmatprep.subr.bf16.mxu0 0
        %4988 = vmatpush2.bf16.msra.mxu0 %v4296
        %4989 = vmatprep.subr.bf16.mxu0 0
        %4990 = vmatpush2.bf16.msra.mxu0 %v4295
        %4991 = vmatprep.mubr.bf16.mxu0 %v2705
        %4992 = vmatmul.mubr.bf16.gmra.mxu0 %v2704
        %v4993 = vpop.f32.mrf.mxu0
        %v4994 = vadd.f32 %v4954, %v4993
        %v4995 = vpop.f32.mrf.mxu0
        %v4996 = vpop.f32.mrf.mxu0
        %v4997 = vpop.f32.mrf.mxu0
        %4998 = vdwg.mxu0
        %4999 = vmatprep.subr.bf16.mxu0 0
        %5000 = vmatpush1.bf16.msra.mxu0 %v4310
        %5001 = vmatprep.subr.bf16.mxu0 0
        %5002 = vmatpush1.bf16.msra.mxu0 %v4309
        %5003 = vmatprep.subr.bf16.mxu0 0
        %5004 = vmatpush1.bf16.msra.mxu0 %v4308
        %5005 = vmatprep.subr.bf16.mxu0 0
        %5006 = vmatpush1.bf16.msra.mxu0 %v4307
        %5007 = vmatprep.subr.bf16.mxu0 0
        %5008 = vmatpush1.bf16.msra.mxu0 %v4306
        %5009 = vmatprep.subr.bf16.mxu0 0
        %5010 = vmatpush1.bf16.msra.mxu0 %v4305
        %5011 = vmatprep.subr.bf16.mxu0 0
        %5012 = vmatpush1.bf16.msra.mxu0 %v4304
        %5013 = vmatprep.subr.bf16.mxu0 0
        %5014 = vmatpush1.bf16.msra.mxu0 %v4303
        %5015 = vmatprep.subr.bf16.mxu0 0
        %5016 = vmatpush2.bf16.msra.mxu0 %v4318
        %5017 = vmatprep.subr.bf16.mxu0 0
        %5018 = vmatpush2.bf16.msra.mxu0 %v4317
        %5019 = vmatprep.subr.bf16.mxu0 0
        %5020 = vmatpush2.bf16.msra.mxu0 %v4316
        %5021 = vmatprep.subr.bf16.mxu0 0
        %5022 = vmatpush2.bf16.msra.mxu0 %v4315
        %5023 = vmatprep.subr.bf16.mxu0 0
        %5024 = vmatpush2.bf16.msra.mxu0 %v4314
        %5025 = vmatprep.subr.bf16.mxu0 0
        %5026 = vmatpush2.bf16.msra.mxu0 %v4313
        %5027 = vmatprep.subr.bf16.mxu0 0
        %5028 = vmatpush2.bf16.msra.mxu0 %v4312
        %5029 = vmatprep.subr.bf16.mxu0 0
        %5030 = vmatpush2.bf16.msra.mxu0 %v4311
        %5031 = vmatprep.mubr.bf16.mxu0 %v2707
        %5032 = vmatmul.mubr.bf16.gmra.mxu0 %v2706
        %v5033 = vpop.f32.mrf.mxu0
        %v5034 = vadd.f32 %v4994, %v5033
        %v5035 = vpop.f32.mrf.mxu0
        %v5036 = vpop.f32.mrf.mxu0
        %v5037 = vpop.f32.mrf.mxu0
        %5038 = vdwg.mxu0
        %5039 = vmatprep.subr.bf16.mxu0 0
        %5040 = vmatpush1.bf16.msra.mxu0 %v4326
        %5041 = vmatprep.subr.bf16.mxu0 0
        %5042 = vmatpush1.bf16.msra.mxu0 %v4325
        %5043 = vmatprep.subr.bf16.mxu0 0
        %5044 = vmatpush1.bf16.msra.mxu0 %v4324
        %5045 = vmatprep.subr.bf16.mxu0 0
        %5046 = vmatpush1.bf16.msra.mxu0 %v4323
        %5047 = vmatprep.subr.bf16.mxu0 0
        %5048 = vmatpush1.bf16.msra.mxu0 %v4322
        %5049 = vmatprep.subr.bf16.mxu0 0
        %5050 = vmatpush1.bf16.msra.mxu0 %v4321
        %5051 = vmatprep.subr.bf16.mxu0 0
        %5052 = vmatpush1.bf16.msra.mxu0 %v4320
        %5053 = vmatprep.subr.bf16.mxu0 0
        %5054 = vmatpush1.bf16.msra.mxu0 %v4319
        %5055 = vmatprep.subr.bf16.mxu0 0
        %5056 = vmatpush2.bf16.msra.mxu0 %v4334
        %5057 = vmatprep.subr.bf16.mxu0 0
        %5058 = vmatpush2.bf16.msra.mxu0 %v4333
        %5059 = vmatprep.subr.bf16.mxu0 0
        %5060 = vmatpush2.bf16.msra.mxu0 %v4332
        %5061 = vmatprep.subr.bf16.mxu0 0
        %5062 = vmatpush2.bf16.msra.mxu0 %v4331
        %5063 = vmatprep.subr.bf16.mxu0 0
        %5064 = vmatpush2.bf16.msra.mxu0 %v4330
        %5065 = vmatprep.subr.bf16.mxu0 0
        %5066 = vmatpush2.bf16.msra.mxu0 %v4329
        %5067 = vmatprep.subr.bf16.mxu0 0
        %5068 = vmatpush2.bf16.msra.mxu0 %v4328
        %5069 = vmatprep.subr.bf16.mxu0 0
        %5070 = vmatpush2.bf16.msra.mxu0 %v4327
        %5071 = vmatprep.mubr.bf16.mxu0 %v2709
        %5072 = vmatmul.mubr.bf16.gmra.mxu0 %v2708
        %v5073 = vpop.f32.mrf.mxu0
        %v5074 = vadd.f32 %v5034, %v5073
        %v5075 = vpop.f32.mrf.mxu0
        %v5076 = vpop.f32.mrf.mxu0
        %v5077 = vpop.f32.mrf.mxu0
        %5078 = vdwg.mxu0
        %5079 = vmatprep.subr.bf16.mxu0 0
        %5080 = vmatpush1.bf16.msra.mxu0 %v4342
        %5081 = vmatprep.subr.bf16.mxu0 0
        %5082 = vmatpush1.bf16.msra.mxu0 %v4341
        %5083 = vmatprep.subr.bf16.mxu0 0
        %5084 = vmatpush1.bf16.msra.mxu0 %v4340
        %5085 = vmatprep.subr.bf16.mxu0 0
        %5086 = vmatpush1.bf16.msra.mxu0 %v4339
        %5087 = vmatprep.subr.bf16.mxu0 0
        %5088 = vmatpush1.bf16.msra.mxu0 %v4338
        %5089 = vmatprep.subr.bf16.mxu0 0
        %5090 = vmatpush1.bf16.msra.mxu0 %v4337
        %5091 = vmatprep.subr.bf16.mxu0 0
        %5092 = vmatpush1.bf16.msra.mxu0 %v4336
        %5093 = vmatprep.subr.bf16.mxu0 0
        %5094 = vmatpush1.bf16.msra.mxu0 %v4335
        %5095 = vmatprep.subr.bf16.mxu0 0
        %5096 = vmatpush2.bf16.msra.mxu0 %v4350
        %5097 = vmatprep.subr.bf16.mxu0 0
        %5098 = vmatpush2.bf16.msra.mxu0 %v4349
        %5099 = vmatprep.subr.bf16.mxu0 0
        %5100 = vmatpush2.bf16.msra.mxu0 %v4348
        %5101 = vmatprep.subr.bf16.mxu0 0
        %5102 = vmatpush2.bf16.msra.mxu0 %v4347
        %5103 = vmatprep.subr.bf16.mxu0 0
        %5104 = vmatpush2.bf16.msra.mxu0 %v4346
        %5105 = vmatprep.subr.bf16.mxu0 0
        %5106 = vmatpush2.bf16.msra.mxu0 %v4345
        %5107 = vmatprep.subr.bf16.mxu0 0
        %5108 = vmatpush2.bf16.msra.mxu0 %v4344
        %5109 = vmatprep.subr.bf16.mxu0 0
        %5110 = vmatpush2.bf16.msra.mxu0 %v4343
        %5111 = vmatprep.mubr.bf16.mxu0 %v2711
        %5112 = vmatmul.mubr.bf16.gmra.mxu0 %v2710
        %v5113 = vpop.f32.mrf.mxu0
        %v5114 = vadd.f32 %v5074, %v5113
        %v5115 = vpop.f32.mrf.mxu0
        %v5116 = vpop.f32.mrf.mxu0
        %v5117 = vpop.f32.mrf.mxu0
        %5118 = vdwg.mxu0
        %5119 = vmatprep.subr.bf16.mxu0 0
        %5120 = vmatpush1.bf16.msra.mxu0 %v4358
        %5121 = vmatprep.subr.bf16.mxu0 0
        %5122 = vmatpush1.bf16.msra.mxu0 %v4357
        %5123 = vmatprep.subr.bf16.mxu0 0
        %5124 = vmatpush1.bf16.msra.mxu0 %v4356
        %5125 = vmatprep.subr.bf16.mxu0 0
        %5126 = vmatpush1.bf16.msra.mxu0 %v4355
        %5127 = vmatprep.subr.bf16.mxu0 0
        %5128 = vmatpush1.bf16.msra.mxu0 %v4354
        %5129 = vmatprep.subr.bf16.mxu0 0
        %5130 = vmatpush1.bf16.msra.mxu0 %v4353
        %5131 = vmatprep.subr.bf16.mxu0 0
        %5132 = vmatpush1.bf16.msra.mxu0 %v4352
        %5133 = vmatprep.subr.bf16.mxu0 0
        %5134 = vmatpush1.bf16.msra.mxu0 %v4351
        %5135 = vmatprep.subr.bf16.mxu0 0
        %5136 = vmatpush2.bf16.msra.mxu0 %v4366
        %5137 = vmatprep.subr.bf16.mxu0 0
        %5138 = vmatpush2.bf16.msra.mxu0 %v4365
        %5139 = vmatprep.subr.bf16.mxu0 0
        %5140 = vmatpush2.bf16.msra.mxu0 %v4364
        %5141 = vmatprep.subr.bf16.mxu0 0
        %5142 = vmatpush2.bf16.msra.mxu0 %v4363
        %5143 = vmatprep.subr.bf16.mxu0 0
        %5144 = vmatpush2.bf16.msra.mxu0 %v4362
        %5145 = vmatprep.subr.bf16.mxu0 0
        %5146 = vmatpush2.bf16.msra.mxu0 %v4361
        %5147 = vmatprep.subr.bf16.mxu0 0
        %5148 = vmatpush2.bf16.msra.mxu0 %v4360
        %5149 = vmatprep.subr.bf16.mxu0 0
        %5150 = vmatpush2.bf16.msra.mxu0 %v4359
        %5151 = vmatprep.mubr.bf16.mxu0 %v2713
        %5152 = vmatmul.mubr.bf16.gmra.mxu0 %v2712
        %v5153 = vpop.f32.mrf.mxu0
        %v5154 = vadd.f32 %v5114, %v5153
        %v5155 = vpop.f32.mrf.mxu0
        %v5156 = vpop.f32.mrf.mxu0
        %v5157 = vpop.f32.mrf.mxu0
        %5158 = vdwg.mxu0
        %5159 = vmatprep.subr.bf16.mxu0 0
        %5160 = vmatpush1.bf16.msra.mxu0 %v4374
        %5161 = vmatprep.subr.bf16.mxu0 0
        %5162 = vmatpush1.bf16.msra.mxu0 %v4373
        %5163 = vmatprep.subr.bf16.mxu0 0
        %5164 = vmatpush1.bf16.msra.mxu0 %v4372
        %5165 = vmatprep.subr.bf16.mxu0 0
        %5166 = vmatpush1.bf16.msra.mxu0 %v4371
        %5167 = vmatprep.subr.bf16.mxu0 0
        %5168 = vmatpush1.bf16.msra.mxu0 %v4370
        %5169 = vmatprep.subr.bf16.mxu0 0
        %5170 = vmatpush1.bf16.msra.mxu0 %v4369
        %5171 = vmatprep.subr.bf16.mxu0 0
        %5172 = vmatpush1.bf16.msra.mxu0 %v4368
        %5173 = vmatprep.subr.bf16.mxu0 0
        %5174 = vmatpush1.bf16.msra.mxu0 %v4367
        %5175 = vmatprep.subr.bf16.mxu0 0
        %5176 = vmatpush2.bf16.msra.mxu0 %v4382
        %5177 = vmatprep.subr.bf16.mxu0 0
        %5178 = vmatpush2.bf16.msra.mxu0 %v4381
        %5179 = vmatprep.subr.bf16.mxu0 0
        %5180 = vmatpush2.bf16.msra.mxu0 %v4380
        %5181 = vmatprep.subr.bf16.mxu0 0
        %5182 = vmatpush2.bf16.msra.mxu0 %v4379
        %5183 = vmatprep.subr.bf16.mxu0 0
        %5184 = vmatpush2.bf16.msra.mxu0 %v4378
        %5185 = vmatprep.subr.bf16.mxu0 0
        %5186 = vmatpush2.bf16.msra.mxu0 %v4377
        %5187 = vmatprep.subr.bf16.mxu0 0
        %5188 = vmatpush2.bf16.msra.mxu0 %v4376
        %5189 = vmatprep.subr.bf16.mxu0 0
        %5190 = vmatpush2.bf16.msra.mxu0 %v4375
        %5191 = vmatprep.mubr.bf16.mxu0 %v2715
        %5192 = vmatmul.mubr.bf16.gmra.mxu0 %v2714
        %v5193 = vpop.f32.mrf.mxu0
        %v5194 = vadd.f32 %v5154, %v5193
        %v5195 = vpop.f32.mrf.mxu0
        %v5196 = vpop.f32.mrf.mxu0
        %v5197 = vpop.f32.mrf.mxu0
        %5198 = vdwg.mxu0
        %5199 = vmatprep.subr.bf16.mxu0 0
        %5200 = vmatpush1.bf16.msra.mxu0 %v4390
        %5201 = vmatprep.subr.bf16.mxu0 0
        %5202 = vmatpush1.bf16.msra.mxu0 %v4389
        %5203 = vmatprep.subr.bf16.mxu0 0
        %5204 = vmatpush1.bf16.msra.mxu0 %v4388
        %5205 = vmatprep.subr.bf16.mxu0 0
        %5206 = vmatpush1.bf16.msra.mxu0 %v4387
        %5207 = vmatprep.subr.bf16.mxu0 0
        %5208 = vmatpush1.bf16.msra.mxu0 %v4386
        %5209 = vmatprep.subr.bf16.mxu0 0
        %5210 = vmatpush1.bf16.msra.mxu0 %v4385
        %5211 = vmatprep.subr.bf16.mxu0 0
        %5212 = vmatpush1.bf16.msra.mxu0 %v4384
        %5213 = vmatprep.subr.bf16.mxu0 0
        %5214 = vmatpush1.bf16.msra.mxu0 %v4383
        %5215 = vmatprep.subr.bf16.mxu0 0
        %5216 = vmatpush2.bf16.msra.mxu0 %v4398
        %5217 = vmatprep.subr.bf16.mxu0 0
        %5218 = vmatpush2.bf16.msra.mxu0 %v4397
        %5219 = vmatprep.subr.bf16.mxu0 0
        %5220 = vmatpush2.bf16.msra.mxu0 %v4396
        %5221 = vmatprep.subr.bf16.mxu0 0
        %5222 = vmatpush2.bf16.msra.mxu0 %v4395
        %5223 = vmatprep.subr.bf16.mxu0 0
        %5224 = vmatpush2.bf16.msra.mxu0 %v4394
        %5225 = vmatprep.subr.bf16.mxu0 0
        %5226 = vmatpush2.bf16.msra.mxu0 %v4393
        %5227 = vmatprep.subr.bf16.mxu0 0
        %5228 = vmatpush2.bf16.msra.mxu0 %v4392
        %5229 = vmatprep.subr.bf16.mxu0 0
        %5230 = vmatpush2.bf16.msra.mxu0 %v4391
        %5231 = vmatprep.mubr.bf16.mxu0 %v2717
        %5232 = vmatmul.mubr.bf16.gmra.mxu0 %v2716
        %v5233 = vpop.f32.mrf.mxu0
        %v5234 = vadd.f32 %v5194, %v5233
        %v5235 = vpop.f32.mrf.mxu0
        %v5236 = vpop.f32.mrf.mxu0
        %v5237 = vpop.f32.mrf.mxu0
        %5238 = vdwg.mxu0
        %v5239 = vmax.f32 %v5234, 0.0
        %v5240 = vpack.c.bf16 %v5239, %v5239
        %v5241 = vld [vmem:[%s7] sm:$0xf]
        %v5242 = vld [vmem:[%s7 + $0x4] sm:$0xf]
        %v5243 = vld [vmem:[%s7 + $0x8] sm:$0xf]
        %v5244 = vld [vmem:[%s7 + $0xc] sm:$0xf]
        %v5245 = vld [vmem:[%s7 + $0x10] sm:$0xf]
        %v5246 = vld [vmem:[%s7 + $0x14] sm:$0xf]
        %v5247 = vld [vmem:[%s7 + $0x18] sm:$0xf]
        %v5248 = vld [vmem:[%s7 + $0x1c] sm:$0xf]
        %v5249 = vld [vmem:[%s7 + $0x20] sm:$0xf]
        %v5250 = vld [vmem:[%s7 + $0x24] sm:$0xf]
        %v5251 = vld [vmem:[%s7 + $0x28] sm:$0xf]
        %v5252 = vld [vmem:[%s7 + $0x2c] sm:$0xf]
        %v5253 = vld [vmem:[%s7 + $0x30] sm:$0xf]
        %v5254 = vld [vmem:[%s7 + $0x34] sm:$0xf]
        %v5255 = vld [vmem:[%s7 + $0x38] sm:$0xf]
        %v5256 = vld [vmem:[%s7 + $0x3c] sm:$0xf]
        %v5257 = vld [vmem:[%s8] sm:$0x1]
        %v5274 = vunpack.c.l.b16 %v5241
        %v5275 = vunpack.c.l.b16 %v5242
        %v5276 = vunpack.c.l.b16 %v5243
        %v5277 = vunpack.c.l.b16 %v5244
        %v5278 = vunpack.c.l.b16 %v5245
        %v5279 = vunpack.c.l.b16 %v5246
        %v5280 = vunpack.c.l.b16 %v5247
        %v5281 = vunpack.c.l.b16 %v5248
        %v5282 = vunpack.c.l.b16 %v5249
        %v5283 = vunpack.c.l.b16 %v5250
        %v5284 = vunpack.c.l.b16 %v5251
        %v5285 = vunpack.c.l.b16 %v5252
        %v5286 = vunpack.c.l.b16 %v5253
        %v5287 = vunpack.c.l.b16 %v5254
        %v5288 = vunpack.c.l.b16 %v5255
        %v5289 = vunpack.c.l.b16 %v5256
        %v5290 = vpack.c.b16 %v5275, %v5274
        %v5291 = vpack.c.b16 %v5277, %v5276
        %v5292 = vpack.c.b16 %v5279, %v5278
        %v5293 = vpack.c.b16 %v5281, %v5280
        %v5294 = vpack.c.b16 %v5283, %v5282
        %v5295 = vpack.c.b16 %v5285, %v5284
        %v5296 = vpack.c.b16 %v5287, %v5286
        %v5297 = vpack.c.b16 %v5289, %v5288
        %5306 = vmatprep.subr.bf16.mxu0 0
        %5307 = vmatpush1.bf16.msra.mxu0 %v5297
        %5308 = vmatprep.subr.bf16.mxu0 0
        %5309 = vmatpush1.bf16.msra.mxu0 %v5296
        %5310 = vmatprep.subr.bf16.mxu0 0
        %5311 = vmatpush1.bf16.msra.mxu0 %v5295
        %5312 = vmatprep.subr.bf16.mxu0 0
        %5313 = vmatpush1.bf16.msra.mxu0 %v5294
        %5314 = vmatprep.subr.bf16.mxu0 0
        %5315 = vmatpush1.bf16.msra.mxu0 %v5293
        %5316 = vmatprep.subr.bf16.mxu0 0
        %5317 = vmatpush1.bf16.msra.mxu0 %v5292
        %5318 = vmatprep.subr.bf16.mxu0 0
        %5319 = vmatpush1.bf16.msra.mxu0 %v5291
        %5320 = vmatprep.subr.bf16.mxu0 0
        %5321 = vmatpush1.bf16.msra.mxu0 %v5290
        %5322 = vmatprep.subr.bf16.mxu0 0
        %5323 = vmatpush2.bf16.msra.mxu0 0
        %5324 = vmatprep.subr.bf16.mxu0 0
        %5325 = vmatpush2.bf16.msra.mxu0 0
        %5326 = vmatprep.subr.bf16.mxu0 0
        %5327 = vmatpush2.bf16.msra.mxu0 0
        %5328 = vmatprep.subr.bf16.mxu0 0
        %5329 = vmatpush2.bf16.msra.mxu0 0
        %5330 = vmatprep.subr.bf16.mxu0 0
        %5331 = vmatpush2.bf16.msra.mxu0 0
        %5332 = vmatprep.subr.bf16.mxu0 0
        %5333 = vmatpush2.bf16.msra.mxu0 0
        %5334 = vmatprep.subr.bf16.mxu0 0
        %5335 = vmatpush2.bf16.msra.mxu0 0
        %5336 = vmatprep.subr.bf16.mxu0 0
        %5337 = vmatpush2.bf16.msra.mxu0 0
        %5338 = vmatprep.mubr.bf16.mxu0 0
        %5339 = vmatmul.mubr.bf16.gmra.mxu0 %v5240
        %v5340 = vpop.f32.mrf.mxu0
        %v5341 = vadd.f32 %v5257, %v5340
        %v5342 = vpop.f32.mrf.mxu0
        %v5343 = vpop.f32.mrf.mxu0
        %v5344 = vpop.f32.mrf.mxu0
        %5345 = vdwg.mxu0
        %5346 = vst [vmem:[%s354] sm:$0x1] %v5341
        %s5347 = sand.u32 %s227, 1
        %s5348 = scalar_lea.sflag [#allocation6], %s5347
        %s5349 = sand.u32 %s227, 1
        %s5350 = scalar_lea.vmem [#allocation9], %s5349
        // Predicated region
        $region65: #{qnet_forward.1} parent=55 // pred_check
          %p5351 = pneg %p237
        $region66: #{qnet_forward.1} parent=55 // pred_check_branch
          %5353 = sbr.rel (%p5351) target = $region68
        $region67: #{qnet_forward.1} parent=55 // pred_region
          %s5355 = ssub.s32 16, 16
          %5356 = vsyncadd %s5348, %s5355
          %s5357 = smul.addr %s25, 16
          %s5358 = scalar_lea.hbm %s9, %s5357
          %s5360 = sshll.u32 %s5350, 4
          %s5361 = int_to_ptr.vmem [resolvable:$true] %s5360
          %5363 = dma.vmem_to_hbm [thread:$0]  %s5361, 16, %s5358, %s5348
        $region68: #{qnet_forward.1} parent=55 // pred_fallthru
          _
      $region56: #{qnet_forward.1} parent=5 // pred_fallthru
        _
      %p5364 = scmp.le.s32.totalorder 2, %s20
      // Predicated region
      $region69: #{qnet_forward.1} parent=5 // pred_check
        %p5365 = pneg %p5364
      $region70: #{qnet_forward.1} parent=5 // pred_check_branch
        %5367 = sbr.rel (%p5365) target = $region72
      $region71: #{qnet_forward.1} parent=5 // pred_region
        %s5368 = ssub.s32 %s20, 2
        // Predicated region
        $region73: #{qnet_forward.1} parent=71 // pred_check
          %p5369 = pneg %p243
        $region74: #{qnet_forward.1} parent=71 // pred_check_branch
          %5371 = sbr.rel (%p5369) target = $region76
        $region75: #{qnet_forward.1} parent=71 // pred_region
          %s5372 = sand.u32 %s228, 1
          %s5373 = scalar_lea.sflag [#allocation6], %s5372
          %s5374 = sand.u32 %s228, 1
          %s5375 = scalar_lea.vmem [#allocation9], %s5374
          %5376 = dma.done %s5373, 16
        $region76: #{qnet_forward.1} parent=71 // pred_fallthru
          _
      $region72: #{qnet_forward.1} parent=5 // pred_fallthru
        _
    $region6: #{qnet_forward.1} parent=1 // loop_footer
      %s24 = sadd.s32 1, %s20
    $region7: #{qnet_forward.1} parent=1 // loop_footer_branch
      %19 = sbr.rel target = $region3
    $region8: #{qnet_forward.1} parent=1 // loop_exit
      _
    %5377 = vsyncpa [#allocation5], 1
    %s5378 = scalar_lea.sflag [#allocation5], 1
    %5379 = vsyncpa %s5378, 1
    %5380 = vsyncpa [#allocation8], 1
    %5381 = vsyncpa [#allocation6], 1
    %s5382 = scalar_lea.sflag [#allocation6], 1
    %5383 = vsyncpa %s5382, 1

</llo_original>
